<compile_context>
chip_gen: v7x
topology: tpu7x:2x2x1
jax: 0.10.0
libtpu: 0.0.40
codegen_flags: <defaults>
</compile_context>

<pallas_src>
import functools

import jax
import jax.numpy as jnp
from jax import lax
from jax.experimental import pallas as pl
from jax.experimental.pallas import tpu as pltpu
import numpy as np


def _round_up(x, m):
  return (x + m - 1) // m * m


def rnn_kernel(*refs, num_layers, seq_len, b_tile, hidden_p, out_p, unroll):
  """One batch tile.

  refs (in order):
    x0      (T, Bt, Hp)   f32       layer-0 projection x*W_ih0 + b0 (precomputed)
    [w_ih   (L-1, Hp, Hp) mm-dtype] only when num_layers > 1
    [b      (L-1, 1,  Hp) f32     ] only when num_layers > 1
    w_hh    (L, Hp, Hp)   mm-dtype
    w_fc    (Hp, Op)      mm-dtype
    b_fc    (1, Op)       f32
    out     (T, Bt, Op)   f32
    seq     (T*Bt, Hp)    f32 scratch (layer activations, time-major rows)
  """
  if num_layers > 1:
    (x0_ref, w_ih_ref, b_ref, w_hh_ref, w_fc_ref, b_fc_ref,
     out_ref, seq_ref) = refs
  else:
    x0_ref, w_hh_ref, w_fc_ref, b_fc_ref, out_ref, seq_ref = refs
    w_ih_ref = b_ref = None

  T, Bt, Hp = seq_len, b_tile, hidden_p
  half = Bt // 2
  mm_dtype = w_hh_ref.dtype

  for l in range(num_layers):
    w_hh_l = w_hh_ref[l]                                     # (Hp, Hp)

    if l > 0:
      # Bulk input projection for the whole sequence: one big MXU matmul +
      # bias, hoisted off the serial critical path.  seq scratch is already 2-D
      # so no reshape is needed.
      proj = (jnp.dot(seq_ref[...].astype(mm_dtype), w_ih_ref[l - 1],
                      preferred_element_type=jnp.float32)
              + b_ref[l - 1])
      seq_ref[...] = proj

    def step(t, carry, l=l, w_hh_l=w_hh_l):
      # Two independent recurrence chains (two halves of the batch tile): the
      # MXU matmul of one chain overlaps the EUP tanh of the other.
      h_a, h_b = carry
      row_a = pl.multiple_of(t * Bt, 8)
      row_b = pl.multiple_of(t * Bt + half, 8)
      if l == 0:
        xt = x0_ref[t]                                       # (Bt, Hp)
        src_a, src_b = xt[:half], xt[half:]
      else:
        src_a = seq_ref[pl.ds(row_a, half), :]
        src_b = seq_ref[pl.ds(row_b, half), :]
      pre_a = src_a + jnp.dot(h_a.astype(mm_dtype), w_hh_l,
                              preferred_element_type=jnp.float32)
      pre_b = src_b + jnp.dot(h_b.astype(mm_dtype), w_hh_l,
                              preferred_element_type=jnp.float32)
      h_a = jnp.tanh(pre_a)
      h_b = jnp.tanh(pre_b)
      seq_ref[pl.ds(row_a, half), :] = h_a
      seq_ref[pl.ds(row_b, half), :] = h_b
      return (h_a, h_b)

    h0 = jnp.zeros((half, Hp), jnp.float32)
    lax.fori_loop(0, T, step, (h0, h0), unroll=unroll)

  # Fully-connected head over all timesteps at once; output is lane-dense
  # (out_p is a multiple of 128), padding sliced off in the wrapper.
  y = (jnp.dot(seq_ref[...].astype(mm_dtype), w_fc_ref[...],
               preferred_element_type=jnp.float32)
       + b_fc_ref[...])
  out_ref[...] = y.reshape(T, Bt, out_p)


def _pad2(a, r, c):
  a = jnp.asarray(a, jnp.float32)
  return jnp.zeros((r, c), jnp.float32).at[:a.shape[0], :a.shape[1]].set(a)


def _vmem_estimate(b_tile, T, Hp, Op, L, mm_bytes):
  """Rough per-grid-step VMEM footprint in bytes."""
  f32 = 4
  seq = T * b_tile * Hp * f32                       # scratch (single buffer)
  x0 = 2 * T * b_tile * Hp * f32                    # input block, double-buffered
  out = 2 * T * b_tile * Op * f32                   # output block, double-buffered
  wts = 2 * ((2 * L - 1) * Hp * Hp * mm_bytes       # w_hh (L) + w_ih (L-1)
             + (L - 1) * Hp * f32                   # folded biases
             + Hp * Op * mm_bytes + Op * f32)       # fc head
  return seq + x0 + out + wts


def rnn_forward(x, params, *, num_layers, hidden_size, output_size,
                b_tile=None, matmul_dtype=jnp.bfloat16):
  """x: (B, T) float32  ->  (B, T, O) float32 (matches the PyTorch module)."""
  B, T = x.shape
  H, O, L = hidden_size, output_size, num_layers
  Hp = _round_up(H, 128)            # lane-dense hidden dim
  Op = _round_up(O, 128)            # lane-dense output dim
  mm_dtype = jnp.dtype(matmul_dtype)
  mm_bytes = mm_dtype.itemsize

  if b_tile is None:
    # Largest tile (multiple of 16, capped at 256) that does not grossly
    # exceed the batch and fits a v7x-safe (~48 MiB) VMEM budget.  On v7x,
    # batches larger than the tile naturally give >=2 grid steps for its 2 TCs.
    budget = 48 * 1024 * 1024
    bp16 = _round_up(B, 16)
    b_tile = 16
    for cand in (256, 128, 64, 32, 16):
      if cand <= bp16 and _vmem_estimate(cand, T, Hp, Op, L, mm_bytes) <= budget:
        b_tile = cand
        break
  assert b_tile % 16 == 0 and b_tile >= 16
  Bp = _round_up(B, b_tile)

  # ---- pack & zero-pad parameters (padded rows/cols are zeros so padded
  # hidden/output columns stay exactly zero through the recurrence) ----------
  # Layer-0 projection precomputed in the wrapper (input_size == 1 so it is a
  # scalar * row outer product); keeps the kernel free of last-dim-1 blocks.
  w0 = _pad2(jnp.asarray(params['w_ih'][0], jnp.float32).T, 1, Hp)[0]   # (Hp,)
  b0 = _pad2((params['b_ih'][0] + params['b_hh'][0]).reshape(1, H), 1, Hp)[0]
  x_tb = jnp.zeros((T, Bp), jnp.float32).at[:, :B].set(
      jnp.asarray(x, jnp.float32).T)
  x0 = x_tb[:, :, None] * w0[None, None, :] + b0[None, None, :]         # (T,Bp,Hp)

  w_hh = jnp.stack([_pad2(params['w_hh'][l].T, Hp, Hp)
                    for l in range(L)]).astype(mm_dtype)                 # (L,Hp,Hp)
  w_fc = _pad2(params['fc_w'].T, Hp, Op).astype(mm_dtype)                # (Hp,Op)
  b_fc = _pad2(params['fc_b'].reshape(1, O), 1, Op)                      # (1,Op)

  args = [x0]
  in_specs = [pl.BlockSpec((T, b_tile, Hp), lambda b: (0, b, 0))]
  if L > 1:
    w_ih_rest = jnp.stack([_pad2(params['w_ih'][l].T, Hp, Hp)
                           for l in range(1, L)]).astype(mm_dtype)       # (L-1,Hp,Hp)
    b_rest = jnp.stack([_pad2((params['b_ih'][l] + params['b_hh'][l]).reshape(1, H),
                              1, Hp) for l in range(1, L)])              # (L-1,1,Hp)
    args += [w_ih_rest, b_rest]
    in_specs += [pl.BlockSpec((L - 1, Hp, Hp), lambda b: (0, 0, 0)),
                 pl.BlockSpec((L - 1, 1, Hp), lambda b: (0, 0, 0))]
  args += [w_hh, w_fc, b_fc]
  in_specs += [pl.BlockSpec((L, Hp, Hp), lambda b: (0, 0, 0)),
               pl.BlockSpec((Hp, Op), lambda b: (0, 0)),
               pl.BlockSpec((1, Op), lambda b: (0, 0))]

  est = _vmem_estimate(b_tile, T, Hp, Op, L, mm_bytes)
  vmem_limit = int(min(100 * 2**20, max(32 * 2**20, est * 1.25 + (4 << 20))))

  unroll = T if T <= 16 else 8      # bounded unroll once T grows
  kernel = functools.partial(rnn_kernel, num_layers=L, seq_len=T,
                             b_tile=b_tile, hidden_p=Hp, out_p=Op,
                             unroll=unroll)

  out_tbo = pl.pallas_call(
      kernel,
      out_shape=jax.ShapeDtypeStruct((T, Bp, Op), jnp.float32),
      grid=(Bp // b_tile,),
      in_specs=in_specs,
      out_specs=pl.BlockSpec((T, b_tile, Op), lambda b: (0, b, 0)),
      scratch_shapes=[pltpu.VMEM((T * b_tile, Hp), jnp.float32)],
      compiler_params=pltpu.CompilerParams(
          dimension_semantics=("parallel",),
          vmem_limit_bytes=vmem_limit),
  )(*args)

  # strip batch / output padding, back to batch-first
  return jnp.transpose(out_tbo[:, :B, :O], (1, 0, 2))                    # (B,T,O)


def rnn_reference_np(x, params, *, num_layers, hidden_size):
  """Pure numpy reference mirroring torch.nn.RNN + nn.Linear."""
  x = np.asarray(x, np.float64)
  B, T = x.shape
  h_seq = x[:, :, None]                                   # (B, T, 1)
  for l in range(num_layers):
    W_ih = np.asarray(params['w_ih'][l], np.float64)
    W_hh = np.asarray(params['w_hh'][l], np.float64)
    b_ih = np.asarray(params['b_ih'][l], np.float64)
    b_hh = np.asarray(params['b_hh'][l], np.float64)
    h = np.zeros((B, hidden_size), np.float64)
    outs = []
    for t in range(T):
      h = np.tanh(h_seq[:, t] @ W_ih.T + b_ih + h @ W_hh.T + b_hh)
      outs.append(h)
    h_seq = np.stack(outs, axis=1)                        # (B, T, H)
  W_fc = np.asarray(params['fc_w'], np.float64)
  b_fc = np.asarray(params['fc_b'], np.float64)
  return h_seq @ W_fc.T + b_fc                            # (B, T, O)


def init_params(key, *, input_size, hidden_size, output_size, num_layers):
  """Deterministic init with PyTorch-like uniform ranges."""
  stdv = 1.0 / np.sqrt(hidden_size)
  keys = jax.random.split(key, 4 * num_layers + 2)
  w_ih, w_hh, b_ih, b_hh = [], [], [], []
  ki = 0
  for l in range(num_layers):
    in_dim = input_size if l == 0 else hidden_size
    w_ih.append(jax.random.uniform(keys[ki], (hidden_size, in_dim),
                                   jnp.float32, -stdv, stdv)); ki += 1
    w_hh.append(jax.random.uniform(keys[ki], (hidden_size, hidden_size),
                                   jnp.float32, -stdv, stdv)); ki += 1
    b_ih.append(jax.random.uniform(keys[ki], (hidden_size,),
                                   jnp.float32, -stdv, stdv)); ki += 1
    b_hh.append(jax.random.uniform(keys[ki], (hidden_size,),
                                   jnp.float32, -stdv, stdv)); ki += 1
  fc_stdv = 1.0 / np.sqrt(hidden_size)
  fc_w = jax.random.uniform(keys[ki], (output_size, hidden_size),
                            jnp.float32, -fc_stdv, fc_stdv); ki += 1
  fc_b = jax.random.uniform(keys[ki], (output_size,),
                            jnp.float32, -fc_stdv, fc_stdv)
  return dict(w_ih=w_ih, w_hh=w_hh, b_ih=b_ih, b_hh=b_hh, fc_w=fc_w, fc_b=fc_b)


if __name__ == "__main__":
  # model_cfg: INPUT_DIM=1 (forward unsqueezes x to last-dim 1), HIDDEN_DIM=32,
  #            OUTPUT_DIM=4, NUM_LAYERS=2
  INPUT_DIM, HIDDEN_DIM, OUTPUT_DIM, NUM_LAYERS = 1, 32, 4, 2

  key = jax.random.PRNGKey(0)
  k_x, k_p, k_x2 = jax.random.split(key, 3)
  params = init_params(k_p, input_size=INPUT_DIM, hidden_size=HIDDEN_DIM,
                       output_size=OUTPUT_DIM, num_layers=NUM_LAYERS)

  # Case 1: nominal small shape (B=2, T=8), strict float32 MXU path.
  B, T = 2, 8
  x = jax.random.normal(k_x, (B, T), jnp.float32)
  out = jax.block_until_ready(
      rnn_forward(x, params, num_layers=NUM_LAYERS, hidden_size=HIDDEN_DIM,
                  output_size=OUTPUT_DIM, matmul_dtype=jnp.float32))
  ref = rnn_reference_np(np.asarray(x), params, num_layers=NUM_LAYERS,
                         hidden_size=HIDDEN_DIM)
  assert out.shape == (B, T, OUTPUT_DIM), out.shape
  np.testing.assert_allclose(np.asarray(out), ref, atol=1e-3, rtol=1e-3)

  # Same inputs, default bf16 MXU-input path (faster); looser tolerance since
  # bf16 rounding compounds over T steps and L layers (tanh keeps it bounded).
  out_bf16 = jax.block_until_ready(
      rnn_forward(x, params, num_layers=NUM_LAYERS, hidden_size=HIDDEN_DIM,
                  output_size=OUTPUT_DIM))
  np.testing.assert_allclose(np.asarray(out_bf16), ref, atol=5e-2, rtol=5e-2)

  # Case 2: batch not a multiple of the tile -> batch padding + 2-step grid.
  B2, T2 = 33, 8
  x2 = jax.random.normal(k_x2, (B2, T2), jnp.float32)
  out2 = jax.block_until_ready(
      rnn_forward(x2, params, num_layers=NUM_LAYERS, hidden_size=HIDDEN_DIM,
                  output_size=OUTPUT_DIM, matmul_dtype=jnp.float32))
  ref2 = rnn_reference_np(np.asarray(x2), params, num_layers=NUM_LAYERS,
                          hidden_size=HIDDEN_DIM)
  assert out2.shape == (B2, T2, OUTPUT_DIM), out2.shape
  np.testing.assert_allclose(np.asarray(out2), ref2, atol=1e-3, rtol=1e-3)

  print("KERNEL_OK")
</pallas_src>

<mosaic_0001>
module attributes {stable_mosaic.version = 11 : i64} {
  func.func @rnn_kernel(%arg0: i32, %arg1: memref<8x16x128xf32, #tpu.memory_space<vmem>>, %arg2: memref<1x128x128xf32, #tpu.memory_space<vmem>>, %arg3: memref<1x1x128xf32, #tpu.memory_space<vmem>>, %arg4: memref<2x128x128xf32, #tpu.memory_space<vmem>>, %arg5: memref<128x128xf32, #tpu.memory_space<vmem>>, %arg6: memref<1x128xf32, #tpu.memory_space<vmem>>, %arg7: memref<8x16x128xf32, #tpu.memory_space<vmem>>, %arg8: memref<128x128xf32, #tpu.memory_space<vmem>>) attributes {dimension_semantics = [#tpu.dimension_semantics<parallel>], iteration_bounds = array<i64: 1>, scalar_prefetch = 0 : i64, scratch_operands = 1 : i64, tpu.core_type = #tpu.core_type<tc>, window_params = [{transform_indices = @transform_0, window_bounds = array<i64: 8, 16, 128>}, {pipeline_mode = #tpu.pipeline_mode<synchronous>, transform_indices = @transform_1, window_bounds = array<i64: 1, 128, 128>}, {pipeline_mode = #tpu.pipeline_mode<synchronous>, transform_indices = @transform_2, window_bounds = array<i64: 1, 1, 128>}, {pipeline_mode = #tpu.pipeline_mode<synchronous>, transform_indices = @transform_3, window_bounds = array<i64: 2, 128, 128>}, {pipeline_mode = #tpu.pipeline_mode<synchronous>, transform_indices = @transform_4, window_bounds = array<i64: 128, 128>}, {pipeline_mode = #tpu.pipeline_mode<synchronous>, transform_indices = @transform_5, window_bounds = array<i64: 1, 128>}, {transform_indices = @transform_6, window_bounds = array<i64: 8, 16, 128>}]} {
    %c0 = arith.constant 0 : index
    %c0_0 = arith.constant 0 : index
    %c0_1 = arith.constant 0 : index
    %0 = vector.load %arg4[%c0, %c0_0, %c0_1] : memref<2x128x128xf32, #tpu.memory_space<vmem>>, vector<1x128x128xf32>
    %1 = vector.shape_cast %0 : vector<1x128x128xf32> to vector<128x128xf32>
    %cst = arith.constant 0.000000e+00 : f32
    %2 = vector.broadcast %cst : f32 to vector<8x128xf32>
    %c0_i32 = arith.constant 0 : i32
    %c16_i32 = arith.constant 16 : i32
    %3 = arith.muli %c0_i32, %c16_i32 : i32
    %4 = tpu.assume_multiple %3, 8 : i32
    %c16_i32_2 = arith.constant 16 : i32
    %5 = arith.muli %c0_i32, %c16_i32_2 : i32
    %c8_i32 = arith.constant 8 : i32
    %6 = arith.addi %5, %c8_i32 : i32
    %7 = tpu.assume_multiple %6, 8 : i32
    %8 = arith.index_cast %c0_i32 : i32 to index
    %c0_3 = arith.constant 0 : index
    %c0_4 = arith.constant 0 : index
    %9 = vector.load %arg1[%8, %c0_3, %c0_4] : memref<8x16x128xf32, #tpu.memory_space<vmem>>, vector<1x16x128xf32>
    %10 = vector.shape_cast %9 : vector<1x16x128xf32> to vector<16x128xf32>
    %11 = vector.extract_strided_slice %10 {offsets = [0, 0], sizes = [8, 128], strides = [1, 1]} : vector<16x128xf32> to vector<8x128xf32>
    %12 = vector.extract_strided_slice %10 {offsets = [8, 0], sizes = [8, 128], strides = [1, 1]} : vector<16x128xf32> to vector<8x128xf32>
    %cst_5 = arith.constant dense<0.000000e+00> : vector<8x128xf32>
    %13 = tpu.matmul %2, %1, %cst_5 {dimension_numbers = #tpu.dot_dimension_numbers<[1], [0], [0], [1], [0, 0, 1, 1], [], []>} : vector<8x128xf32>, vector<128x128xf32>, vector<8x128xf32> -> vector<8x128xf32>
    %14 = arith.addf %11, %13 : vector<8x128xf32>
    %cst_6 = arith.constant dense<0.000000e+00> : vector<8x128xf32>
    %15 = tpu.matmul %2, %1, %cst_6 {dimension_numbers = #tpu.dot_dimension_numbers<[1], [0], [0], [1], [0, 0, 1, 1], [], []>} : vector<8x128xf32>, vector<128x128xf32>, vector<8x128xf32> -> vector<8x128xf32>
    %16 = arith.addf %12, %15 : vector<8x128xf32>
    %17 = math.tanh %14 : vector<8x128xf32>
    %18 = math.tanh %16 : vector<8x128xf32>
    %19 = arith.index_cast %4 : i32 to index
    %c0_7 = arith.constant 0 : index
    %20 = vector.load %arg8[%19, %c0_7] : memref<128x128xf32, #tpu.memory_space<vmem>>, vector<8x128xf32>
    tpu.vector_store %arg8[%19, %c0_7], %17 {strides = array<i32>} : memref<128x128xf32, #tpu.memory_space<vmem>>, vector<8x128xf32>,
    %21 = arith.index_cast %7 : i32 to index
    %c0_8 = arith.constant 0 : index
    %22 = vector.load %arg8[%21, %c0_8] : memref<128x128xf32, #tpu.memory_space<vmem>>, vector<8x128xf32>
    tpu.vector_store %arg8[%21, %c0_8], %18 {strides = array<i32>} : memref<128x128xf32, #tpu.memory_space<vmem>>, vector<8x128xf32>,
    %c1_i32 = arith.constant 1 : i32
    %c16_i32_9 = arith.constant 16 : i32
    %23 = arith.muli %c1_i32, %c16_i32_9 : i32
    %24 = tpu.assume_multiple %23, 8 : i32
    %c16_i32_10 = arith.constant 16 : i32
    %25 = arith.muli %c1_i32, %c16_i32_10 : i32
    %c8_i32_11 = arith.constant 8 : i32
    %26 = arith.addi %25, %c8_i32_11 : i32
    %27 = tpu.assume_multiple %26, 8 : i32
    %28 = arith.index_cast %c1_i32 : i32 to index
    %c0_12 = arith.constant 0 : index
    %c0_13 = arith.constant 0 : index
    %29 = vector.load %arg1[%28, %c0_12, %c0_13] : memref<8x16x128xf32, #tpu.memory_space<vmem>>, vector<1x16x128xf32>
    %30 = vector.shape_cast %29 : vector<1x16x128xf32> to vector<16x128xf32>
    %31 = vector.extract_strided_slice %30 {offsets = [0, 0], sizes = [8, 128], strides = [1, 1]} : vector<16x128xf32> to vector<8x128xf32>
    %32 = vector.extract_strided_slice %30 {offsets = [8, 0], sizes = [8, 128], strides = [1, 1]} : vector<16x128xf32> to vector<8x128xf32>
    %cst_14 = arith.constant dense<0.000000e+00> : vector<8x128xf32>
    %33 = tpu.matmul %17, %1, %cst_14 {dimension_numbers = #tpu.dot_dimension_numbers<[1], [0], [0], [1], [0, 0, 1, 1], [], []>} : vector<8x128xf32>, vector<128x128xf32>, vector<8x128xf32> -> vector<8x128xf32>
    %34 = arith.addf %31, %33 : vector<8x128xf32>
    %cst_15 = arith.constant dense<0.000000e+00> : vector<8x128xf32>
    %35 = tpu.matmul %18, %1, %cst_15 {dimension_numbers = #tpu.dot_dimension_numbers<[1], [0], [0], [1], [0, 0, 1, 1], [], []>} : vector<8x128xf32>, vector<128x128xf32>, vector<8x128xf32> -> vector<8x128xf32>
    %36 = arith.addf %32, %35 : vector<8x128xf32>
    %37 = math.tanh %34 : vector<8x128xf32>
    %38 = math.tanh %36 : vector<8x128xf32>
    %39 = arith.index_cast %24 : i32 to index
    %c0_16 = arith.constant 0 : index
    %40 = vector.load %arg8[%39, %c0_16] : memref<128x128xf32, #tpu.memory_space<vmem>>, vector<8x128xf32>
    tpu.vector_store %arg8[%39, %c0_16], %37 {strides = array<i32>} : memref<128x128xf32, #tpu.memory_space<vmem>>, vector<8x128xf32>,
    %41 = arith.index_cast %27 : i32 to index
    %c0_17 = arith.constant 0 : index
    %42 = vector.load %arg8[%41, %c0_17] : memref<128x128xf32, #tpu.memory_space<vmem>>, vector<8x128xf32>
    tpu.vector_store %arg8[%41, %c0_17], %38 {strides = array<i32>} : memref<128x128xf32, #tpu.memory_space<vmem>>, vector<8x128xf32>,
    %c2_i32 = arith.constant 2 : i32
    %c16_i32_18 = arith.constant 16 : i32
    %43 = arith.muli %c2_i32, %c16_i32_18 : i32
    %44 = tpu.assume_multiple %43, 8 : i32
    %c16_i32_19 = arith.constant 16 : i32
    %45 = arith.muli %c2_i32, %c16_i32_19 : i32
    %c8_i32_20 = arith.constant 8 : i32
    %46 = arith.addi %45, %c8_i32_20 : i32
    %47 = tpu.assume_multiple %46, 8 : i32
    %48 = arith.index_cast %c2_i32 : i32 to index
    %c0_21 = arith.constant 0 : index
    %c0_22 = arith.constant 0 : index
    %49 = vector.load %arg1[%48, %c0_21, %c0_22] : memref<8x16x128xf32, #tpu.memory_space<vmem>>, vector<1x16x128xf32>
    %50 = vector.shape_cast %49 : vector<1x16x128xf32> to vector<16x128xf32>
    %51 = vector.extract_strided_slice %50 {offsets = [0, 0], sizes = [8, 128], strides = [1, 1]} : vector<16x128xf32> to vector<8x128xf32>
    %52 = vector.extract_strided_slice %50 {offsets = [8, 0], sizes = [8, 128], strides = [1, 1]} : vector<16x128xf32> to vector<8x128xf32>
    %cst_23 = arith.constant dense<0.000000e+00> : vector<8x128xf32>
    %53 = tpu.matmul %37, %1, %cst_23 {dimension_numbers = #tpu.dot_dimension_numbers<[1], [0], [0], [1], [0, 0, 1, 1], [], []>} : vector<8x128xf32>, vector<128x128xf32>, vector<8x128xf32> -> vector<8x128xf32>
    %54 = arith.addf %51, %53 : vector<8x128xf32>
    %cst_24 = arith.constant dense<0.000000e+00> : vector<8x128xf32>
    %55 = tpu.matmul %38, %1, %cst_24 {dimension_numbers = #tpu.dot_dimension_numbers<[1], [0], [0], [1], [0, 0, 1, 1], [], []>} : vector<8x128xf32>, vector<128x128xf32>, vector<8x128xf32> -> vector<8x128xf32>
    %56 = arith.addf %52, %55 : vector<8x128xf32>
    %57 = math.tanh %54 : vector<8x128xf32>
    %58 = math.tanh %56 : vector<8x128xf32>
    %59 = arith.index_cast %44 : i32 to index
    %c0_25 = arith.constant 0 : index
    %60 = vector.load %arg8[%59, %c0_25] : memref<128x128xf32, #tpu.memory_space<vmem>>, vector<8x128xf32>
    tpu.vector_store %arg8[%59, %c0_25], %57 {strides = array<i32>} : memref<128x128xf32, #tpu.memory_space<vmem>>, vector<8x128xf32>,
    %61 = arith.index_cast %47 : i32 to index
    %c0_26 = arith.constant 0 : index
    %62 = vector.load %arg8[%61, %c0_26] : memref<128x128xf32, #tpu.memory_space<vmem>>, vector<8x128xf32>
    tpu.vector_store %arg8[%61, %c0_26], %58 {strides = array<i32>} : memref<128x128xf32, #tpu.memory_space<vmem>>, vector<8x128xf32>,
    %c3_i32 = arith.constant 3 : i32
    %c16_i32_27 = arith.constant 16 : i32
    %63 = arith.muli %c3_i32, %c16_i32_27 : i32
    %64 = tpu.assume_multiple %63, 8 : i32
    %c16_i32_28 = arith.constant 16 : i32
    %65 = arith.muli %c3_i32, %c16_i32_28 : i32
    %c8_i32_29 = arith.constant 8 : i32
    %66 = arith.addi %65, %c8_i32_29 : i32
    %67 = tpu.assume_multiple %66, 8 : i32
    %68 = arith.index_cast %c3_i32 : i32 to index
    %c0_30 = arith.constant 0 : index
    %c0_31 = arith.constant 0 : index
    %69 = vector.load %arg1[%68, %c0_30, %c0_31] : memref<8x16x128xf32, #tpu.memory_space<vmem>>, vector<1x16x128xf32>
    %70 = vector.shape_cast %69 : vector<1x16x128xf32> to vector<16x128xf32>
    %71 = vector.extract_strided_slice %70 {offsets = [0, 0], sizes = [8, 128], strides = [1, 1]} : vector<16x128xf32> to vector<8x128xf32>
    %72 = vector.extract_strided_slice %70 {offsets = [8, 0], sizes = [8, 128], strides = [1, 1]} : vector<16x128xf32> to vector<8x128xf32>
    %cst_32 = arith.constant dense<0.000000e+00> : vector<8x128xf32>
    %73 = tpu.matmul %57, %1, %cst_32 {dimension_numbers = #tpu.dot_dimension_numbers<[1], [0], [0], [1], [0, 0, 1, 1], [], []>} : vector<8x128xf32>, vector<128x128xf32>, vector<8x128xf32> -> vector<8x128xf32>
    %74 = arith.addf %71, %73 : vector<8x128xf32>
    %cst_33 = arith.constant dense<0.000000e+00> : vector<8x128xf32>
    %75 = tpu.matmul %58, %1, %cst_33 {dimension_numbers = #tpu.dot_dimension_numbers<[1], [0], [0], [1], [0, 0, 1, 1], [], []>} : vector<8x128xf32>, vector<128x128xf32>, vector<8x128xf32> -> vector<8x128xf32>
    %76 = arith.addf %72, %75 : vector<8x128xf32>
    %77 = math.tanh %74 : vector<8x128xf32>
    %78 = math.tanh %76 : vector<8x128xf32>
    %79 = arith.index_cast %64 : i32 to index
    %c0_34 = arith.constant 0 : index
    %80 = vector.load %arg8[%79, %c0_34] : memref<128x128xf32, #tpu.memory_space<vmem>>, vector<8x128xf32>
    tpu.vector_store %arg8[%79, %c0_34], %77 {strides = array<i32>} : memref<128x128xf32, #tpu.memory_space<vmem>>, vector<8x128xf32>,
    %81 = arith.index_cast %67 : i32 to index
    %c0_35 = arith.constant 0 : index
    %82 = vector.load %arg8[%81, %c0_35] : memref<128x128xf32, #tpu.memory_space<vmem>>, vector<8x128xf32>
    tpu.vector_store %arg8[%81, %c0_35], %78 {strides = array<i32>} : memref<128x128xf32, #tpu.memory_space<vmem>>, vector<8x128xf32>,
    %c4_i32 = arith.constant 4 : i32
    %c16_i32_36 = arith.constant 16 : i32
    %83 = arith.muli %c4_i32, %c16_i32_36 : i32
    %84 = tpu.assume_multiple %83, 8 : i32
    %c16_i32_37 = arith.constant 16 : i32
    %85 = arith.muli %c4_i32, %c16_i32_37 : i32
    %c8_i32_38 = arith.constant 8 : i32
    %86 = arith.addi %85, %c8_i32_38 : i32
    %87 = tpu.assume_multiple %86, 8 : i32
    %88 = arith.index_cast %c4_i32 : i32 to index
    %c0_39 = arith.constant 0 : index
    %c0_40 = arith.constant 0 : index
    %89 = vector.load %arg1[%88, %c0_39, %c0_40] : memref<8x16x128xf32, #tpu.memory_space<vmem>>, vector<1x16x128xf32>
    %90 = vector.shape_cast %89 : vector<1x16x128xf32> to vector<16x128xf32>
    %91 = vector.extract_strided_slice %90 {offsets = [0, 0], sizes = [8, 128], strides = [1, 1]} : vector<16x128xf32> to vector<8x128xf32>
    %92 = vector.extract_strided_slice %90 {offsets = [8, 0], sizes = [8, 128], strides = [1, 1]} : vector<16x128xf32> to vector<8x128xf32>
    %cst_41 = arith.constant dense<0.000000e+00> : vector<8x128xf32>
    %93 = tpu.matmul %77, %1, %cst_41 {dimension_numbers = #tpu.dot_dimension_numbers<[1], [0], [0], [1], [0, 0, 1, 1], [], []>} : vector<8x128xf32>, vector<128x128xf32>, vector<8x128xf32> -> vector<8x128xf32>
    %94 = arith.addf %91, %93 : vector<8x128xf32>
    %cst_42 = arith.constant dense<0.000000e+00> : vector<8x128xf32>
    %95 = tpu.matmul %78, %1, %cst_42 {dimension_numbers = #tpu.dot_dimension_numbers<[1], [0], [0], [1], [0, 0, 1, 1], [], []>} : vector<8x128xf32>, vector<128x128xf32>, vector<8x128xf32> -> vector<8x128xf32>
    %96 = arith.addf %92, %95 : vector<8x128xf32>
    %97 = math.tanh %94 : vector<8x128xf32>
    %98 = math.tanh %96 : vector<8x128xf32>
    %99 = arith.index_cast %84 : i32 to index
    %c0_43 = arith.constant 0 : index
    %100 = vector.load %arg8[%99, %c0_43] : memref<128x128xf32, #tpu.memory_space<vmem>>, vector<8x128xf32>
    tpu.vector_store %arg8[%99, %c0_43], %97 {strides = array<i32>} : memref<128x128xf32, #tpu.memory_space<vmem>>, vector<8x128xf32>,
    %101 = arith.index_cast %87 : i32 to index
    %c0_44 = arith.constant 0 : index
    %102 = vector.load %arg8[%101, %c0_44] : memref<128x128xf32, #tpu.memory_space<vmem>>, vector<8x128xf32>
    tpu.vector_store %arg8[%101, %c0_44], %98 {strides = array<i32>} : memref<128x128xf32, #tpu.memory_space<vmem>>, vector<8x128xf32>,
    %c5_i32 = arith.constant 5 : i32
    %c16_i32_45 = arith.constant 16 : i32
    %103 = arith.muli %c5_i32, %c16_i32_45 : i32
    %104 = tpu.assume_multiple %103, 8 : i32
    %c16_i32_46 = arith.constant 16 : i32
    %105 = arith.muli %c5_i32, %c16_i32_46 : i32
    %c8_i32_47 = arith.constant 8 : i32
    %106 = arith.addi %105, %c8_i32_47 : i32
    %107 = tpu.assume_multiple %106, 8 : i32
    %108 = arith.index_cast %c5_i32 : i32 to index
    %c0_48 = arith.constant 0 : index
    %c0_49 = arith.constant 0 : index
    %109 = vector.load %arg1[%108, %c0_48, %c0_49] : memref<8x16x128xf32, #tpu.memory_space<vmem>>, vector<1x16x128xf32>
    %110 = vector.shape_cast %109 : vector<1x16x128xf32> to vector<16x128xf32>
    %111 = vector.extract_strided_slice %110 {offsets = [0, 0], sizes = [8, 128], strides = [1, 1]} : vector<16x128xf32> to vector<8x128xf32>
    %112 = vector.extract_strided_slice %110 {offsets = [8, 0], sizes = [8, 128], strides = [1, 1]} : vector<16x128xf32> to vector<8x128xf32>
    %cst_50 = arith.constant dense<0.000000e+00> : vector<8x128xf32>
    %113 = tpu.matmul %97, %1, %cst_50 {dimension_numbers = #tpu.dot_dimension_numbers<[1], [0], [0], [1], [0, 0, 1, 1], [], []>} : vector<8x128xf32>, vector<128x128xf32>, vector<8x128xf32> -> vector<8x128xf32>
    %114 = arith.addf %111, %113 : vector<8x128xf32>
    %cst_51 = arith.constant dense<0.000000e+00> : vector<8x128xf32>
    %115 = tpu.matmul %98, %1, %cst_51 {dimension_numbers = #tpu.dot_dimension_numbers<[1], [0], [0], [1], [0, 0, 1, 1], [], []>} : vector<8x128xf32>, vector<128x128xf32>, vector<8x128xf32> -> vector<8x128xf32>
    %116 = arith.addf %112, %115 : vector<8x128xf32>
    %117 = math.tanh %114 : vector<8x128xf32>
    %118 = math.tanh %116 : vector<8x128xf32>
    %119 = arith.index_cast %104 : i32 to index
    %c0_52 = arith.constant 0 : index
    %120 = vector.load %arg8[%119, %c0_52] : memref<128x128xf32, #tpu.memory_space<vmem>>, vector<8x128xf32>
    tpu.vector_store %arg8[%119, %c0_52], %117 {strides = array<i32>} : memref<128x128xf32, #tpu.memory_space<vmem>>, vector<8x128xf32>,
    %121 = arith.index_cast %107 : i32 to index
    %c0_53 = arith.constant 0 : index
    %122 = vector.load %arg8[%121, %c0_53] : memref<128x128xf32, #tpu.memory_space<vmem>>, vector<8x128xf32>
    tpu.vector_store %arg8[%121, %c0_53], %118 {strides = array<i32>} : memref<128x128xf32, #tpu.memory_space<vmem>>, vector<8x128xf32>,
    %c6_i32 = arith.constant 6 : i32
    %c16_i32_54 = arith.constant 16 : i32
    %123 = arith.muli %c6_i32, %c16_i32_54 : i32
    %124 = tpu.assume_multiple %123, 8 : i32
    %c16_i32_55 = arith.constant 16 : i32
    %125 = arith.muli %c6_i32, %c16_i32_55 : i32
    %c8_i32_56 = arith.constant 8 : i32
    %126 = arith.addi %125, %c8_i32_56 : i32
    %127 = tpu.assume_multiple %126, 8 : i32
    %128 = arith.index_cast %c6_i32 : i32 to index
    %c0_57 = arith.constant 0 : index
    %c0_58 = arith.constant 0 : index
    %129 = vector.load %arg1[%128, %c0_57, %c0_58] : memref<8x16x128xf32, #tpu.memory_space<vmem>>, vector<1x16x128xf32>
    %130 = vector.shape_cast %129 : vector<1x16x128xf32> to vector<16x128xf32>
    %131 = vector.extract_strided_slice %130 {offsets = [0, 0], sizes = [8, 128], strides = [1, 1]} : vector<16x128xf32> to vector<8x128xf32>
    %132 = vector.extract_strided_slice %130 {offsets = [8, 0], sizes = [8, 128], strides = [1, 1]} : vector<16x128xf32> to vector<8x128xf32>
    %cst_59 = arith.constant dense<0.000000e+00> : vector<8x128xf32>
    %133 = tpu.matmul %117, %1, %cst_59 {dimension_numbers = #tpu.dot_dimension_numbers<[1], [0], [0], [1], [0, 0, 1, 1], [], []>} : vector<8x128xf32>, vector<128x128xf32>, vector<8x128xf32> -> vector<8x128xf32>
    %134 = arith.addf %131, %133 : vector<8x128xf32>
    %cst_60 = arith.constant dense<0.000000e+00> : vector<8x128xf32>
    %135 = tpu.matmul %118, %1, %cst_60 {dimension_numbers = #tpu.dot_dimension_numbers<[1], [0], [0], [1], [0, 0, 1, 1], [], []>} : vector<8x128xf32>, vector<128x128xf32>, vector<8x128xf32> -> vector<8x128xf32>
    %136 = arith.addf %132, %135 : vector<8x128xf32>
    %137 = math.tanh %134 : vector<8x128xf32>
    %138 = math.tanh %136 : vector<8x128xf32>
    %139 = arith.index_cast %124 : i32 to index
    %c0_61 = arith.constant 0 : index
    %140 = vector.load %arg8[%139, %c0_61] : memref<128x128xf32, #tpu.memory_space<vmem>>, vector<8x128xf32>
    tpu.vector_store %arg8[%139, %c0_61], %137 {strides = array<i32>} : memref<128x128xf32, #tpu.memory_space<vmem>>, vector<8x128xf32>,
    %141 = arith.index_cast %127 : i32 to index
    %c0_62 = arith.constant 0 : index
    %142 = vector.load %arg8[%141, %c0_62] : memref<128x128xf32, #tpu.memory_space<vmem>>, vector<8x128xf32>
    tpu.vector_store %arg8[%141, %c0_62], %138 {strides = array<i32>} : memref<128x128xf32, #tpu.memory_space<vmem>>, vector<8x128xf32>,
    %c7_i32 = arith.constant 7 : i32
    %c16_i32_63 = arith.constant 16 : i32
    %143 = arith.muli %c7_i32, %c16_i32_63 : i32
    %144 = tpu.assume_multiple %143, 8 : i32
    %c16_i32_64 = arith.constant 16 : i32
    %145 = arith.muli %c7_i32, %c16_i32_64 : i32
    %c8_i32_65 = arith.constant 8 : i32
    %146 = arith.addi %145, %c8_i32_65 : i32
    %147 = tpu.assume_multiple %146, 8 : i32
    %148 = arith.index_cast %c7_i32 : i32 to index
    %c0_66 = arith.constant 0 : index
    %c0_67 = arith.constant 0 : index
    %149 = vector.load %arg1[%148, %c0_66, %c0_67] : memref<8x16x128xf32, #tpu.memory_space<vmem>>, vector<1x16x128xf32>
    %150 = vector.shape_cast %149 : vector<1x16x128xf32> to vector<16x128xf32>
    %151 = vector.extract_strided_slice %150 {offsets = [0, 0], sizes = [8, 128], strides = [1, 1]} : vector<16x128xf32> to vector<8x128xf32>
    %152 = vector.extract_strided_slice %150 {offsets = [8, 0], sizes = [8, 128], strides = [1, 1]} : vector<16x128xf32> to vector<8x128xf32>
    %cst_68 = arith.constant dense<0.000000e+00> : vector<8x128xf32>
    %153 = tpu.matmul %137, %1, %cst_68 {dimension_numbers = #tpu.dot_dimension_numbers<[1], [0], [0], [1], [0, 0, 1, 1], [], []>} : vector<8x128xf32>, vector<128x128xf32>, vector<8x128xf32> -> vector<8x128xf32>
    %154 = arith.addf %151, %153 : vector<8x128xf32>
    %cst_69 = arith.constant dense<0.000000e+00> : vector<8x128xf32>
    %155 = tpu.matmul %138, %1, %cst_69 {dimension_numbers = #tpu.dot_dimension_numbers<[1], [0], [0], [1], [0, 0, 1, 1], [], []>} : vector<8x128xf32>, vector<128x128xf32>, vector<8x128xf32> -> vector<8x128xf32>
    %156 = arith.addf %152, %155 : vector<8x128xf32>
    %157 = math.tanh %154 : vector<8x128xf32>
    %158 = math.tanh %156 : vector<8x128xf32>
    %159 = arith.index_cast %144 : i32 to index
    %c0_70 = arith.constant 0 : index
    %160 = vector.load %arg8[%159, %c0_70] : memref<128x128xf32, #tpu.memory_space<vmem>>, vector<8x128xf32>
    tpu.vector_store %arg8[%159, %c0_70], %157 {strides = array<i32>} : memref<128x128xf32, #tpu.memory_space<vmem>>, vector<8x128xf32>,
    %161 = arith.index_cast %147 : i32 to index
    %c0_71 = arith.constant 0 : index
    %162 = vector.load %arg8[%161, %c0_71] : memref<128x128xf32, #tpu.memory_space<vmem>>, vector<8x128xf32>
    tpu.vector_store %arg8[%161, %c0_71], %158 {strides = array<i32>} : memref<128x128xf32, #tpu.memory_space<vmem>>, vector<8x128xf32>,
    %c8_i32_72 = arith.constant 8 : i32
    %c1 = arith.constant 1 : index
    %c0_73 = arith.constant 0 : index
    %c0_74 = arith.constant 0 : index
    %163 = vector.load %arg4[%c1, %c0_73, %c0_74] : memref<2x128x128xf32, #tpu.memory_space<vmem>>, vector<1x128x128xf32>
    %164 = vector.shape_cast %163 : vector<1x128x128xf32> to vector<128x128xf32>
    %c0_75 = arith.constant 0 : index
    %c0_76 = arith.constant 0 : index
    %165 = vector.load %arg8[%c0_75, %c0_76] : memref<128x128xf32, #tpu.memory_space<vmem>>, vector<128x128xf32>
    %c0_77 = arith.constant 0 : index
    %c0_78 = arith.constant 0 : index
    %c0_79 = arith.constant 0 : index
    %166 = vector.load %arg2[%c0_77, %c0_78, %c0_79] : memref<1x128x128xf32, #tpu.memory_space<vmem>>, vector<1x128x128xf32>
    %167 = vector.shape_cast %166 : vector<1x128x128xf32> to vector<128x128xf32>
    %cst_80 = arith.constant dense<0.000000e+00> : vector<128x128xf32>
    %168 = tpu.matmul %165, %167, %cst_80 {dimension_numbers = #tpu.dot_dimension_numbers<[1], [0], [0], [1], [0, 0, 1, 1], [], []>} : vector<128x128xf32>, vector<128x128xf32>, vector<128x128xf32> -> vector<128x128xf32>
    %c0_81 = arith.constant 0 : index
    %c0_82 = arith.constant 0 : index
    %c0_83 = arith.constant 0 : index
    %169 = vector.load %arg3[%c0_81, %c0_82, %c0_83] : memref<1x1x128xf32, #tpu.memory_space<vmem>>, vector<1x1x128xf32>
    %170 = vector.shape_cast %169 : vector<1x1x128xf32> to vector<1x128xf32>
    %171 = vector.broadcast %170 : vector<1x128xf32> to vector<128x128xf32>
    %172 = arith.addf %168, %171 : vector<128x128xf32>
    %c0_84 = arith.constant 0 : index
    %c0_85 = arith.constant 0 : index
    %173 = vector.load %arg8[%c0_84, %c0_85] : memref<128x128xf32, #tpu.memory_space<vmem>>, vector<128x128xf32>
    tpu.vector_store %arg8[%c0_84, %c0_85], %172 {strides = array<i32>} : memref<128x128xf32, #tpu.memory_space<vmem>>, vector<128x128xf32>,
    %cst_86 = arith.constant 0.000000e+00 : f32
    %174 = vector.broadcast %cst_86 : f32 to vector<8x128xf32>
    %c0_i32_87 = arith.constant 0 : i32
    %c16_i32_88 = arith.constant 16 : i32
    %175 = arith.muli %c0_i32_87, %c16_i32_88 : i32
    %176 = tpu.assume_multiple %175, 8 : i32
    %c16_i32_89 = arith.constant 16 : i32
    %177 = arith.muli %c0_i32_87, %c16_i32_89 : i32
    %c8_i32_90 = arith.constant 8 : i32
    %178 = arith.addi %177, %c8_i32_90 : i32
    %179 = tpu.assume_multiple %178, 8 : i32
    %180 = arith.index_cast %176 : i32 to index
    %c0_91 = arith.constant 0 : index
    %181 = vector.load %arg8[%180, %c0_91] : memref<128x128xf32, #tpu.memory_space<vmem>>, vector<8x128xf32>
    %182 = arith.index_cast %179 : i32 to index
    %c0_92 = arith.constant 0 : index
    %183 = vector.load %arg8[%182, %c0_92] : memref<128x128xf32, #tpu.memory_space<vmem>>, vector<8x128xf32>
    %cst_93 = arith.constant dense<0.000000e+00> : vector<8x128xf32>
    %184 = tpu.matmul %174, %164, %cst_93 {dimension_numbers = #tpu.dot_dimension_numbers<[1], [0], [0], [1], [0, 0, 1, 1], [], []>} : vector<8x128xf32>, vector<128x128xf32>, vector<8x128xf32> -> vector<8x128xf32>
    %185 = arith.addf %181, %184 : vector<8x128xf32>
    %cst_94 = arith.constant dense<0.000000e+00> : vector<8x128xf32>
    %186 = tpu.matmul %174, %164, %cst_94 {dimension_numbers = #tpu.dot_dimension_numbers<[1], [0], [0], [1], [0, 0, 1, 1], [], []>} : vector<8x128xf32>, vector<128x128xf32>, vector<8x128xf32> -> vector<8x128xf32>
    %187 = arith.addf %183, %186 : vector<8x128xf32>
    %188 = math.tanh %185 : vector<8x128xf32>
    %189 = math.tanh %187 : vector<8x128xf32>
    %190 = arith.index_cast %176 : i32 to index
    %c0_95 = arith.constant 0 : index
    %191 = vector.load %arg8[%190, %c0_95] : memref<128x128xf32, #tpu.memory_space<vmem>>, vector<8x128xf32>
    tpu.vector_store %arg8[%190, %c0_95], %188 {strides = array<i32>} : memref<128x128xf32, #tpu.memory_space<vmem>>, vector<8x128xf32>,
    %192 = arith.index_cast %179 : i32 to index
    %c0_96 = arith.constant 0 : index
    %193 = vector.load %arg8[%192, %c0_96] : memref<128x128xf32, #tpu.memory_space<vmem>>, vector<8x128xf32>
    tpu.vector_store %arg8[%192, %c0_96], %189 {strides = array<i32>} : memref<128x128xf32, #tpu.memory_space<vmem>>, vector<8x128xf32>,
    %c1_i32_97 = arith.constant 1 : i32
    %c16_i32_98 = arith.constant 16 : i32
    %194 = arith.muli %c1_i32_97, %c16_i32_98 : i32
    %195 = tpu.assume_multiple %194, 8 : i32
    %c16_i32_99 = arith.constant 16 : i32
    %196 = arith.muli %c1_i32_97, %c16_i32_99 : i32
    %c8_i32_100 = arith.constant 8 : i32
    %197 = arith.addi %196, %c8_i32_100 : i32
    %198 = tpu.assume_multiple %197, 8 : i32
    %199 = arith.index_cast %195 : i32 to index
    %c0_101 = arith.constant 0 : index
    %200 = vector.load %arg8[%199, %c0_101] : memref<128x128xf32, #tpu.memory_space<vmem>>, vector<8x128xf32>
    %201 = arith.index_cast %198 : i32 to index
    %c0_102 = arith.constant 0 : index
    %202 = vector.load %arg8[%201, %c0_102] : memref<128x128xf32, #tpu.memory_space<vmem>>, vector<8x128xf32>
    %cst_103 = arith.constant dense<0.000000e+00> : vector<8x128xf32>
    %203 = tpu.matmul %188, %164, %cst_103 {dimension_numbers = #tpu.dot_dimension_numbers<[1], [0], [0], [1], [0, 0, 1, 1], [], []>} : vector<8x128xf32>, vector<128x128xf32>, vector<8x128xf32> -> vector<8x128xf32>
    %204 = arith.addf %200, %203 : vector<8x128xf32>
    %cst_104 = arith.constant dense<0.000000e+00> : vector<8x128xf32>
    %205 = tpu.matmul %189, %164, %cst_104 {dimension_numbers = #tpu.dot_dimension_numbers<[1], [0], [0], [1], [0, 0, 1, 1], [], []>} : vector<8x128xf32>, vector<128x128xf32>, vector<8x128xf32> -> vector<8x128xf32>
    %206 = arith.addf %202, %205 : vector<8x128xf32>
    %207 = math.tanh %204 : vector<8x128xf32>
    %208 = math.tanh %206 : vector<8x128xf32>
    %209 = arith.index_cast %195 : i32 to index
    %c0_105 = arith.constant 0 : index
    %210 = vector.load %arg8[%209, %c0_105] : memref<128x128xf32, #tpu.memory_space<vmem>>, vector<8x128xf32>
    tpu.vector_store %arg8[%209, %c0_105], %207 {strides = array<i32>} : memref<128x128xf32, #tpu.memory_space<vmem>>, vector<8x128xf32>,
    %211 = arith.index_cast %198 : i32 to index
    %c0_106 = arith.constant 0 : index
    %212 = vector.load %arg8[%211, %c0_106] : memref<128x128xf32, #tpu.memory_space<vmem>>, vector<8x128xf32>
    tpu.vector_store %arg8[%211, %c0_106], %208 {strides = array<i32>} : memref<128x128xf32, #tpu.memory_space<vmem>>, vector<8x128xf32>,
    %c2_i32_107 = arith.constant 2 : i32
    %c16_i32_108 = arith.constant 16 : i32
    %213 = arith.muli %c2_i32_107, %c16_i32_108 : i32
    %214 = tpu.assume_multiple %213, 8 : i32
    %c16_i32_109 = arith.constant 16 : i32
    %215 = arith.muli %c2_i32_107, %c16_i32_109 : i32
    %c8_i32_110 = arith.constant 8 : i32
    %216 = arith.addi %215, %c8_i32_110 : i32
    %217 = tpu.assume_multiple %216, 8 : i32
    %218 = arith.index_cast %214 : i32 to index
    %c0_111 = arith.constant 0 : index
    %219 = vector.load %arg8[%218, %c0_111] : memref<128x128xf32, #tpu.memory_space<vmem>>, vector<8x128xf32>
    %220 = arith.index_cast %217 : i32 to index
    %c0_112 = arith.constant 0 : index
    %221 = vector.load %arg8[%220, %c0_112] : memref<128x128xf32, #tpu.memory_space<vmem>>, vector<8x128xf32>
    %cst_113 = arith.constant dense<0.000000e+00> : vector<8x128xf32>
    %222 = tpu.matmul %207, %164, %cst_113 {dimension_numbers = #tpu.dot_dimension_numbers<[1], [0], [0], [1], [0, 0, 1, 1], [], []>} : vector<8x128xf32>, vector<128x128xf32>, vector<8x128xf32> -> vector<8x128xf32>
    %223 = arith.addf %219, %222 : vector<8x128xf32>
    %cst_114 = arith.constant dense<0.000000e+00> : vector<8x128xf32>
    %224 = tpu.matmul %208, %164, %cst_114 {dimension_numbers = #tpu.dot_dimension_numbers<[1], [0], [0], [1], [0, 0, 1, 1], [], []>} : vector<8x128xf32>, vector<128x128xf32>, vector<8x128xf32> -> vector<8x128xf32>
    %225 = arith.addf %221, %224 : vector<8x128xf32>
    %226 = math.tanh %223 : vector<8x128xf32>
    %227 = math.tanh %225 : vector<8x128xf32>
    %228 = arith.index_cast %214 : i32 to index
    %c0_115 = arith.constant 0 : index
    %229 = vector.load %arg8[%228, %c0_115] : memref<128x128xf32, #tpu.memory_space<vmem>>, vector<8x128xf32>
    tpu.vector_store %arg8[%228, %c0_115], %226 {strides = array<i32>} : memref<128x128xf32, #tpu.memory_space<vmem>>, vector<8x128xf32>,
    %230 = arith.index_cast %217 : i32 to index
    %c0_116 = arith.constant 0 : index
    %231 = vector.load %arg8[%230, %c0_116] : memref<128x128xf32, #tpu.memory_space<vmem>>, vector<8x128xf32>
    tpu.vector_store %arg8[%230, %c0_116], %227 {strides = array<i32>} : memref<128x128xf32, #tpu.memory_space<vmem>>, vector<8x128xf32>,
    %c3_i32_117 = arith.constant 3 : i32
    %c16_i32_118 = arith.constant 16 : i32
    %232 = arith.muli %c3_i32_117, %c16_i32_118 : i32
    %233 = tpu.assume_multiple %232, 8 : i32
    %c16_i32_119 = arith.constant 16 : i32
    %234 = arith.muli %c3_i32_117, %c16_i32_119 : i32
    %c8_i32_120 = arith.constant 8 : i32
    %235 = arith.addi %234, %c8_i32_120 : i32
    %236 = tpu.assume_multiple %235, 8 : i32
    %237 = arith.index_cast %233 : i32 to index
    %c0_121 = arith.constant 0 : index
    %238 = vector.load %arg8[%237, %c0_121] : memref<128x128xf32, #tpu.memory_space<vmem>>, vector<8x128xf32>
    %239 = arith.index_cast %236 : i32 to index
    %c0_122 = arith.constant 0 : index
    %240 = vector.load %arg8[%239, %c0_122] : memref<128x128xf32, #tpu.memory_space<vmem>>, vector<8x128xf32>
    %cst_123 = arith.constant dense<0.000000e+00> : vector<8x128xf32>
    %241 = tpu.matmul %226, %164, %cst_123 {dimension_numbers = #tpu.dot_dimension_numbers<[1], [0], [0], [1], [0, 0, 1, 1], [], []>} : vector<8x128xf32>, vector<128x128xf32>, vector<8x128xf32> -> vector<8x128xf32>
    %242 = arith.addf %238, %241 : vector<8x128xf32>
    %cst_124 = arith.constant dense<0.000000e+00> : vector<8x128xf32>
    %243 = tpu.matmul %227, %164, %cst_124 {dimension_numbers = #tpu.dot_dimension_numbers<[1], [0], [0], [1], [0, 0, 1, 1], [], []>} : vector<8x128xf32>, vector<128x128xf32>, vector<8x128xf32> -> vector<8x128xf32>
    %244 = arith.addf %240, %243 : vector<8x128xf32>
    %245 = math.tanh %242 : vector<8x128xf32>
    %246 = math.tanh %244 : vector<8x128xf32>
    %247 = arith.index_cast %233 : i32 to index
    %c0_125 = arith.constant 0 : index
    %248 = vector.load %arg8[%247, %c0_125] : memref<128x128xf32, #tpu.memory_space<vmem>>, vector<8x128xf32>
    tpu.vector_store %arg8[%247, %c0_125], %245 {strides = array<i32>} : memref<128x128xf32, #tpu.memory_space<vmem>>, vector<8x128xf32>,
    %249 = arith.index_cast %236 : i32 to index
    %c0_126 = arith.constant 0 : index
    %250 = vector.load %arg8[%249, %c0_126] : memref<128x128xf32, #tpu.memory_space<vmem>>, vector<8x128xf32>
    tpu.vector_store %arg8[%249, %c0_126], %246 {strides = array<i32>} : memref<128x128xf32, #tpu.memory_space<vmem>>, vector<8x128xf32>,
    %c4_i32_127 = arith.constant 4 : i32
    %c16_i32_128 = arith.constant 16 : i32
    %251 = arith.muli %c4_i32_127, %c16_i32_128 : i32
    %252 = tpu.assume_multiple %251, 8 : i32
    %c16_i32_129 = arith.constant 16 : i32
    %253 = arith.muli %c4_i32_127, %c16_i32_129 : i32
    %c8_i32_130 = arith.constant 8 : i32
    %254 = arith.addi %253, %c8_i32_130 : i32
    %255 = tpu.assume_multiple %254, 8 : i32
    %256 = arith.index_cast %252 : i32 to index
    %c0_131 = arith.constant 0 : index
    %257 = vector.load %arg8[%256, %c0_131] : memref<128x128xf32, #tpu.memory_space<vmem>>, vector<8x128xf32>
    %258 = arith.index_cast %255 : i32 to index
    %c0_132 = arith.constant 0 : index
    %259 = vector.load %arg8[%258, %c0_132] : memref<128x128xf32, #tpu.memory_space<vmem>>, vector<8x128xf32>
    %cst_133 = arith.constant dense<0.000000e+00> : vector<8x128xf32>
    %260 = tpu.matmul %245, %164, %cst_133 {dimension_numbers = #tpu.dot_dimension_numbers<[1], [0], [0], [1], [0, 0, 1, 1], [], []>} : vector<8x128xf32>, vector<128x128xf32>, vector<8x128xf32> -> vector<8x128xf32>
    %261 = arith.addf %257, %260 : vector<8x128xf32>
    %cst_134 = arith.constant dense<0.000000e+00> : vector<8x128xf32>
    %262 = tpu.matmul %246, %164, %cst_134 {dimension_numbers = #tpu.dot_dimension_numbers<[1], [0], [0], [1], [0, 0, 1, 1], [], []>} : vector<8x128xf32>, vector<128x128xf32>, vector<8x128xf32> -> vector<8x128xf32>
    %263 = arith.addf %259, %262 : vector<8x128xf32>
    %264 = math.tanh %261 : vector<8x128xf32>
    %265 = math.tanh %263 : vector<8x128xf32>
    %266 = arith.index_cast %252 : i32 to index
    %c0_135 = arith.constant 0 : index
    %267 = vector.load %arg8[%266, %c0_135] : memref<128x128xf32, #tpu.memory_space<vmem>>, vector<8x128xf32>
    tpu.vector_store %arg8[%266, %c0_135], %264 {strides = array<i32>} : memref<128x128xf32, #tpu.memory_space<vmem>>, vector<8x128xf32>,
    %268 = arith.index_cast %255 : i32 to index
    %c0_136 = arith.constant 0 : index
    %269 = vector.load %arg8[%268, %c0_136] : memref<128x128xf32, #tpu.memory_space<vmem>>, vector<8x128xf32>
    tpu.vector_store %arg8[%268, %c0_136], %265 {strides = array<i32>} : memref<128x128xf32, #tpu.memory_space<vmem>>, vector<8x128xf32>,
    %c5_i32_137 = arith.constant 5 : i32
    %c16_i32_138 = arith.constant 16 : i32
    %270 = arith.muli %c5_i32_137, %c16_i32_138 : i32
    %271 = tpu.assume_multiple %270, 8 : i32
    %c16_i32_139 = arith.constant 16 : i32
    %272 = arith.muli %c5_i32_137, %c16_i32_139 : i32
    %c8_i32_140 = arith.constant 8 : i32
    %273 = arith.addi %272, %c8_i32_140 : i32
    %274 = tpu.assume_multiple %273, 8 : i32
    %275 = arith.index_cast %271 : i32 to index
    %c0_141 = arith.constant 0 : index
    %276 = vector.load %arg8[%275, %c0_141] : memref<128x128xf32, #tpu.memory_space<vmem>>, vector<8x128xf32>
    %277 = arith.index_cast %274 : i32 to index
    %c0_142 = arith.constant 0 : index
    %278 = vector.load %arg8[%277, %c0_142] : memref<128x128xf32, #tpu.memory_space<vmem>>, vector<8x128xf32>
    %cst_143 = arith.constant dense<0.000000e+00> : vector<8x128xf32>
    %279 = tpu.matmul %264, %164, %cst_143 {dimension_numbers = #tpu.dot_dimension_numbers<[1], [0], [0], [1], [0, 0, 1, 1], [], []>} : vector<8x128xf32>, vector<128x128xf32>, vector<8x128xf32> -> vector<8x128xf32>
    %280 = arith.addf %276, %279 : vector<8x128xf32>
    %cst_144 = arith.constant dense<0.000000e+00> : vector<8x128xf32>
    %281 = tpu.matmul %265, %164, %cst_144 {dimension_numbers = #tpu.dot_dimension_numbers<[1], [0], [0], [1], [0, 0, 1, 1], [], []>} : vector<8x128xf32>, vector<128x128xf32>, vector<8x128xf32> -> vector<8x128xf32>
    %282 = arith.addf %278, %281 : vector<8x128xf32>
    %283 = math.tanh %280 : vector<8x128xf32>
    %284 = math.tanh %282 : vector<8x128xf32>
    %285 = arith.index_cast %271 : i32 to index
    %c0_145 = arith.constant 0 : index
    %286 = vector.load %arg8[%285, %c0_145] : memref<128x128xf32, #tpu.memory_space<vmem>>, vector<8x128xf32>
    tpu.vector_store %arg8[%285, %c0_145], %283 {strides = array<i32>} : memref<128x128xf32, #tpu.memory_space<vmem>>, vector<8x128xf32>,
    %287 = arith.index_cast %274 : i32 to index
    %c0_146 = arith.constant 0 : index
    %288 = vector.load %arg8[%287, %c0_146] : memref<128x128xf32, #tpu.memory_space<vmem>>, vector<8x128xf32>
    tpu.vector_store %arg8[%287, %c0_146], %284 {strides = array<i32>} : memref<128x128xf32, #tpu.memory_space<vmem>>, vector<8x128xf32>,
    %c6_i32_147 = arith.constant 6 : i32
    %c16_i32_148 = arith.constant 16 : i32
    %289 = arith.muli %c6_i32_147, %c16_i32_148 : i32
    %290 = tpu.assume_multiple %289, 8 : i32
    %c16_i32_149 = arith.constant 16 : i32
    %291 = arith.muli %c6_i32_147, %c16_i32_149 : i32
    %c8_i32_150 = arith.constant 8 : i32
    %292 = arith.addi %291, %c8_i32_150 : i32
    %293 = tpu.assume_multiple %292, 8 : i32
    %294 = arith.index_cast %290 : i32 to index
    %c0_151 = arith.constant 0 : index
    %295 = vector.load %arg8[%294, %c0_151] : memref<128x128xf32, #tpu.memory_space<vmem>>, vector<8x128xf32>
    %296 = arith.index_cast %293 : i32 to index
    %c0_152 = arith.constant 0 : index
    %297 = vector.load %arg8[%296, %c0_152] : memref<128x128xf32, #tpu.memory_space<vmem>>, vector<8x128xf32>
    %cst_153 = arith.constant dense<0.000000e+00> : vector<8x128xf32>
    %298 = tpu.matmul %283, %164, %cst_153 {dimension_numbers = #tpu.dot_dimension_numbers<[1], [0], [0], [1], [0, 0, 1, 1], [], []>} : vector<8x128xf32>, vector<128x128xf32>, vector<8x128xf32> -> vector<8x128xf32>
    %299 = arith.addf %295, %298 : vector<8x128xf32>
    %cst_154 = arith.constant dense<0.000000e+00> : vector<8x128xf32>
    %300 = tpu.matmul %284, %164, %cst_154 {dimension_numbers = #tpu.dot_dimension_numbers<[1], [0], [0], [1], [0, 0, 1, 1], [], []>} : vector<8x128xf32>, vector<128x128xf32>, vector<8x128xf32> -> vector<8x128xf32>
    %301 = arith.addf %297, %300 : vector<8x128xf32>
    %302 = math.tanh %299 : vector<8x128xf32>
    %303 = math.tanh %301 : vector<8x128xf32>
    %304 = arith.index_cast %290 : i32 to index
    %c0_155 = arith.constant 0 : index
    %305 = vector.load %arg8[%304, %c0_155] : memref<128x128xf32, #tpu.memory_space<vmem>>, vector<8x128xf32>
    tpu.vector_store %arg8[%304, %c0_155], %302 {strides = array<i32>} : memref<128x128xf32, #tpu.memory_space<vmem>>, vector<8x128xf32>,
    %306 = arith.index_cast %293 : i32 to index
    %c0_156 = arith.constant 0 : index
    %307 = vector.load %arg8[%306, %c0_156] : memref<128x128xf32, #tpu.memory_space<vmem>>, vector<8x128xf32>
    tpu.vector_store %arg8[%306, %c0_156], %303 {strides = array<i32>} : memref<128x128xf32, #tpu.memory_space<vmem>>, vector<8x128xf32>,
    %c7_i32_157 = arith.constant 7 : i32
    %c16_i32_158 = arith.constant 16 : i32
    %308 = arith.muli %c7_i32_157, %c16_i32_158 : i32
    %309 = tpu.assume_multiple %308, 8 : i32
    %c16_i32_159 = arith.constant 16 : i32
    %310 = arith.muli %c7_i32_157, %c16_i32_159 : i32
    %c8_i32_160 = arith.constant 8 : i32
    %311 = arith.addi %310, %c8_i32_160 : i32
    %312 = tpu.assume_multiple %311, 8 : i32
    %313 = arith.index_cast %309 : i32 to index
    %c0_161 = arith.constant 0 : index
    %314 = vector.load %arg8[%313, %c0_161] : memref<128x128xf32, #tpu.memory_space<vmem>>, vector<8x128xf32>
    %315 = arith.index_cast %312 : i32 to index
    %c0_162 = arith.constant 0 : index
    %316 = vector.load %arg8[%315, %c0_162] : memref<128x128xf32, #tpu.memory_space<vmem>>, vector<8x128xf32>
    %cst_163 = arith.constant dense<0.000000e+00> : vector<8x128xf32>
    %317 = tpu.matmul %302, %164, %cst_163 {dimension_numbers = #tpu.dot_dimension_numbers<[1], [0], [0], [1], [0, 0, 1, 1], [], []>} : vector<8x128xf32>, vector<128x128xf32>, vector<8x128xf32> -> vector<8x128xf32>
    %318 = arith.addf %314, %317 : vector<8x128xf32>
    %cst_164 = arith.constant dense<0.000000e+00> : vector<8x128xf32>
    %319 = tpu.matmul %303, %164, %cst_164 {dimension_numbers = #tpu.dot_dimension_numbers<[1], [0], [0], [1], [0, 0, 1, 1], [], []>} : vector<8x128xf32>, vector<128x128xf32>, vector<8x128xf32> -> vector<8x128xf32>
    %320 = arith.addf %316, %319 : vector<8x128xf32>
    %321 = math.tanh %318 : vector<8x128xf32>
    %322 = math.tanh %320 : vector<8x128xf32>
    %323 = arith.index_cast %309 : i32 to index
    %c0_165 = arith.constant 0 : index
    %324 = vector.load %arg8[%323, %c0_165] : memref<128x128xf32, #tpu.memory_space<vmem>>, vector<8x128xf32>
    tpu.vector_store %arg8[%323, %c0_165], %321 {strides = array<i32>} : memref<128x128xf32, #tpu.memory_space<vmem>>, vector<8x128xf32>,
    %325 = arith.index_cast %312 : i32 to index
    %c0_166 = arith.constant 0 : index
    %326 = vector.load %arg8[%325, %c0_166] : memref<128x128xf32, #tpu.memory_space<vmem>>, vector<8x128xf32>
    tpu.vector_store %arg8[%325, %c0_166], %322 {strides = array<i32>} : memref<128x128xf32, #tpu.memory_space<vmem>>, vector<8x128xf32>,
    %c8_i32_167 = arith.constant 8 : i32
    %c0_168 = arith.constant 0 : index
    %c0_169 = arith.constant 0 : index
    %327 = vector.load %arg8[%c0_168, %c0_169] : memref<128x128xf32, #tpu.memory_space<vmem>>, vector<128x128xf32>
    %c0_170 = arith.constant 0 : index
    %c0_171 = arith.constant 0 : index
    %328 = vector.load %arg5[%c0_170, %c0_171] : memref<128x128xf32, #tpu.memory_space<vmem>>, vector<128x128xf32>
    %cst_172 = arith.constant dense<0.000000e+00> : vector<128x128xf32>
    %329 = tpu.matmul %327, %328, %cst_172 {dimension_numbers = #tpu.dot_dimension_numbers<[1], [0], [0], [1], [0, 0, 1, 1], [], []>} : vector<128x128xf32>, vector<128x128xf32>, vector<128x128xf32> -> vector<128x128xf32>
    %c0_173 = arith.constant 0 : index
    %c0_174 = arith.constant 0 : index
    %330 = vector.load %arg6[%c0_173, %c0_174] : memref<1x128xf32, #tpu.memory_space<vmem>>, vector<1x128xf32>
    %331 = vector.broadcast %330 : vector<1x128xf32> to vector<128x128xf32>
    %332 = arith.addf %329, %331 : vector<128x128xf32>
    %333 = vector.shape_cast %332 : vector<128x128xf32> to vector<8x16x128xf32>
    %c0_175 = arith.constant 0 : index
    %c0_176 = arith.constant 0 : index
    %c0_177 = arith.constant 0 : index
    %334 = vector.load %arg7[%c0_175, %c0_176, %c0_177] : memref<8x16x128xf32, #tpu.memory_space<vmem>>, vector<8x16x128xf32>
    tpu.vector_store %arg7[%c0_175, %c0_176, %c0_177], %333 {strides = array<i32>} : memref<8x16x128xf32, #tpu.memory_space<vmem>>, vector<8x16x128xf32>,
    return
  }
  func.func @transform_0(%arg0: i32) -> (i32, i32, i32) {
    %c0_i32 = arith.constant 0 : i32
    %c0_i32_0 = arith.constant 0 : i32
    %c0_i32_1 = arith.constant 0 : i32
    return %c0_i32, %arg0, %c0_i32_0 : i32, i32, i32
  }
  func.func @transform_1(%arg0: i32) -> (i32, i32, i32) {
    %c0_i32 = arith.constant 0 : i32
    %c0_i32_0 = arith.constant 0 : i32
    %c0_i32_1 = arith.constant 0 : i32
    %c0_i32_2 = arith.constant 0 : i32
    return %c0_i32, %c0_i32_0, %c0_i32_1 : i32, i32, i32
  }
  func.func @transform_2(%arg0: i32) -> (i32, i32, i32) {
    %c0_i32 = arith.constant 0 : i32
    %c0_i32_0 = arith.constant 0 : i32
    %c0_i32_1 = arith.constant 0 : i32
    %c0_i32_2 = arith.constant 0 : i32
    return %c0_i32, %c0_i32_0, %c0_i32_1 : i32, i32, i32
  }
  func.func @transform_3(%arg0: i32) -> (i32, i32, i32) {
    %c0_i32 = arith.constant 0 : i32
    %c0_i32_0 = arith.constant 0 : i32
    %c0_i32_1 = arith.constant 0 : i32
    %c0_i32_2 = arith.constant 0 : i32
    return %c0_i32, %c0_i32_0, %c0_i32_1 : i32, i32, i32
  }
  func.func @transform_4(%arg0: i32) -> (i32, i32) {
    %c0_i32 = arith.constant 0 : i32
    %c0_i32_0 = arith.constant 0 : i32
    %c0_i32_1 = arith.constant 0 : i32
    return %c0_i32, %c0_i32_0 : i32, i32
  }
  func.func @transform_5(%arg0: i32) -> (i32, i32) {
    %c0_i32 = arith.constant 0 : i32
    %c0_i32_0 = arith.constant 0 : i32
    %c0_i32_1 = arith.constant 0 : i32
    return %c0_i32, %c0_i32_0 : i32, i32
  }
  func.func @transform_6(%arg0: i32) -> (i32, i32, i32) {
    %c0_i32 = arith.constant 0 : i32
    %c0_i32_0 = arith.constant 0 : i32
    %c0_i32_1 = arith.constant 0 : i32
    return %c0_i32, %arg0, %c0_i32_0 : i32, i32, i32
  }
}

</mosaic_0001>

<llo_original>
// kernel: tpu_custom_call.1
$region0: #{tpu_custom_call.1}
  #allocation0 [shape = 'u32[]', space=smem, size = 0x4, offset = 0x4, fixed_abs, tag = 'smem constant byte address 0x4 - core index']
  #allocation1 [shape = 'u32[144,128]{1,0:T(1,128)}', space=vmem, size = 0x12000, scoped, tag = 'internal scratch']
  #allocation2 [shape = 'f32[128,128]{1,0:T(8,128)}', space=vmem, size = 0x10000, scoped, tag = 'scratch operand']
  %s0 = inlined_call_operand.hbm [shape: f32[8,16,128], index: 0, kind: input, shape index: {}]
  %s1 = inlined_call_operand.hbm [shape: f32[1,128,128], index: 1, kind: input, shape index: {}]
  %s2 = inlined_call_operand.vmem [shape: f32[1,1,128], index: 2, kind: input, shape index: {}]
  %s3 = inlined_call_operand.hbm [shape: f32[2,128,128], index: 3, kind: input, shape index: {}]
  %s4 = inlined_call_operand.hbm [shape: f32[128,128], index: 4, kind: input, shape index: {}]
  %s5 = inlined_call_operand.vmem [shape: f32[1,128], index: 5, kind: input, shape index: {}]
  %s6 = inlined_call_operand.hbm [shape: f32[8,16,128], index: 6, kind: output, shape index: {}]
  %s7 = sld [smem:[#allocation0]]
  $region50: #{tpu_custom_call.1} parent=0
    _
  %s9 = ssub.s32 1, %s7
  %s10 = scalar_select 0, %s9, %s7
  $region1: #{tpu_custom_call.1} parent=0
    #allocation3 [shape = 'u8[65536]{0}', space=vmem, size = 0x10000, scoped, tag = 'input window, operand 0, single buffered']
    #allocation4 [shape = 's32[1]{0}', space=sflag, size = 0x4, scoped, tag = 'scoped memory for tpu_custom_call.1']
    #allocation5 [shape = 's32[1]{0}', space=sflag, size = 0x4, scoped, tag = 'scoped memory for tpu_custom_call.1']
    #allocation6 [shape = 'u8[65536]{0}', space=vmem, size = 0x10000, scoped, tag = 'input window, operand 1, single buffered']
    #allocation7 [shape = 's32[1]{0}', space=sflag, size = 0x4, scoped, tag = 'scoped memory for tpu_custom_call.1']
    #allocation8 [shape = 'u8[131072]{0}', space=vmem, size = 0x20000, scoped, tag = 'input window, operand 3, single buffered']
    #allocation9 [shape = 'u8[65536]{0}', space=vmem, size = 0x10000, scoped, tag = 'input window, operand 4, single buffered']
    #allocation10 [shape = 's32[1]{0}', space=sflag, size = 0x4, scoped, tag = 'scoped memory for tpu_custom_call.1']
    #allocation11 [shape = 'u8[65536]{0}', space=vmem, size = 0x10000, scoped, tag = 'output window, operand 0, single buffered']
    %11 = vsyncpa [#allocation4], 0
    %12 = vsyncpa [#allocation7], 0
    %13 = vsyncpa [#allocation10], 0
    %14 = vsyncpa [#allocation5], 0
    // Predicated region
    $region2: #{tpu_custom_call.1} parent=1 // pred_check
      _
    $region3: #{tpu_custom_call.1} parent=1 // pred_check_branch
      %16 = sbr.rel (0) target = $region5
    $region4: #{tpu_custom_call.1} parent=1 // pred_region
      %s18 = ssub.s32 2048, 2048
      %19 = vsyncadd [#allocation4], %s18
      %s20 = sshll.u32 [#allocation3], 4
      %s21 = int_to_ptr.vmem [resolvable:$true] %s20
      %26 = dma.hbm_to_vmem [thread:$0]  %s0, 2048, %s21, [#allocation4], 128, 128, 8
    $region5: #{tpu_custom_call.1} parent=1 // pred_fallthru
      _
    // Predicated region
    $region6: #{tpu_custom_call.1} parent=1 // pred_check
      _
    $region7: #{tpu_custom_call.1} parent=1 // pred_check_branch
      %28 = sbr.rel (0) target = $region9
    $region8: #{tpu_custom_call.1} parent=1 // pred_region
      %s30 = ssub.s32 2048, 2048
      %31 = vsyncadd [#allocation7], %s30
      %s32 = sshll.u32 [#allocation6], 4
      %s33 = int_to_ptr.vmem [resolvable:$true] %s32
      %38 = dma.hbm_to_vmem [thread:$0]  %s1, 2048, %s33, [#allocation7], 128, 128, 8
    $region9: #{tpu_custom_call.1} parent=1 // pred_fallthru
      _
    // Predicated region
    $region10: #{tpu_custom_call.1} parent=1 // pred_check
      _
    $region11: #{tpu_custom_call.1} parent=1 // pred_check_branch
      %40 = sbr.rel (0) target = $region13
    $region12: #{tpu_custom_call.1} parent=1 // pred_region
      _
    $region13: #{tpu_custom_call.1} parent=1 // pred_fallthru
      _
    // Predicated region
    $region14: #{tpu_custom_call.1} parent=1 // pred_check
      _
    $region15: #{tpu_custom_call.1} parent=1 // pred_check_branch
      %42 = sbr.rel (0) target = $region17
    $region16: #{tpu_custom_call.1} parent=1 // pred_region
      %s44 = ssub.s32 4096, 4096
      %45 = vsyncadd [#allocation7], %s44
      %s46 = sshll.u32 [#allocation8], 4
      %s47 = int_to_ptr.vmem [resolvable:$true] %s46
      %52 = dma.hbm_to_vmem [thread:$0]  %s3, 4096, %s47, [#allocation7], 128, 128, 8
    $region17: #{tpu_custom_call.1} parent=1 // pred_fallthru
      _
    // Predicated region
    $region18: #{tpu_custom_call.1} parent=1 // pred_check
      _
    $region19: #{tpu_custom_call.1} parent=1 // pred_check_branch
      %54 = sbr.rel (0) target = $region21
    $region20: #{tpu_custom_call.1} parent=1 // pred_region
      %s56 = ssub.s32 2048, 2048
      %57 = vsyncadd [#allocation10], %s56
      %s58 = sshll.u32 [#allocation9], 4
      %s59 = int_to_ptr.vmem [resolvable:$true] %s58
      %64 = dma.hbm_to_vmem [thread:$0]  %s4, 2048, %s59, [#allocation10], 128, 128, 8
    $region21: #{tpu_custom_call.1} parent=1 // pred_fallthru
      _
    // Predicated region
    $region22: #{tpu_custom_call.1} parent=1 // pred_check
      _
    $region23: #{tpu_custom_call.1} parent=1 // pred_check_branch
      %66 = sbr.rel (0) target = $region25
    $region24: #{tpu_custom_call.1} parent=1 // pred_region
      _
    $region25: #{tpu_custom_call.1} parent=1 // pred_fallthru
      _
    // Predicated region
    $region26: #{tpu_custom_call.1} parent=1 // pred_check
      _
    $region27: #{tpu_custom_call.1} parent=1 // pred_check_branch
      %68 = sbr.rel (0) target = $region29
    $region28: #{tpu_custom_call.1} parent=1 // pred_region
      %69 = dma.done [#allocation4], 2048
    $region29: #{tpu_custom_call.1} parent=1 // pred_fallthru
      _
    // Predicated region
    $region30: #{tpu_custom_call.1} parent=1 // pred_check
      _
    $region31: #{tpu_custom_call.1} parent=1 // pred_check_branch
      %71 = sbr.rel (0) target = $region33
    $region32: #{tpu_custom_call.1} parent=1 // pred_region
      %72 = dma.done [#allocation7], 2048
    $region33: #{tpu_custom_call.1} parent=1 // pred_fallthru
      _
    // Predicated region
    $region34: #{tpu_custom_call.1} parent=1 // pred_check
      _
    $region35: #{tpu_custom_call.1} parent=1 // pred_check_branch
      %74 = sbr.rel (0) target = $region37
    $region36: #{tpu_custom_call.1} parent=1 // pred_region
      %75 = dma.done [#allocation7], 4096
    $region37: #{tpu_custom_call.1} parent=1 // pred_fallthru
      _
    // Predicated region
    $region38: #{tpu_custom_call.1} parent=1 // pred_check
      _
    $region39: #{tpu_custom_call.1} parent=1 // pred_check_branch
      %77 = sbr.rel (0) target = $region41
    $region40: #{tpu_custom_call.1} parent=1 // pred_region
      %78 = dma.done [#allocation10], 2048
    $region41: #{tpu_custom_call.1} parent=1 // pred_fallthru
      _
    %v79 = vld [vmem:[#allocation8] sm:$0xff]
    %v80 = vld [vmem:[#allocation8 + $0x8] sm:$0xff]
    %v81 = vld [vmem:[#allocation8 + $0x10] sm:$0xff]
    %v82 = vld [vmem:[#allocation8 + $0x18] sm:$0xff]
    %v83 = vld [vmem:[#allocation8 + $0x20] sm:$0xff]
    %v84 = vld [vmem:[#allocation8 + $0x28] sm:$0xff]
    %v85 = vld [vmem:[#allocation8 + $0x30] sm:$0xff]
    %v86 = vld [vmem:[#allocation8 + $0x38] sm:$0xff]
    %v87 = vld [vmem:[#allocation8 + $0x40] sm:$0xff]
    %v88 = vld [vmem:[#allocation8 + $0x48] sm:$0xff]
    %v89 = vld [vmem:[#allocation8 + $0x50] sm:$0xff]
    %v90 = vld [vmem:[#allocation8 + $0x58] sm:$0xff]
    %v91 = vld [vmem:[#allocation8 + $0x60] sm:$0xff]
    %v92 = vld [vmem:[#allocation8 + $0x68] sm:$0xff]
    %v93 = vld [vmem:[#allocation8 + $0x70] sm:$0xff]
    %v94 = vld [vmem:[#allocation8 + $0x78] sm:$0xff]
    %v95 = vld [vmem:[#allocation3] sm:$0xff]
    %v96 = vld [vmem:[#allocation3 + $0x8] sm:$0xff]
    %97 = vmatprep.subr.mxu0 0.0
    %98 = vmatpush1.msra.mxu0 %v79
    %99 = vmatprep.subr.mxu0 0.0
    %100 = vmatpush1.msra.mxu0 %v80
    %101 = vmatprep.subr.mxu0 0.0
    %102 = vmatpush1.msra.mxu0 %v81
    %103 = vmatprep.subr.mxu0 0.0
    %104 = vmatpush1.msra.mxu0 %v82
    %105 = vmatprep.subr.mxu0 0.0
    %106 = vmatpush1.msra.mxu0 %v83
    %107 = vmatprep.subr.mxu0 0.0
    %108 = vmatpush1.msra.mxu0 %v84
    %109 = vmatprep.subr.mxu0 0.0
    %110 = vmatpush1.msra.mxu0 %v85
    %111 = vmatprep.subr.mxu0 0.0
    %112 = vmatpush1.msra.mxu0 %v86
    %113 = vmatprep.subr.mxu0 0.0
    %114 = vmatpush1.msra.mxu0 %v87
    %115 = vmatprep.subr.mxu0 0.0
    %116 = vmatpush1.msra.mxu0 %v88
    %117 = vmatprep.subr.mxu0 0.0
    %118 = vmatpush1.msra.mxu0 %v89
    %119 = vmatprep.subr.mxu0 0.0
    %120 = vmatpush1.msra.mxu0 %v90
    %121 = vmatprep.subr.mxu0 0.0
    %122 = vmatpush1.msra.mxu0 %v91
    %123 = vmatprep.subr.mxu0 0.0
    %124 = vmatpush1.msra.mxu0 %v92
    %125 = vmatprep.subr.mxu0 0.0
    %126 = vmatpush1.msra.mxu0 %v93
    %127 = vmatprep.subr.mxu0 0.0
    %128 = vmatpush1.msra.mxu0 %v94
    %129 = vmatprep.subr.mxu0 0.0
    %130 = vmatpush1.msra.mxu0 0.0
    %131 = vmatprep.subr.mxu0 0.0
    %132 = vmatpush1.msra.mxu0 0.0
    %133 = vmatprep.subr.mxu0 0.0
    %134 = vmatpush1.msra.mxu0 0.0
    %135 = vmatprep.subr.mxu0 0.0
    %136 = vmatpush1.msra.mxu0 0.0
    %137 = vmatprep.subr.mxu0 0.0
    %138 = vmatpush1.msra.mxu0 0.0
    %139 = vmatprep.subr.mxu0 0.0
    %140 = vmatpush1.msra.mxu0 0.0
    %141 = vmatprep.subr.mxu0 0.0
    %142 = vmatpush1.msra.mxu0 0.0
    %143 = vmatprep.subr.mxu0 0.0
    %144 = vmatpush1.msra.mxu0 0.0
    %145 = vmatprep.subr.mxu0 0.0
    %146 = vmatpush1.msra.mxu0 0.0
    %147 = vmatprep.subr.mxu0 0.0
    %148 = vmatpush1.msra.mxu0 0.0
    %149 = vmatprep.subr.mxu0 0.0
    %150 = vmatpush1.msra.mxu0 0.0
    %151 = vmatprep.subr.mxu0 0.0
    %152 = vmatpush1.msra.mxu0 0.0
    %153 = vmatprep.subr.mxu0 0.0
    %154 = vmatpush1.msra.mxu0 0.0
    %155 = vmatprep.subr.mxu0 0.0
    %156 = vmatpush1.msra.mxu0 0.0
    %157 = vmatprep.subr.mxu0 0.0
    %158 = vmatpush1.msra.mxu0 0.0
    %159 = vmatprep.subr.mxu0 0.0
    %160 = vmatpush1.msra.mxu0 0.0
    %161 = vmatprep.mubr.f32.mxu0 0.0
    %162 = vmatmul.mubr.f32.gmra.mrb[0].mxu0 0.0
    %v163 = vpop.f32.mrb[0].mxu0
    %v164 = vadd.f32 0.0, %v163
    %v165 = vpop.f32.mrb[0].mxu0
    %166 = vdwg.mxu0
    %v167 = vadd.f32 %v95, %v164
    %v168 = vadd.f32 %v96, %v164
    %v169 = vtanh.pop %v167
    %v170 = vtanh.pop %v168
    %171 = vst [vmem:[#allocation2] sm:$0xff] %v169
    %s172 = scalar_lea.vmem [#allocation2], 8
    %173 = vst [vmem:[%s172] sm:$0xff] %v170
    %s174 = scalar_lea.vmem [#allocation3], 16
    %v175 = vld [vmem:[%s174] sm:$0xff]
    %v176 = vld [vmem:[%s174 + $0x8] sm:$0xff]
    %177 = vmatprep.subr.mxu0 0.0
    %178 = vmatpush1.msra.mxu0 %v79
    %179 = vmatprep.subr.mxu0 0.0
    %180 = vmatpush1.msra.mxu0 %v80
    %181 = vmatprep.subr.mxu0 0.0
    %182 = vmatpush1.msra.mxu0 %v81
    %183 = vmatprep.subr.mxu0 0.0
    %184 = vmatpush1.msra.mxu0 %v82
    %185 = vmatprep.subr.mxu0 0.0
    %186 = vmatpush1.msra.mxu0 %v83
    %187 = vmatprep.subr.mxu0 0.0
    %188 = vmatpush1.msra.mxu0 %v84
    %189 = vmatprep.subr.mxu0 0.0
    %190 = vmatpush1.msra.mxu0 %v85
    %191 = vmatprep.subr.mxu0 0.0
    %192 = vmatpush1.msra.mxu0 %v86
    %193 = vmatprep.subr.mxu0 0.0
    %194 = vmatpush1.msra.mxu0 %v87
    %195 = vmatprep.subr.mxu0 0.0
    %196 = vmatpush1.msra.mxu0 %v88
    %197 = vmatprep.subr.mxu0 0.0
    %198 = vmatpush1.msra.mxu0 %v89
    %199 = vmatprep.subr.mxu0 0.0
    %200 = vmatpush1.msra.mxu0 %v90
    %201 = vmatprep.subr.mxu0 0.0
    %202 = vmatpush1.msra.mxu0 %v91
    %203 = vmatprep.subr.mxu0 0.0
    %204 = vmatpush1.msra.mxu0 %v92
    %205 = vmatprep.subr.mxu0 0.0
    %206 = vmatpush1.msra.mxu0 %v93
    %207 = vmatprep.subr.mxu0 0.0
    %208 = vmatpush1.msra.mxu0 %v94
    %209 = vmatprep.subr.mxu0 0.0
    %210 = vmatpush1.msra.mxu0 0.0
    %211 = vmatprep.subr.mxu0 0.0
    %212 = vmatpush1.msra.mxu0 0.0
    %213 = vmatprep.subr.mxu0 0.0
    %214 = vmatpush1.msra.mxu0 0.0
    %215 = vmatprep.subr.mxu0 0.0
    %216 = vmatpush1.msra.mxu0 0.0
    %217 = vmatprep.subr.mxu0 0.0
    %218 = vmatpush1.msra.mxu0 0.0
    %219 = vmatprep.subr.mxu0 0.0
    %220 = vmatpush1.msra.mxu0 0.0
    %221 = vmatprep.subr.mxu0 0.0
    %222 = vmatpush1.msra.mxu0 0.0
    %223 = vmatprep.subr.mxu0 0.0
    %224 = vmatpush1.msra.mxu0 0.0
    %225 = vmatprep.subr.mxu0 0.0
    %226 = vmatpush1.msra.mxu0 0.0
    %227 = vmatprep.subr.mxu0 0.0
    %228 = vmatpush1.msra.mxu0 0.0
    %229 = vmatprep.subr.mxu0 0.0
    %230 = vmatpush1.msra.mxu0 0.0
    %231 = vmatprep.subr.mxu0 0.0
    %232 = vmatpush1.msra.mxu0 0.0
    %233 = vmatprep.subr.mxu0 0.0
    %234 = vmatpush1.msra.mxu0 0.0
    %235 = vmatprep.subr.mxu0 0.0
    %236 = vmatpush1.msra.mxu0 0.0
    %237 = vmatprep.subr.mxu0 0.0
    %238 = vmatpush1.msra.mxu0 0.0
    %239 = vmatprep.subr.mxu0 0.0
    %240 = vmatpush1.msra.mxu0 0.0
    %241 = vmatprep.mubr.f32.mxu0 0.0
    %242 = vmatmul.mubr.f32.gmra.mrb[0].mxu0 %v169
    %v243 = vpop.f32.mrb[0].mxu0
    %v244 = vadd.f32 0.0, %v243
    %v245 = vpop.f32.mrb[0].mxu0
    %246 = vdwg.mxu0
    %v247 = vadd.f32 %v175, %v244
    %248 = vmatprep.subr.mxu0 0.0
    %249 = vmatpush1.msra.mxu0 %v79
    %250 = vmatprep.subr.mxu0 0.0
    %251 = vmatpush1.msra.mxu0 %v80
    %252 = vmatprep.subr.mxu0 0.0
    %253 = vmatpush1.msra.mxu0 %v81
    %254 = vmatprep.subr.mxu0 0.0
    %255 = vmatpush1.msra.mxu0 %v82
    %256 = vmatprep.subr.mxu0 0.0
    %257 = vmatpush1.msra.mxu0 %v83
    %258 = vmatprep.subr.mxu0 0.0
    %259 = vmatpush1.msra.mxu0 %v84
    %260 = vmatprep.subr.mxu0 0.0
    %261 = vmatpush1.msra.mxu0 %v85
    %262 = vmatprep.subr.mxu0 0.0
    %263 = vmatpush1.msra.mxu0 %v86
    %264 = vmatprep.subr.mxu0 0.0
    %265 = vmatpush1.msra.mxu0 %v87
    %266 = vmatprep.subr.mxu0 0.0
    %267 = vmatpush1.msra.mxu0 %v88
    %268 = vmatprep.subr.mxu0 0.0
    %269 = vmatpush1.msra.mxu0 %v89
    %270 = vmatprep.subr.mxu0 0.0
    %271 = vmatpush1.msra.mxu0 %v90
    %272 = vmatprep.subr.mxu0 0.0
    %273 = vmatpush1.msra.mxu0 %v91
    %274 = vmatprep.subr.mxu0 0.0
    %275 = vmatpush1.msra.mxu0 %v92
    %276 = vmatprep.subr.mxu0 0.0
    %277 = vmatpush1.msra.mxu0 %v93
    %278 = vmatprep.subr.mxu0 0.0
    %279 = vmatpush1.msra.mxu0 %v94
    %280 = vmatprep.subr.mxu0 0.0
    %281 = vmatpush1.msra.mxu0 0.0
    %282 = vmatprep.subr.mxu0 0.0
    %283 = vmatpush1.msra.mxu0 0.0
    %284 = vmatprep.subr.mxu0 0.0
    %285 = vmatpush1.msra.mxu0 0.0
    %286 = vmatprep.subr.mxu0 0.0
    %287 = vmatpush1.msra.mxu0 0.0
    %288 = vmatprep.subr.mxu0 0.0
    %289 = vmatpush1.msra.mxu0 0.0
    %290 = vmatprep.subr.mxu0 0.0
    %291 = vmatpush1.msra.mxu0 0.0
    %292 = vmatprep.subr.mxu0 0.0
    %293 = vmatpush1.msra.mxu0 0.0
    %294 = vmatprep.subr.mxu0 0.0
    %295 = vmatpush1.msra.mxu0 0.0
    %296 = vmatprep.subr.mxu0 0.0
    %297 = vmatpush1.msra.mxu0 0.0
    %298 = vmatprep.subr.mxu0 0.0
    %299 = vmatpush1.msra.mxu0 0.0
    %300 = vmatprep.subr.mxu0 0.0
    %301 = vmatpush1.msra.mxu0 0.0
    %302 = vmatprep.subr.mxu0 0.0
    %303 = vmatpush1.msra.mxu0 0.0
    %304 = vmatprep.subr.mxu0 0.0
    %305 = vmatpush1.msra.mxu0 0.0
    %306 = vmatprep.subr.mxu0 0.0
    %307 = vmatpush1.msra.mxu0 0.0
    %308 = vmatprep.subr.mxu0 0.0
    %309 = vmatpush1.msra.mxu0 0.0
    %310 = vmatprep.subr.mxu0 0.0
    %311 = vmatpush1.msra.mxu0 0.0
    %312 = vmatprep.mubr.f32.mxu0 0.0
    %313 = vmatmul.mubr.f32.gmra.mrb[0].mxu0 %v170
    %v314 = vpop.f32.mrb[0].mxu0
    %v315 = vadd.f32 0.0, %v314
    %v316 = vpop.f32.mrb[0].mxu0
    %317 = vdwg.mxu0
    %v318 = vadd.f32 %v176, %v315
    %v319 = vtanh.pop %v247
    %v320 = vtanh.pop %v318
    %s321 = scalar_lea.vmem [#allocation2], 16
    %322 = vst [vmem:[%s321] sm:$0xff] %v319
    %s323 = scalar_lea.vmem [#allocation2], 24
    %324 = vst [vmem:[%s323] sm:$0xff] %v320
    %s325 = scalar_lea.vmem [#allocation3], 32
    %v326 = vld [vmem:[%s325] sm:$0xff]
    %v327 = vld [vmem:[%s325 + $0x8] sm:$0xff]
    %328 = vmatprep.subr.mxu0 0.0
    %329 = vmatpush1.msra.mxu0 %v79
    %330 = vmatprep.subr.mxu0 0.0
    %331 = vmatpush1.msra.mxu0 %v80
    %332 = vmatprep.subr.mxu0 0.0
    %333 = vmatpush1.msra.mxu0 %v81
    %334 = vmatprep.subr.mxu0 0.0
    %335 = vmatpush1.msra.mxu0 %v82
    %336 = vmatprep.subr.mxu0 0.0
    %337 = vmatpush1.msra.mxu0 %v83
    %338 = vmatprep.subr.mxu0 0.0
    %339 = vmatpush1.msra.mxu0 %v84
    %340 = vmatprep.subr.mxu0 0.0
    %341 = vmatpush1.msra.mxu0 %v85
    %342 = vmatprep.subr.mxu0 0.0
    %343 = vmatpush1.msra.mxu0 %v86
    %344 = vmatprep.subr.mxu0 0.0
    %345 = vmatpush1.msra.mxu0 %v87
    %346 = vmatprep.subr.mxu0 0.0
    %347 = vmatpush1.msra.mxu0 %v88
    %348 = vmatprep.subr.mxu0 0.0
    %349 = vmatpush1.msra.mxu0 %v89
    %350 = vmatprep.subr.mxu0 0.0
    %351 = vmatpush1.msra.mxu0 %v90
    %352 = vmatprep.subr.mxu0 0.0
    %353 = vmatpush1.msra.mxu0 %v91
    %354 = vmatprep.subr.mxu0 0.0
    %355 = vmatpush1.msra.mxu0 %v92
    %356 = vmatprep.subr.mxu0 0.0
    %357 = vmatpush1.msra.mxu0 %v93
    %358 = vmatprep.subr.mxu0 0.0
    %359 = vmatpush1.msra.mxu0 %v94
    %360 = vmatprep.subr.mxu0 0.0
    %361 = vmatpush1.msra.mxu0 0.0
    %362 = vmatprep.subr.mxu0 0.0
    %363 = vmatpush1.msra.mxu0 0.0
    %364 = vmatprep.subr.mxu0 0.0
    %365 = vmatpush1.msra.mxu0 0.0
    %366 = vmatprep.subr.mxu0 0.0
    %367 = vmatpush1.msra.mxu0 0.0
    %368 = vmatprep.subr.mxu0 0.0
    %369 = vmatpush1.msra.mxu0 0.0
    %370 = vmatprep.subr.mxu0 0.0
    %371 = vmatpush1.msra.mxu0 0.0
    %372 = vmatprep.subr.mxu0 0.0
    %373 = vmatpush1.msra.mxu0 0.0
    %374 = vmatprep.subr.mxu0 0.0
    %375 = vmatpush1.msra.mxu0 0.0
    %376 = vmatprep.subr.mxu0 0.0
    %377 = vmatpush1.msra.mxu0 0.0
    %378 = vmatprep.subr.mxu0 0.0
    %379 = vmatpush1.msra.mxu0 0.0
    %380 = vmatprep.subr.mxu0 0.0
    %381 = vmatpush1.msra.mxu0 0.0
    %382 = vmatprep.subr.mxu0 0.0
    %383 = vmatpush1.msra.mxu0 0.0
    %384 = vmatprep.subr.mxu0 0.0
    %385 = vmatpush1.msra.mxu0 0.0
    %386 = vmatprep.subr.mxu0 0.0
    %387 = vmatpush1.msra.mxu0 0.0
    %388 = vmatprep.subr.mxu0 0.0
    %389 = vmatpush1.msra.mxu0 0.0
    %390 = vmatprep.subr.mxu0 0.0
    %391 = vmatpush1.msra.mxu0 0.0
    %392 = vmatprep.mubr.f32.mxu0 0.0
    %393 = vmatmul.mubr.f32.gmra.mrb[0].mxu0 %v319
    %v394 = vpop.f32.mrb[0].mxu0
    %v395 = vadd.f32 0.0, %v394
    %v396 = vpop.f32.mrb[0].mxu0
    %397 = vdwg.mxu0
    %v398 = vadd.f32 %v326, %v395
    %399 = vmatprep.subr.mxu0 0.0
    %400 = vmatpush1.msra.mxu0 %v79
    %401 = vmatprep.subr.mxu0 0.0
    %402 = vmatpush1.msra.mxu0 %v80
    %403 = vmatprep.subr.mxu0 0.0
    %404 = vmatpush1.msra.mxu0 %v81
    %405 = vmatprep.subr.mxu0 0.0
    %406 = vmatpush1.msra.mxu0 %v82
    %407 = vmatprep.subr.mxu0 0.0
    %408 = vmatpush1.msra.mxu0 %v83
    %409 = vmatprep.subr.mxu0 0.0
    %410 = vmatpush1.msra.mxu0 %v84
    %411 = vmatprep.subr.mxu0 0.0
    %412 = vmatpush1.msra.mxu0 %v85
    %413 = vmatprep.subr.mxu0 0.0
    %414 = vmatpush1.msra.mxu0 %v86
    %415 = vmatprep.subr.mxu0 0.0
    %416 = vmatpush1.msra.mxu0 %v87
    %417 = vmatprep.subr.mxu0 0.0
    %418 = vmatpush1.msra.mxu0 %v88
    %419 = vmatprep.subr.mxu0 0.0
    %420 = vmatpush1.msra.mxu0 %v89
    %421 = vmatprep.subr.mxu0 0.0
    %422 = vmatpush1.msra.mxu0 %v90
    %423 = vmatprep.subr.mxu0 0.0
    %424 = vmatpush1.msra.mxu0 %v91
    %425 = vmatprep.subr.mxu0 0.0
    %426 = vmatpush1.msra.mxu0 %v92
    %427 = vmatprep.subr.mxu0 0.0
    %428 = vmatpush1.msra.mxu0 %v93
    %429 = vmatprep.subr.mxu0 0.0
    %430 = vmatpush1.msra.mxu0 %v94
    %431 = vmatprep.subr.mxu0 0.0
    %432 = vmatpush1.msra.mxu0 0.0
    %433 = vmatprep.subr.mxu0 0.0
    %434 = vmatpush1.msra.mxu0 0.0
    %435 = vmatprep.subr.mxu0 0.0
    %436 = vmatpush1.msra.mxu0 0.0
    %437 = vmatprep.subr.mxu0 0.0
    %438 = vmatpush1.msra.mxu0 0.0
    %439 = vmatprep.subr.mxu0 0.0
    %440 = vmatpush1.msra.mxu0 0.0
    %441 = vmatprep.subr.mxu0 0.0
    %442 = vmatpush1.msra.mxu0 0.0
    %443 = vmatprep.subr.mxu0 0.0
    %444 = vmatpush1.msra.mxu0 0.0
    %445 = vmatprep.subr.mxu0 0.0
    %446 = vmatpush1.msra.mxu0 0.0
    %447 = vmatprep.subr.mxu0 0.0
    %448 = vmatpush1.msra.mxu0 0.0
    %449 = vmatprep.subr.mxu0 0.0
    %450 = vmatpush1.msra.mxu0 0.0
    %451 = vmatprep.subr.mxu0 0.0
    %452 = vmatpush1.msra.mxu0 0.0
    %453 = vmatprep.subr.mxu0 0.0
    %454 = vmatpush1.msra.mxu0 0.0
    %455 = vmatprep.subr.mxu0 0.0
    %456 = vmatpush1.msra.mxu0 0.0
    %457 = vmatprep.subr.mxu0 0.0
    %458 = vmatpush1.msra.mxu0 0.0
    %459 = vmatprep.subr.mxu0 0.0
    %460 = vmatpush1.msra.mxu0 0.0
    %461 = vmatprep.subr.mxu0 0.0
    %462 = vmatpush1.msra.mxu0 0.0
    %463 = vmatprep.mubr.f32.mxu0 0.0
    %464 = vmatmul.mubr.f32.gmra.mrb[0].mxu0 %v320
    %v465 = vpop.f32.mrb[0].mxu0
    %v466 = vadd.f32 0.0, %v465
    %v467 = vpop.f32.mrb[0].mxu0
    %468 = vdwg.mxu0
    %v469 = vadd.f32 %v327, %v466
    %v470 = vtanh.pop %v398
    %v471 = vtanh.pop %v469
    %s472 = scalar_lea.vmem [#allocation2], 32
    %473 = vst [vmem:[%s472] sm:$0xff] %v470
    %s474 = scalar_lea.vmem [#allocation2], 40
    %475 = vst [vmem:[%s474] sm:$0xff] %v471
    %s476 = scalar_lea.vmem [#allocation3], 48
    %v477 = vld [vmem:[%s476] sm:$0xff]
    %v478 = vld [vmem:[%s476 + $0x8] sm:$0xff]
    %479 = vmatprep.subr.mxu0 0.0
    %480 = vmatpush1.msra.mxu0 %v79
    %481 = vmatprep.subr.mxu0 0.0
    %482 = vmatpush1.msra.mxu0 %v80
    %483 = vmatprep.subr.mxu0 0.0
    %484 = vmatpush1.msra.mxu0 %v81
    %485 = vmatprep.subr.mxu0 0.0
    %486 = vmatpush1.msra.mxu0 %v82
    %487 = vmatprep.subr.mxu0 0.0
    %488 = vmatpush1.msra.mxu0 %v83
    %489 = vmatprep.subr.mxu0 0.0
    %490 = vmatpush1.msra.mxu0 %v84
    %491 = vmatprep.subr.mxu0 0.0
    %492 = vmatpush1.msra.mxu0 %v85
    %493 = vmatprep.subr.mxu0 0.0
    %494 = vmatpush1.msra.mxu0 %v86
    %495 = vmatprep.subr.mxu0 0.0
    %496 = vmatpush1.msra.mxu0 %v87
    %497 = vmatprep.subr.mxu0 0.0
    %498 = vmatpush1.msra.mxu0 %v88
    %499 = vmatprep.subr.mxu0 0.0
    %500 = vmatpush1.msra.mxu0 %v89
    %501 = vmatprep.subr.mxu0 0.0
    %502 = vmatpush1.msra.mxu0 %v90
    %503 = vmatprep.subr.mxu0 0.0
    %504 = vmatpush1.msra.mxu0 %v91
    %505 = vmatprep.subr.mxu0 0.0
    %506 = vmatpush1.msra.mxu0 %v92
    %507 = vmatprep.subr.mxu0 0.0
    %508 = vmatpush1.msra.mxu0 %v93
    %509 = vmatprep.subr.mxu0 0.0
    %510 = vmatpush1.msra.mxu0 %v94
    %511 = vmatprep.subr.mxu0 0.0
    %512 = vmatpush1.msra.mxu0 0.0
    %513 = vmatprep.subr.mxu0 0.0
    %514 = vmatpush1.msra.mxu0 0.0
    %515 = vmatprep.subr.mxu0 0.0
    %516 = vmatpush1.msra.mxu0 0.0
    %517 = vmatprep.subr.mxu0 0.0
    %518 = vmatpush1.msra.mxu0 0.0
    %519 = vmatprep.subr.mxu0 0.0
    %520 = vmatpush1.msra.mxu0 0.0
    %521 = vmatprep.subr.mxu0 0.0
    %522 = vmatpush1.msra.mxu0 0.0
    %523 = vmatprep.subr.mxu0 0.0
    %524 = vmatpush1.msra.mxu0 0.0
    %525 = vmatprep.subr.mxu0 0.0
    %526 = vmatpush1.msra.mxu0 0.0
    %527 = vmatprep.subr.mxu0 0.0
    %528 = vmatpush1.msra.mxu0 0.0
    %529 = vmatprep.subr.mxu0 0.0
    %530 = vmatpush1.msra.mxu0 0.0
    %531 = vmatprep.subr.mxu0 0.0
    %532 = vmatpush1.msra.mxu0 0.0
    %533 = vmatprep.subr.mxu0 0.0
    %534 = vmatpush1.msra.mxu0 0.0
    %535 = vmatprep.subr.mxu0 0.0
    %536 = vmatpush1.msra.mxu0 0.0
    %537 = vmatprep.subr.mxu0 0.0
    %538 = vmatpush1.msra.mxu0 0.0
    %539 = vmatprep.subr.mxu0 0.0
    %540 = vmatpush1.msra.mxu0 0.0
    %541 = vmatprep.subr.mxu0 0.0
    %542 = vmatpush1.msra.mxu0 0.0
    %543 = vmatprep.mubr.f32.mxu0 0.0
    %544 = vmatmul.mubr.f32.gmra.mrb[0].mxu0 %v470
    %v545 = vpop.f32.mrb[0].mxu0
    %v546 = vadd.f32 0.0, %v545
    %v547 = vpop.f32.mrb[0].mxu0
    %548 = vdwg.mxu0
    %v549 = vadd.f32 %v477, %v546
    %550 = vmatprep.subr.mxu0 0.0
    %551 = vmatpush1.msra.mxu0 %v79
    %552 = vmatprep.subr.mxu0 0.0
    %553 = vmatpush1.msra.mxu0 %v80
    %554 = vmatprep.subr.mxu0 0.0
    %555 = vmatpush1.msra.mxu0 %v81
    %556 = vmatprep.subr.mxu0 0.0
    %557 = vmatpush1.msra.mxu0 %v82
    %558 = vmatprep.subr.mxu0 0.0
    %559 = vmatpush1.msra.mxu0 %v83
    %560 = vmatprep.subr.mxu0 0.0
    %561 = vmatpush1.msra.mxu0 %v84
    %562 = vmatprep.subr.mxu0 0.0
    %563 = vmatpush1.msra.mxu0 %v85
    %564 = vmatprep.subr.mxu0 0.0
    %565 = vmatpush1.msra.mxu0 %v86
    %566 = vmatprep.subr.mxu0 0.0
    %567 = vmatpush1.msra.mxu0 %v87
    %568 = vmatprep.subr.mxu0 0.0
    %569 = vmatpush1.msra.mxu0 %v88
    %570 = vmatprep.subr.mxu0 0.0
    %571 = vmatpush1.msra.mxu0 %v89
    %572 = vmatprep.subr.mxu0 0.0
    %573 = vmatpush1.msra.mxu0 %v90
    %574 = vmatprep.subr.mxu0 0.0
    %575 = vmatpush1.msra.mxu0 %v91
    %576 = vmatprep.subr.mxu0 0.0
    %577 = vmatpush1.msra.mxu0 %v92
    %578 = vmatprep.subr.mxu0 0.0
    %579 = vmatpush1.msra.mxu0 %v93
    %580 = vmatprep.subr.mxu0 0.0
    %581 = vmatpush1.msra.mxu0 %v94
    %582 = vmatprep.subr.mxu0 0.0
    %583 = vmatpush1.msra.mxu0 0.0
    %584 = vmatprep.subr.mxu0 0.0
    %585 = vmatpush1.msra.mxu0 0.0
    %586 = vmatprep.subr.mxu0 0.0
    %587 = vmatpush1.msra.mxu0 0.0
    %588 = vmatprep.subr.mxu0 0.0
    %589 = vmatpush1.msra.mxu0 0.0
    %590 = vmatprep.subr.mxu0 0.0
    %591 = vmatpush1.msra.mxu0 0.0
    %592 = vmatprep.subr.mxu0 0.0
    %593 = vmatpush1.msra.mxu0 0.0
    %594 = vmatprep.subr.mxu0 0.0
    %595 = vmatpush1.msra.mxu0 0.0
    %596 = vmatprep.subr.mxu0 0.0
    %597 = vmatpush1.msra.mxu0 0.0
    %598 = vmatprep.subr.mxu0 0.0
    %599 = vmatpush1.msra.mxu0 0.0
    %600 = vmatprep.subr.mxu0 0.0
    %601 = vmatpush1.msra.mxu0 0.0
    %602 = vmatprep.subr.mxu0 0.0
    %603 = vmatpush1.msra.mxu0 0.0
    %604 = vmatprep.subr.mxu0 0.0
    %605 = vmatpush1.msra.mxu0 0.0
    %606 = vmatprep.subr.mxu0 0.0
    %607 = vmatpush1.msra.mxu0 0.0
    %608 = vmatprep.subr.mxu0 0.0
    %609 = vmatpush1.msra.mxu0 0.0
    %610 = vmatprep.subr.mxu0 0.0
    %611 = vmatpush1.msra.mxu0 0.0
    %612 = vmatprep.subr.mxu0 0.0
    %613 = vmatpush1.msra.mxu0 0.0
    %614 = vmatprep.mubr.f32.mxu0 0.0
    %615 = vmatmul.mubr.f32.gmra.mrb[0].mxu0 %v471
    %v616 = vpop.f32.mrb[0].mxu0
    %v617 = vadd.f32 0.0, %v616
    %v618 = vpop.f32.mrb[0].mxu0
    %619 = vdwg.mxu0
    %v620 = vadd.f32 %v478, %v617
    %v621 = vtanh.pop %v549
    %v622 = vtanh.pop %v620
    %s623 = scalar_lea.vmem [#allocation2], 48
    %624 = vst [vmem:[%s623] sm:$0xff] %v621
    %s625 = scalar_lea.vmem [#allocation2], 56
    %626 = vst [vmem:[%s625] sm:$0xff] %v622
    %s627 = scalar_lea.vmem [#allocation3], 64
    %v628 = vld [vmem:[%s627] sm:$0xff]
    %v629 = vld [vmem:[%s627 + $0x8] sm:$0xff]
    %630 = vmatprep.subr.mxu0 0.0
    %631 = vmatpush1.msra.mxu0 %v79
    %632 = vmatprep.subr.mxu0 0.0
    %633 = vmatpush1.msra.mxu0 %v80
    %634 = vmatprep.subr.mxu0 0.0
    %635 = vmatpush1.msra.mxu0 %v81
    %636 = vmatprep.subr.mxu0 0.0
    %637 = vmatpush1.msra.mxu0 %v82
    %638 = vmatprep.subr.mxu0 0.0
    %639 = vmatpush1.msra.mxu0 %v83
    %640 = vmatprep.subr.mxu0 0.0
    %641 = vmatpush1.msra.mxu0 %v84
    %642 = vmatprep.subr.mxu0 0.0
    %643 = vmatpush1.msra.mxu0 %v85
    %644 = vmatprep.subr.mxu0 0.0
    %645 = vmatpush1.msra.mxu0 %v86
    %646 = vmatprep.subr.mxu0 0.0
    %647 = vmatpush1.msra.mxu0 %v87
    %648 = vmatprep.subr.mxu0 0.0
    %649 = vmatpush1.msra.mxu0 %v88
    %650 = vmatprep.subr.mxu0 0.0
    %651 = vmatpush1.msra.mxu0 %v89
    %652 = vmatprep.subr.mxu0 0.0
    %653 = vmatpush1.msra.mxu0 %v90
    %654 = vmatprep.subr.mxu0 0.0
    %655 = vmatpush1.msra.mxu0 %v91
    %656 = vmatprep.subr.mxu0 0.0
    %657 = vmatpush1.msra.mxu0 %v92
    %658 = vmatprep.subr.mxu0 0.0
    %659 = vmatpush1.msra.mxu0 %v93
    %660 = vmatprep.subr.mxu0 0.0
    %661 = vmatpush1.msra.mxu0 %v94
    %662 = vmatprep.subr.mxu0 0.0
    %663 = vmatpush1.msra.mxu0 0.0
    %664 = vmatprep.subr.mxu0 0.0
    %665 = vmatpush1.msra.mxu0 0.0
    %666 = vmatprep.subr.mxu0 0.0
    %667 = vmatpush1.msra.mxu0 0.0
    %668 = vmatprep.subr.mxu0 0.0
    %669 = vmatpush1.msra.mxu0 0.0
    %670 = vmatprep.subr.mxu0 0.0
    %671 = vmatpush1.msra.mxu0 0.0
    %672 = vmatprep.subr.mxu0 0.0
    %673 = vmatpush1.msra.mxu0 0.0
    %674 = vmatprep.subr.mxu0 0.0
    %675 = vmatpush1.msra.mxu0 0.0
    %676 = vmatprep.subr.mxu0 0.0
    %677 = vmatpush1.msra.mxu0 0.0
    %678 = vmatprep.subr.mxu0 0.0
    %679 = vmatpush1.msra.mxu0 0.0
    %680 = vmatprep.subr.mxu0 0.0
    %681 = vmatpush1.msra.mxu0 0.0
    %682 = vmatprep.subr.mxu0 0.0
    %683 = vmatpush1.msra.mxu0 0.0
    %684 = vmatprep.subr.mxu0 0.0
    %685 = vmatpush1.msra.mxu0 0.0
    %686 = vmatprep.subr.mxu0 0.0
    %687 = vmatpush1.msra.mxu0 0.0
    %688 = vmatprep.subr.mxu0 0.0
    %689 = vmatpush1.msra.mxu0 0.0
    %690 = vmatprep.subr.mxu0 0.0
    %691 = vmatpush1.msra.mxu0 0.0
    %692 = vmatprep.subr.mxu0 0.0
    %693 = vmatpush1.msra.mxu0 0.0
    %694 = vmatprep.mubr.f32.mxu0 0.0
    %695 = vmatmul.mubr.f32.gmra.mrb[0].mxu0 %v621
    %v696 = vpop.f32.mrb[0].mxu0
    %v697 = vadd.f32 0.0, %v696
    %v698 = vpop.f32.mrb[0].mxu0
    %699 = vdwg.mxu0
    %v700 = vadd.f32 %v628, %v697
    %701 = vmatprep.subr.mxu0 0.0
    %702 = vmatpush1.msra.mxu0 %v79
    %703 = vmatprep.subr.mxu0 0.0
    %704 = vmatpush1.msra.mxu0 %v80
    %705 = vmatprep.subr.mxu0 0.0
    %706 = vmatpush1.msra.mxu0 %v81
    %707 = vmatprep.subr.mxu0 0.0
    %708 = vmatpush1.msra.mxu0 %v82
    %709 = vmatprep.subr.mxu0 0.0
    %710 = vmatpush1.msra.mxu0 %v83
    %711 = vmatprep.subr.mxu0 0.0
    %712 = vmatpush1.msra.mxu0 %v84
    %713 = vmatprep.subr.mxu0 0.0
    %714 = vmatpush1.msra.mxu0 %v85
    %715 = vmatprep.subr.mxu0 0.0
    %716 = vmatpush1.msra.mxu0 %v86
    %717 = vmatprep.subr.mxu0 0.0
    %718 = vmatpush1.msra.mxu0 %v87
    %719 = vmatprep.subr.mxu0 0.0
    %720 = vmatpush1.msra.mxu0 %v88
    %721 = vmatprep.subr.mxu0 0.0
    %722 = vmatpush1.msra.mxu0 %v89
    %723 = vmatprep.subr.mxu0 0.0
    %724 = vmatpush1.msra.mxu0 %v90
    %725 = vmatprep.subr.mxu0 0.0
    %726 = vmatpush1.msra.mxu0 %v91
    %727 = vmatprep.subr.mxu0 0.0
    %728 = vmatpush1.msra.mxu0 %v92
    %729 = vmatprep.subr.mxu0 0.0
    %730 = vmatpush1.msra.mxu0 %v93
    %731 = vmatprep.subr.mxu0 0.0
    %732 = vmatpush1.msra.mxu0 %v94
    %733 = vmatprep.subr.mxu0 0.0
    %734 = vmatpush1.msra.mxu0 0.0
    %735 = vmatprep.subr.mxu0 0.0
    %736 = vmatpush1.msra.mxu0 0.0
    %737 = vmatprep.subr.mxu0 0.0
    %738 = vmatpush1.msra.mxu0 0.0
    %739 = vmatprep.subr.mxu0 0.0
    %740 = vmatpush1.msra.mxu0 0.0
    %741 = vmatprep.subr.mxu0 0.0
    %742 = vmatpush1.msra.mxu0 0.0
    %743 = vmatprep.subr.mxu0 0.0
    %744 = vmatpush1.msra.mxu0 0.0
    %745 = vmatprep.subr.mxu0 0.0
    %746 = vmatpush1.msra.mxu0 0.0
    %747 = vmatprep.subr.mxu0 0.0
    %748 = vmatpush1.msra.mxu0 0.0
    %749 = vmatprep.subr.mxu0 0.0
    %750 = vmatpush1.msra.mxu0 0.0
    %751 = vmatprep.subr.mxu0 0.0
    %752 = vmatpush1.msra.mxu0 0.0
    %753 = vmatprep.subr.mxu0 0.0
    %754 = vmatpush1.msra.mxu0 0.0
    %755 = vmatprep.subr.mxu0 0.0
    %756 = vmatpush1.msra.mxu0 0.0
    %757 = vmatprep.subr.mxu0 0.0
    %758 = vmatpush1.msra.mxu0 0.0
    %759 = vmatprep.subr.mxu0 0.0
    %760 = vmatpush1.msra.mxu0 0.0
    %761 = vmatprep.subr.mxu0 0.0
    %762 = vmatpush1.msra.mxu0 0.0
    %763 = vmatprep.subr.mxu0 0.0
    %764 = vmatpush1.msra.mxu0 0.0
    %765 = vmatprep.mubr.f32.mxu0 0.0
    %766 = vmatmul.mubr.f32.gmra.mrb[0].mxu0 %v622
    %v767 = vpop.f32.mrb[0].mxu0
    %v768 = vadd.f32 0.0, %v767
    %v769 = vpop.f32.mrb[0].mxu0
    %770 = vdwg.mxu0
    %v771 = vadd.f32 %v629, %v768
    %v772 = vtanh.pop %v700
    %v773 = vtanh.pop %v771
    %s774 = scalar_lea.vmem [#allocation2], 64
    %775 = vst [vmem:[%s774] sm:$0xff] %v772
    %s776 = scalar_lea.vmem [#allocation2], 72
    %777 = vst [vmem:[%s776] sm:$0xff] %v773
    %s778 = scalar_lea.vmem [#allocation3], 80
    %v779 = vld [vmem:[%s778] sm:$0xff]
    %v780 = vld [vmem:[%s778 + $0x8] sm:$0xff]
    %781 = vmatprep.subr.mxu0 0.0
    %782 = vmatpush1.msra.mxu0 %v79
    %783 = vmatprep.subr.mxu0 0.0
    %784 = vmatpush1.msra.mxu0 %v80
    %785 = vmatprep.subr.mxu0 0.0
    %786 = vmatpush1.msra.mxu0 %v81
    %787 = vmatprep.subr.mxu0 0.0
    %788 = vmatpush1.msra.mxu0 %v82
    %789 = vmatprep.subr.mxu0 0.0
    %790 = vmatpush1.msra.mxu0 %v83
    %791 = vmatprep.subr.mxu0 0.0
    %792 = vmatpush1.msra.mxu0 %v84
    %793 = vmatprep.subr.mxu0 0.0
    %794 = vmatpush1.msra.mxu0 %v85
    %795 = vmatprep.subr.mxu0 0.0
    %796 = vmatpush1.msra.mxu0 %v86
    %797 = vmatprep.subr.mxu0 0.0
    %798 = vmatpush1.msra.mxu0 %v87
    %799 = vmatprep.subr.mxu0 0.0
    %800 = vmatpush1.msra.mxu0 %v88
    %801 = vmatprep.subr.mxu0 0.0
    %802 = vmatpush1.msra.mxu0 %v89
    %803 = vmatprep.subr.mxu0 0.0
    %804 = vmatpush1.msra.mxu0 %v90
    %805 = vmatprep.subr.mxu0 0.0
    %806 = vmatpush1.msra.mxu0 %v91
    %807 = vmatprep.subr.mxu0 0.0
    %808 = vmatpush1.msra.mxu0 %v92
    %809 = vmatprep.subr.mxu0 0.0
    %810 = vmatpush1.msra.mxu0 %v93
    %811 = vmatprep.subr.mxu0 0.0
    %812 = vmatpush1.msra.mxu0 %v94
    %813 = vmatprep.subr.mxu0 0.0
    %814 = vmatpush1.msra.mxu0 0.0
    %815 = vmatprep.subr.mxu0 0.0
    %816 = vmatpush1.msra.mxu0 0.0
    %817 = vmatprep.subr.mxu0 0.0
    %818 = vmatpush1.msra.mxu0 0.0
    %819 = vmatprep.subr.mxu0 0.0
    %820 = vmatpush1.msra.mxu0 0.0
    %821 = vmatprep.subr.mxu0 0.0
    %822 = vmatpush1.msra.mxu0 0.0
    %823 = vmatprep.subr.mxu0 0.0
    %824 = vmatpush1.msra.mxu0 0.0
    %825 = vmatprep.subr.mxu0 0.0
    %826 = vmatpush1.msra.mxu0 0.0
    %827 = vmatprep.subr.mxu0 0.0
    %828 = vmatpush1.msra.mxu0 0.0
    %829 = vmatprep.subr.mxu0 0.0
    %830 = vmatpush1.msra.mxu0 0.0
    %831 = vmatprep.subr.mxu0 0.0
    %832 = vmatpush1.msra.mxu0 0.0
    %833 = vmatprep.subr.mxu0 0.0
    %834 = vmatpush1.msra.mxu0 0.0
    %835 = vmatprep.subr.mxu0 0.0
    %836 = vmatpush1.msra.mxu0 0.0
    %837 = vmatprep.subr.mxu0 0.0
    %838 = vmatpush1.msra.mxu0 0.0
    %839 = vmatprep.subr.mxu0 0.0
    %840 = vmatpush1.msra.mxu0 0.0
    %841 = vmatprep.subr.mxu0 0.0
    %842 = vmatpush1.msra.mxu0 0.0
    %843 = vmatprep.subr.mxu0 0.0
    %844 = vmatpush1.msra.mxu0 0.0
    %845 = vmatprep.mubr.f32.mxu0 0.0
    %846 = vmatmul.mubr.f32.gmra.mrb[0].mxu0 %v772
    %v847 = vpop.f32.mrb[0].mxu0
    %v848 = vadd.f32 0.0, %v847
    %v849 = vpop.f32.mrb[0].mxu0
    %850 = vdwg.mxu0
    %v851 = vadd.f32 %v779, %v848
    %852 = vmatprep.subr.mxu0 0.0
    %853 = vmatpush1.msra.mxu0 %v79
    %854 = vmatprep.subr.mxu0 0.0
    %855 = vmatpush1.msra.mxu0 %v80
    %856 = vmatprep.subr.mxu0 0.0
    %857 = vmatpush1.msra.mxu0 %v81
    %858 = vmatprep.subr.mxu0 0.0
    %859 = vmatpush1.msra.mxu0 %v82
    %860 = vmatprep.subr.mxu0 0.0
    %861 = vmatpush1.msra.mxu0 %v83
    %862 = vmatprep.subr.mxu0 0.0
    %863 = vmatpush1.msra.mxu0 %v84
    %864 = vmatprep.subr.mxu0 0.0
    %865 = vmatpush1.msra.mxu0 %v85
    %866 = vmatprep.subr.mxu0 0.0
    %867 = vmatpush1.msra.mxu0 %v86
    %868 = vmatprep.subr.mxu0 0.0
    %869 = vmatpush1.msra.mxu0 %v87
    %870 = vmatprep.subr.mxu0 0.0
    %871 = vmatpush1.msra.mxu0 %v88
    %872 = vmatprep.subr.mxu0 0.0
    %873 = vmatpush1.msra.mxu0 %v89
    %874 = vmatprep.subr.mxu0 0.0
    %875 = vmatpush1.msra.mxu0 %v90
    %876 = vmatprep.subr.mxu0 0.0
    %877 = vmatpush1.msra.mxu0 %v91
    %878 = vmatprep.subr.mxu0 0.0
    %879 = vmatpush1.msra.mxu0 %v92
    %880 = vmatprep.subr.mxu0 0.0
    %881 = vmatpush1.msra.mxu0 %v93
    %882 = vmatprep.subr.mxu0 0.0
    %883 = vmatpush1.msra.mxu0 %v94
    %884 = vmatprep.subr.mxu0 0.0
    %885 = vmatpush1.msra.mxu0 0.0
    %886 = vmatprep.subr.mxu0 0.0
    %887 = vmatpush1.msra.mxu0 0.0
    %888 = vmatprep.subr.mxu0 0.0
    %889 = vmatpush1.msra.mxu0 0.0
    %890 = vmatprep.subr.mxu0 0.0
    %891 = vmatpush1.msra.mxu0 0.0
    %892 = vmatprep.subr.mxu0 0.0
    %893 = vmatpush1.msra.mxu0 0.0
    %894 = vmatprep.subr.mxu0 0.0
    %895 = vmatpush1.msra.mxu0 0.0
    %896 = vmatprep.subr.mxu0 0.0
    %897 = vmatpush1.msra.mxu0 0.0
    %898 = vmatprep.subr.mxu0 0.0
    %899 = vmatpush1.msra.mxu0 0.0
    %900 = vmatprep.subr.mxu0 0.0
    %901 = vmatpush1.msra.mxu0 0.0
    %902 = vmatprep.subr.mxu0 0.0
    %903 = vmatpush1.msra.mxu0 0.0
    %904 = vmatprep.subr.mxu0 0.0
    %905 = vmatpush1.msra.mxu0 0.0
    %906 = vmatprep.subr.mxu0 0.0
    %907 = vmatpush1.msra.mxu0 0.0
    %908 = vmatprep.subr.mxu0 0.0
    %909 = vmatpush1.msra.mxu0 0.0
    %910 = vmatprep.subr.mxu0 0.0
    %911 = vmatpush1.msra.mxu0 0.0
    %912 = vmatprep.subr.mxu0 0.0
    %913 = vmatpush1.msra.mxu0 0.0
    %914 = vmatprep.subr.mxu0 0.0
    %915 = vmatpush1.msra.mxu0 0.0
    %916 = vmatprep.mubr.f32.mxu0 0.0
    %917 = vmatmul.mubr.f32.gmra.mrb[0].mxu0 %v773
    %v918 = vpop.f32.mrb[0].mxu0
    %v919 = vadd.f32 0.0, %v918
    %v920 = vpop.f32.mrb[0].mxu0
    %921 = vdwg.mxu0
    %v922 = vadd.f32 %v780, %v919
    %v923 = vtanh.pop %v851
    %v924 = vtanh.pop %v922
    %s925 = scalar_lea.vmem [#allocation2], 80
    %926 = vst [vmem:[%s925] sm:$0xff] %v923
    %s927 = scalar_lea.vmem [#allocation2], 88
    %928 = vst [vmem:[%s927] sm:$0xff] %v924
    %s929 = scalar_lea.vmem [#allocation3], 96
    %v930 = vld [vmem:[%s929] sm:$0xff]
    %v931 = vld [vmem:[%s929 + $0x8] sm:$0xff]
    %932 = vmatprep.subr.mxu0 0.0
    %933 = vmatpush1.msra.mxu0 %v79
    %934 = vmatprep.subr.mxu0 0.0
    %935 = vmatpush1.msra.mxu0 %v80
    %936 = vmatprep.subr.mxu0 0.0
    %937 = vmatpush1.msra.mxu0 %v81
    %938 = vmatprep.subr.mxu0 0.0
    %939 = vmatpush1.msra.mxu0 %v82
    %940 = vmatprep.subr.mxu0 0.0
    %941 = vmatpush1.msra.mxu0 %v83
    %942 = vmatprep.subr.mxu0 0.0
    %943 = vmatpush1.msra.mxu0 %v84
    %944 = vmatprep.subr.mxu0 0.0
    %945 = vmatpush1.msra.mxu0 %v85
    %946 = vmatprep.subr.mxu0 0.0
    %947 = vmatpush1.msra.mxu0 %v86
    %948 = vmatprep.subr.mxu0 0.0
    %949 = vmatpush1.msra.mxu0 %v87
    %950 = vmatprep.subr.mxu0 0.0
    %951 = vmatpush1.msra.mxu0 %v88
    %952 = vmatprep.subr.mxu0 0.0
    %953 = vmatpush1.msra.mxu0 %v89
    %954 = vmatprep.subr.mxu0 0.0
    %955 = vmatpush1.msra.mxu0 %v90
    %956 = vmatprep.subr.mxu0 0.0
    %957 = vmatpush1.msra.mxu0 %v91
    %958 = vmatprep.subr.mxu0 0.0
    %959 = vmatpush1.msra.mxu0 %v92
    %960 = vmatprep.subr.mxu0 0.0
    %961 = vmatpush1.msra.mxu0 %v93
    %962 = vmatprep.subr.mxu0 0.0
    %963 = vmatpush1.msra.mxu0 %v94
    %964 = vmatprep.subr.mxu0 0.0
    %965 = vmatpush1.msra.mxu0 0.0
    %966 = vmatprep.subr.mxu0 0.0
    %967 = vmatpush1.msra.mxu0 0.0
    %968 = vmatprep.subr.mxu0 0.0
    %969 = vmatpush1.msra.mxu0 0.0
    %970 = vmatprep.subr.mxu0 0.0
    %971 = vmatpush1.msra.mxu0 0.0
    %972 = vmatprep.subr.mxu0 0.0
    %973 = vmatpush1.msra.mxu0 0.0
    %974 = vmatprep.subr.mxu0 0.0
    %975 = vmatpush1.msra.mxu0 0.0
    %976 = vmatprep.subr.mxu0 0.0
    %977 = vmatpush1.msra.mxu0 0.0
    %978 = vmatprep.subr.mxu0 0.0
    %979 = vmatpush1.msra.mxu0 0.0
    %980 = vmatprep.subr.mxu0 0.0
    %981 = vmatpush1.msra.mxu0 0.0
    %982 = vmatprep.subr.mxu0 0.0
    %983 = vmatpush1.msra.mxu0 0.0
    %984 = vmatprep.subr.mxu0 0.0
    %985 = vmatpush1.msra.mxu0 0.0
    %986 = vmatprep.subr.mxu0 0.0
    %987 = vmatpush1.msra.mxu0 0.0
    %988 = vmatprep.subr.mxu0 0.0
    %989 = vmatpush1.msra.mxu0 0.0
    %990 = vmatprep.subr.mxu0 0.0
    %991 = vmatpush1.msra.mxu0 0.0
    %992 = vmatprep.subr.mxu0 0.0
    %993 = vmatpush1.msra.mxu0 0.0
    %994 = vmatprep.subr.mxu0 0.0
    %995 = vmatpush1.msra.mxu0 0.0
    %996 = vmatprep.mubr.f32.mxu0 0.0
    %997 = vmatmul.mubr.f32.gmra.mrb[0].mxu0 %v923
    %v998 = vpop.f32.mrb[0].mxu0
    %v999 = vadd.f32 0.0, %v998
    %v1000 = vpop.f32.mrb[0].mxu0
    %1001 = vdwg.mxu0
    %v1002 = vadd.f32 %v930, %v999
    %1003 = vmatprep.subr.mxu0 0.0
    %1004 = vmatpush1.msra.mxu0 %v79
    %1005 = vmatprep.subr.mxu0 0.0
    %1006 = vmatpush1.msra.mxu0 %v80
    %1007 = vmatprep.subr.mxu0 0.0
    %1008 = vmatpush1.msra.mxu0 %v81
    %1009 = vmatprep.subr.mxu0 0.0
    %1010 = vmatpush1.msra.mxu0 %v82
    %1011 = vmatprep.subr.mxu0 0.0
    %1012 = vmatpush1.msra.mxu0 %v83
    %1013 = vmatprep.subr.mxu0 0.0
    %1014 = vmatpush1.msra.mxu0 %v84
    %1015 = vmatprep.subr.mxu0 0.0
    %1016 = vmatpush1.msra.mxu0 %v85
    %1017 = vmatprep.subr.mxu0 0.0
    %1018 = vmatpush1.msra.mxu0 %v86
    %1019 = vmatprep.subr.mxu0 0.0
    %1020 = vmatpush1.msra.mxu0 %v87
    %1021 = vmatprep.subr.mxu0 0.0
    %1022 = vmatpush1.msra.mxu0 %v88
    %1023 = vmatprep.subr.mxu0 0.0
    %1024 = vmatpush1.msra.mxu0 %v89
    %1025 = vmatprep.subr.mxu0 0.0
    %1026 = vmatpush1.msra.mxu0 %v90
    %1027 = vmatprep.subr.mxu0 0.0
    %1028 = vmatpush1.msra.mxu0 %v91
    %1029 = vmatprep.subr.mxu0 0.0
    %1030 = vmatpush1.msra.mxu0 %v92
    %1031 = vmatprep.subr.mxu0 0.0
    %1032 = vmatpush1.msra.mxu0 %v93
    %1033 = vmatprep.subr.mxu0 0.0
    %1034 = vmatpush1.msra.mxu0 %v94
    %1035 = vmatprep.subr.mxu0 0.0
    %1036 = vmatpush1.msra.mxu0 0.0
    %1037 = vmatprep.subr.mxu0 0.0
    %1038 = vmatpush1.msra.mxu0 0.0
    %1039 = vmatprep.subr.mxu0 0.0
    %1040 = vmatpush1.msra.mxu0 0.0
    %1041 = vmatprep.subr.mxu0 0.0
    %1042 = vmatpush1.msra.mxu0 0.0
    %1043 = vmatprep.subr.mxu0 0.0
    %1044 = vmatpush1.msra.mxu0 0.0
    %1045 = vmatprep.subr.mxu0 0.0
    %1046 = vmatpush1.msra.mxu0 0.0
    %1047 = vmatprep.subr.mxu0 0.0
    %1048 = vmatpush1.msra.mxu0 0.0
    %1049 = vmatprep.subr.mxu0 0.0
    %1050 = vmatpush1.msra.mxu0 0.0
    %1051 = vmatprep.subr.mxu0 0.0
    %1052 = vmatpush1.msra.mxu0 0.0
    %1053 = vmatprep.subr.mxu0 0.0
    %1054 = vmatpush1.msra.mxu0 0.0
    %1055 = vmatprep.subr.mxu0 0.0
    %1056 = vmatpush1.msra.mxu0 0.0
    %1057 = vmatprep.subr.mxu0 0.0
    %1058 = vmatpush1.msra.mxu0 0.0
    %1059 = vmatprep.subr.mxu0 0.0
    %1060 = vmatpush1.msra.mxu0 0.0
    %1061 = vmatprep.subr.mxu0 0.0
    %1062 = vmatpush1.msra.mxu0 0.0
    %1063 = vmatprep.subr.mxu0 0.0
    %1064 = vmatpush1.msra.mxu0 0.0
    %1065 = vmatprep.subr.mxu0 0.0
    %1066 = vmatpush1.msra.mxu0 0.0
    %1067 = vmatprep.mubr.f32.mxu0 0.0
    %1068 = vmatmul.mubr.f32.gmra.mrb[0].mxu0 %v924
    %v1069 = vpop.f32.mrb[0].mxu0
    %v1070 = vadd.f32 0.0, %v1069
    %v1071 = vpop.f32.mrb[0].mxu0
    %1072 = vdwg.mxu0
    %v1073 = vadd.f32 %v931, %v1070
    %v1074 = vtanh.pop %v1002
    %v1075 = vtanh.pop %v1073
    %s1076 = scalar_lea.vmem [#allocation2], 96
    %1077 = vst [vmem:[%s1076] sm:$0xff] %v1074
    %s1078 = scalar_lea.vmem [#allocation2], 104
    %1079 = vst [vmem:[%s1078] sm:$0xff] %v1075
    %s1080 = scalar_lea.vmem [#allocation3], 112
    %v1081 = vld [vmem:[%s1080] sm:$0xff]
    %v1082 = vld [vmem:[%s1080 + $0x8] sm:$0xff]
    %1083 = vmatprep.subr.mxu0 0.0
    %1084 = vmatpush1.msra.mxu0 %v79
    %1085 = vmatprep.subr.mxu0 0.0
    %1086 = vmatpush1.msra.mxu0 %v80
    %1087 = vmatprep.subr.mxu0 0.0
    %1088 = vmatpush1.msra.mxu0 %v81
    %1089 = vmatprep.subr.mxu0 0.0
    %1090 = vmatpush1.msra.mxu0 %v82
    %1091 = vmatprep.subr.mxu0 0.0
    %1092 = vmatpush1.msra.mxu0 %v83
    %1093 = vmatprep.subr.mxu0 0.0
    %1094 = vmatpush1.msra.mxu0 %v84
    %1095 = vmatprep.subr.mxu0 0.0
    %1096 = vmatpush1.msra.mxu0 %v85
    %1097 = vmatprep.subr.mxu0 0.0
    %1098 = vmatpush1.msra.mxu0 %v86
    %1099 = vmatprep.subr.mxu0 0.0
    %1100 = vmatpush1.msra.mxu0 %v87
    %1101 = vmatprep.subr.mxu0 0.0
    %1102 = vmatpush1.msra.mxu0 %v88
    %1103 = vmatprep.subr.mxu0 0.0
    %1104 = vmatpush1.msra.mxu0 %v89
    %1105 = vmatprep.subr.mxu0 0.0
    %1106 = vmatpush1.msra.mxu0 %v90
    %1107 = vmatprep.subr.mxu0 0.0
    %1108 = vmatpush1.msra.mxu0 %v91
    %1109 = vmatprep.subr.mxu0 0.0
    %1110 = vmatpush1.msra.mxu0 %v92
    %1111 = vmatprep.subr.mxu0 0.0
    %1112 = vmatpush1.msra.mxu0 %v93
    %1113 = vmatprep.subr.mxu0 0.0
    %1114 = vmatpush1.msra.mxu0 %v94
    %1115 = vmatprep.subr.mxu0 0.0
    %1116 = vmatpush1.msra.mxu0 0.0
    %1117 = vmatprep.subr.mxu0 0.0
    %1118 = vmatpush1.msra.mxu0 0.0
    %1119 = vmatprep.subr.mxu0 0.0
    %1120 = vmatpush1.msra.mxu0 0.0
    %1121 = vmatprep.subr.mxu0 0.0
    %1122 = vmatpush1.msra.mxu0 0.0
    %1123 = vmatprep.subr.mxu0 0.0
    %1124 = vmatpush1.msra.mxu0 0.0
    %1125 = vmatprep.subr.mxu0 0.0
    %1126 = vmatpush1.msra.mxu0 0.0
    %1127 = vmatprep.subr.mxu0 0.0
    %1128 = vmatpush1.msra.mxu0 0.0
    %1129 = vmatprep.subr.mxu0 0.0
    %1130 = vmatpush1.msra.mxu0 0.0
    %1131 = vmatprep.subr.mxu0 0.0
    %1132 = vmatpush1.msra.mxu0 0.0
    %1133 = vmatprep.subr.mxu0 0.0
    %1134 = vmatpush1.msra.mxu0 0.0
    %1135 = vmatprep.subr.mxu0 0.0
    %1136 = vmatpush1.msra.mxu0 0.0
    %1137 = vmatprep.subr.mxu0 0.0
    %1138 = vmatpush1.msra.mxu0 0.0
    %1139 = vmatprep.subr.mxu0 0.0
    %1140 = vmatpush1.msra.mxu0 0.0
    %1141 = vmatprep.subr.mxu0 0.0
    %1142 = vmatpush1.msra.mxu0 0.0
    %1143 = vmatprep.subr.mxu0 0.0
    %1144 = vmatpush1.msra.mxu0 0.0
    %1145 = vmatprep.subr.mxu0 0.0
    %1146 = vmatpush1.msra.mxu0 0.0
    %1147 = vmatprep.mubr.f32.mxu0 0.0
    %1148 = vmatmul.mubr.f32.gmra.mrb[0].mxu0 %v1074
    %v1149 = vpop.f32.mrb[0].mxu0
    %v1150 = vadd.f32 0.0, %v1149
    %v1151 = vpop.f32.mrb[0].mxu0
    %1152 = vdwg.mxu0
    %v1153 = vadd.f32 %v1081, %v1150
    %1154 = vmatprep.subr.mxu0 0.0
    %1155 = vmatpush1.msra.mxu0 %v79
    %1156 = vmatprep.subr.mxu0 0.0
    %1157 = vmatpush1.msra.mxu0 %v80
    %1158 = vmatprep.subr.mxu0 0.0
    %1159 = vmatpush1.msra.mxu0 %v81
    %1160 = vmatprep.subr.mxu0 0.0
    %1161 = vmatpush1.msra.mxu0 %v82
    %1162 = vmatprep.subr.mxu0 0.0
    %1163 = vmatpush1.msra.mxu0 %v83
    %1164 = vmatprep.subr.mxu0 0.0
    %1165 = vmatpush1.msra.mxu0 %v84
    %1166 = vmatprep.subr.mxu0 0.0
    %1167 = vmatpush1.msra.mxu0 %v85
    %1168 = vmatprep.subr.mxu0 0.0
    %1169 = vmatpush1.msra.mxu0 %v86
    %1170 = vmatprep.subr.mxu0 0.0
    %1171 = vmatpush1.msra.mxu0 %v87
    %1172 = vmatprep.subr.mxu0 0.0
    %1173 = vmatpush1.msra.mxu0 %v88
    %1174 = vmatprep.subr.mxu0 0.0
    %1175 = vmatpush1.msra.mxu0 %v89
    %1176 = vmatprep.subr.mxu0 0.0
    %1177 = vmatpush1.msra.mxu0 %v90
    %1178 = vmatprep.subr.mxu0 0.0
    %1179 = vmatpush1.msra.mxu0 %v91
    %1180 = vmatprep.subr.mxu0 0.0
    %1181 = vmatpush1.msra.mxu0 %v92
    %1182 = vmatprep.subr.mxu0 0.0
    %1183 = vmatpush1.msra.mxu0 %v93
    %1184 = vmatprep.subr.mxu0 0.0
    %1185 = vmatpush1.msra.mxu0 %v94
    %1186 = vmatprep.subr.mxu0 0.0
    %1187 = vmatpush1.msra.mxu0 0.0
    %1188 = vmatprep.subr.mxu0 0.0
    %1189 = vmatpush1.msra.mxu0 0.0
    %1190 = vmatprep.subr.mxu0 0.0
    %1191 = vmatpush1.msra.mxu0 0.0
    %1192 = vmatprep.subr.mxu0 0.0
    %1193 = vmatpush1.msra.mxu0 0.0
    %1194 = vmatprep.subr.mxu0 0.0
    %1195 = vmatpush1.msra.mxu0 0.0
    %1196 = vmatprep.subr.mxu0 0.0
    %1197 = vmatpush1.msra.mxu0 0.0
    %1198 = vmatprep.subr.mxu0 0.0
    %1199 = vmatpush1.msra.mxu0 0.0
    %1200 = vmatprep.subr.mxu0 0.0
    %1201 = vmatpush1.msra.mxu0 0.0
    %1202 = vmatprep.subr.mxu0 0.0
    %1203 = vmatpush1.msra.mxu0 0.0
    %1204 = vmatprep.subr.mxu0 0.0
    %1205 = vmatpush1.msra.mxu0 0.0
    %1206 = vmatprep.subr.mxu0 0.0
    %1207 = vmatpush1.msra.mxu0 0.0
    %1208 = vmatprep.subr.mxu0 0.0
    %1209 = vmatpush1.msra.mxu0 0.0
    %1210 = vmatprep.subr.mxu0 0.0
    %1211 = vmatpush1.msra.mxu0 0.0
    %1212 = vmatprep.subr.mxu0 0.0
    %1213 = vmatpush1.msra.mxu0 0.0
    %1214 = vmatprep.subr.mxu0 0.0
    %1215 = vmatpush1.msra.mxu0 0.0
    %1216 = vmatprep.subr.mxu0 0.0
    %1217 = vmatpush1.msra.mxu0 0.0
    %1218 = vmatprep.mubr.f32.mxu0 0.0
    %1219 = vmatmul.mubr.f32.gmra.mrb[0].mxu0 %v1075
    %v1220 = vpop.f32.mrb[0].mxu0
    %v1221 = vadd.f32 0.0, %v1220
    %v1222 = vpop.f32.mrb[0].mxu0
    %1223 = vdwg.mxu0
    %v1224 = vadd.f32 %v1082, %v1221
    %v1225 = vtanh.pop %v1153
    %v1226 = vtanh.pop %v1224
    %s1227 = scalar_lea.vmem [#allocation2], 112
    %1228 = vst [vmem:[%s1227] sm:$0xff] %v1225
    %s1229 = scalar_lea.vmem [#allocation2], 120
    %1230 = vst [vmem:[%s1229] sm:$0xff] %v1226
    %s1231 = scalar_lea.vmem [#allocation8], 128
    %v1232 = vld [vmem:[%s1231] sm:$0xff]
    %v1233 = vld [vmem:[%s1231 + $0x8] sm:$0xff]
    %v1234 = vld [vmem:[%s1231 + $0x10] sm:$0xff]
    %v1235 = vld [vmem:[%s1231 + $0x18] sm:$0xff]
    %v1236 = vld [vmem:[%s1231 + $0x20] sm:$0xff]
    %v1237 = vld [vmem:[%s1231 + $0x28] sm:$0xff]
    %v1238 = vld [vmem:[%s1231 + $0x30] sm:$0xff]
    %v1239 = vld [vmem:[%s1231 + $0x38] sm:$0xff]
    %v1240 = vld [vmem:[%s1231 + $0x40] sm:$0xff]
    %v1241 = vld [vmem:[%s1231 + $0x48] sm:$0xff]
    %v1242 = vld [vmem:[%s1231 + $0x50] sm:$0xff]
    %v1243 = vld [vmem:[%s1231 + $0x58] sm:$0xff]
    %v1244 = vld [vmem:[%s1231 + $0x60] sm:$0xff]
    %v1245 = vld [vmem:[%s1231 + $0x68] sm:$0xff]
    %v1246 = vld [vmem:[%s1231 + $0x70] sm:$0xff]
    %v1247 = vld [vmem:[%s1231 + $0x78] sm:$0xff]
    %v1248 = vld [vmem:[#allocation2] sm:$0xff]
    %v1249 = vld [vmem:[#allocation2 + $0x8] sm:$0xff]
    %v1250 = vld [vmem:[#allocation2 + $0x10] sm:$0xff]
    %v1251 = vld [vmem:[#allocation2 + $0x18] sm:$0xff]
    %v1252 = vld [vmem:[#allocation2 + $0x20] sm:$0xff]
    %v1253 = vld [vmem:[#allocation2 + $0x28] sm:$0xff]
    %v1254 = vld [vmem:[#allocation2 + $0x30] sm:$0xff]
    %v1255 = vld [vmem:[#allocation2 + $0x38] sm:$0xff]
    %v1256 = vld [vmem:[#allocation2 + $0x40] sm:$0xff]
    %v1257 = vld [vmem:[#allocation2 + $0x48] sm:$0xff]
    %v1258 = vld [vmem:[#allocation2 + $0x50] sm:$0xff]
    %v1259 = vld [vmem:[#allocation2 + $0x58] sm:$0xff]
    %v1260 = vld [vmem:[#allocation2 + $0x60] sm:$0xff]
    %v1261 = vld [vmem:[#allocation2 + $0x68] sm:$0xff]
    %v1262 = vld [vmem:[#allocation2 + $0x70] sm:$0xff]
    %v1263 = vld [vmem:[#allocation2 + $0x78] sm:$0xff]
    %v1264 = vld [vmem:[#allocation6] sm:$0xff]
    %v1265 = vld [vmem:[#allocation6 + $0x8] sm:$0xff]
    %v1266 = vld [vmem:[#allocation6 + $0x10] sm:$0xff]
    %v1267 = vld [vmem:[#allocation6 + $0x18] sm:$0xff]
    %v1268 = vld [vmem:[#allocation6 + $0x20] sm:$0xff]
    %v1269 = vld [vmem:[#allocation6 + $0x28] sm:$0xff]
    %v1270 = vld [vmem:[#allocation6 + $0x30] sm:$0xff]
    %v1271 = vld [vmem:[#allocation6 + $0x38] sm:$0xff]
    %v1272 = vld [vmem:[#allocation6 + $0x40] sm:$0xff]
    %v1273 = vld [vmem:[#allocation6 + $0x48] sm:$0xff]
    %v1274 = vld [vmem:[#allocation6 + $0x50] sm:$0xff]
    %v1275 = vld [vmem:[#allocation6 + $0x58] sm:$0xff]
    %v1276 = vld [vmem:[#allocation6 + $0x60] sm:$0xff]
    %v1277 = vld [vmem:[#allocation6 + $0x68] sm:$0xff]
    %v1278 = vld [vmem:[#allocation6 + $0x70] sm:$0xff]
    %v1279 = vld [vmem:[#allocation6 + $0x78] sm:$0xff]
    %v1280 = vld [vmem:[%s2] sm:$0x1]
    %v1282 = vlaneseq
    %v1283 = vshrl.u32 %v1282, 7
    %v1284 = vsub.s32 0, %v1283
    %v1285 = vrot.slane %v1280, %v1284
    %1287 = vmatprep.subr.mxu0 0.0
    %1288 = vmatpush1.msra.mxu0 %v1264
    %1289 = vmatprep.subr.mxu0 0.0
    %1290 = vmatpush1.msra.mxu0 %v1265
    %1291 = vmatprep.subr.mxu0 0.0
    %1292 = vmatpush1.msra.mxu0 %v1266
    %1293 = vmatprep.subr.mxu0 0.0
    %1294 = vmatpush1.msra.mxu0 %v1267
    %1295 = vmatprep.subr.mxu0 0.0
    %1296 = vmatpush1.msra.mxu0 %v1268
    %1297 = vmatprep.subr.mxu0 0.0
    %1298 = vmatpush1.msra.mxu0 %v1269
    %1299 = vmatprep.subr.mxu0 0.0
    %1300 = vmatpush1.msra.mxu0 %v1270
    %1301 = vmatprep.subr.mxu0 0.0
    %1302 = vmatpush1.msra.mxu0 %v1271
    %1303 = vmatprep.subr.mxu0 0.0
    %1304 = vmatpush1.msra.mxu0 %v1272
    %1305 = vmatprep.subr.mxu0 0.0
    %1306 = vmatpush1.msra.mxu0 %v1273
    %1307 = vmatprep.subr.mxu0 0.0
    %1308 = vmatpush1.msra.mxu0 %v1274
    %1309 = vmatprep.subr.mxu0 0.0
    %1310 = vmatpush1.msra.mxu0 %v1275
    %1311 = vmatprep.subr.mxu0 0.0
    %1312 = vmatpush1.msra.mxu0 %v1276
    %1313 = vmatprep.subr.mxu0 0.0
    %1314 = vmatpush1.msra.mxu0 %v1277
    %1315 = vmatprep.subr.mxu0 0.0
    %1316 = vmatpush1.msra.mxu0 %v1278
    %1317 = vmatprep.subr.mxu0 0.0
    %1318 = vmatpush1.msra.mxu0 %v1279
    %1319 = vmatprep.subr.mxu0 0.0
    %1320 = vmatpush1.msra.mxu0 0.0
    %1321 = vmatprep.subr.mxu0 0.0
    %1322 = vmatpush1.msra.mxu0 0.0
    %1323 = vmatprep.subr.mxu0 0.0
    %1324 = vmatpush1.msra.mxu0 0.0
    %1325 = vmatprep.subr.mxu0 0.0
    %1326 = vmatpush1.msra.mxu0 0.0
    %1327 = vmatprep.subr.mxu0 0.0
    %1328 = vmatpush1.msra.mxu0 0.0
    %1329 = vmatprep.subr.mxu0 0.0
    %1330 = vmatpush1.msra.mxu0 0.0
    %1331 = vmatprep.subr.mxu0 0.0
    %1332 = vmatpush1.msra.mxu0 0.0
    %1333 = vmatprep.subr.mxu0 0.0
    %1334 = vmatpush1.msra.mxu0 0.0
    %1335 = vmatprep.subr.mxu0 0.0
    %1336 = vmatpush1.msra.mxu0 0.0
    %1337 = vmatprep.subr.mxu0 0.0
    %1338 = vmatpush1.msra.mxu0 0.0
    %1339 = vmatprep.subr.mxu0 0.0
    %1340 = vmatpush1.msra.mxu0 0.0
    %1341 = vmatprep.subr.mxu0 0.0
    %1342 = vmatpush1.msra.mxu0 0.0
    %1343 = vmatprep.subr.mxu0 0.0
    %1344 = vmatpush1.msra.mxu0 0.0
    %1345 = vmatprep.subr.mxu0 0.0
    %1346 = vmatpush1.msra.mxu0 0.0
    %1347 = vmatprep.subr.mxu0 0.0
    %1348 = vmatpush1.msra.mxu0 0.0
    %1349 = vmatprep.subr.mxu0 0.0
    %1350 = vmatpush1.msra.mxu0 0.0
    %1351 = vmatprep.mubr.f32.mxu0 0.0
    %1352 = vmatmul.mubr.f32.gmra.mrb[0].mxu0 %v1248
    %v1353 = vpop.f32.mrb[0].mxu0
    %v1354 = vadd.f32 %v1285, %v1353
    %v1355 = vpop.f32.mrb[0].mxu0
    %1356 = vmatprep.mubr.f32.mxu0 0.0
    %1357 = vmatmul.mubr.f32.gmra.mrb[0].mxu0 %v1249
    %v1358 = vpop.f32.mrb[0].mxu0
    %v1359 = vadd.f32 %v1285, %v1358
    %v1360 = vpop.f32.mrb[0].mxu0
    %1361 = vmatprep.mubr.f32.mxu0 0.0
    %1362 = vmatmul.mubr.f32.gmra.mrb[0].mxu0 %v1250
    %v1363 = vpop.f32.mrb[0].mxu0
    %v1364 = vadd.f32 %v1285, %v1363
    %v1365 = vpop.f32.mrb[0].mxu0
    %1366 = vmatprep.mubr.f32.mxu0 0.0
    %1367 = vmatmul.mubr.f32.gmra.mrb[0].mxu0 %v1251
    %v1368 = vpop.f32.mrb[0].mxu0
    %v1369 = vadd.f32 %v1285, %v1368
    %v1370 = vpop.f32.mrb[0].mxu0
    %1371 = vmatprep.mubr.f32.mxu0 0.0
    %1372 = vmatmul.mubr.f32.gmra.mrb[0].mxu0 %v1252
    %v1373 = vpop.f32.mrb[0].mxu0
    %v1374 = vadd.f32 %v1285, %v1373
    %v1375 = vpop.f32.mrb[0].mxu0
    %1376 = vmatprep.mubr.f32.mxu0 0.0
    %1377 = vmatmul.mubr.f32.gmra.mrb[0].mxu0 %v1253
    %v1378 = vpop.f32.mrb[0].mxu0
    %v1379 = vadd.f32 %v1285, %v1378
    %v1380 = vpop.f32.mrb[0].mxu0
    %1381 = vmatprep.mubr.f32.mxu0 0.0
    %1382 = vmatmul.mubr.f32.gmra.mrb[0].mxu0 %v1254
    %v1383 = vpop.f32.mrb[0].mxu0
    %v1384 = vadd.f32 %v1285, %v1383
    %v1385 = vpop.f32.mrb[0].mxu0
    %1386 = vmatprep.mubr.f32.mxu0 0.0
    %1387 = vmatmul.mubr.f32.gmra.mrb[0].mxu0 %v1255
    %v1388 = vpop.f32.mrb[0].mxu0
    %v1389 = vadd.f32 %v1285, %v1388
    %v1390 = vpop.f32.mrb[0].mxu0
    %1391 = vmatprep.mubr.f32.mxu0 0.0
    %1392 = vmatmul.mubr.f32.gmra.mrb[0].mxu0 %v1256
    %v1393 = vpop.f32.mrb[0].mxu0
    %v1394 = vadd.f32 %v1285, %v1393
    %v1395 = vpop.f32.mrb[0].mxu0
    %1396 = vmatprep.mubr.f32.mxu0 0.0
    %1397 = vmatmul.mubr.f32.gmra.mrb[0].mxu0 %v1257
    %v1398 = vpop.f32.mrb[0].mxu0
    %v1399 = vadd.f32 %v1285, %v1398
    %v1400 = vpop.f32.mrb[0].mxu0
    %1401 = vmatprep.mubr.f32.mxu0 0.0
    %1402 = vmatmul.mubr.f32.gmra.mrb[0].mxu0 %v1258
    %v1403 = vpop.f32.mrb[0].mxu0
    %v1404 = vadd.f32 %v1285, %v1403
    %v1405 = vpop.f32.mrb[0].mxu0
    %1406 = vmatprep.mubr.f32.mxu0 0.0
    %1407 = vmatmul.mubr.f32.gmra.mrb[0].mxu0 %v1259
    %v1408 = vpop.f32.mrb[0].mxu0
    %v1409 = vadd.f32 %v1285, %v1408
    %v1410 = vpop.f32.mrb[0].mxu0
    %1411 = vmatprep.mubr.f32.mxu0 0.0
    %1412 = vmatmul.mubr.f32.gmra.mrb[0].mxu0 %v1260
    %v1413 = vpop.f32.mrb[0].mxu0
    %v1414 = vadd.f32 %v1285, %v1413
    %v1415 = vpop.f32.mrb[0].mxu0
    %1416 = vmatprep.mubr.f32.mxu0 0.0
    %1417 = vmatmul.mubr.f32.gmra.mrb[0].mxu0 %v1261
    %v1418 = vpop.f32.mrb[0].mxu0
    %v1419 = vadd.f32 %v1285, %v1418
    %v1420 = vpop.f32.mrb[0].mxu0
    %1421 = vmatprep.mubr.f32.mxu0 0.0
    %1422 = vmatmul.mubr.f32.gmra.mrb[0].mxu0 %v1262
    %v1423 = vpop.f32.mrb[0].mxu0
    %v1424 = vadd.f32 %v1285, %v1423
    %v1425 = vpop.f32.mrb[0].mxu0
    %1426 = vmatprep.mubr.f32.mxu0 0.0
    %1427 = vmatmul.mubr.f32.gmra.mrb[0].mxu0 %v1263
    %v1428 = vpop.f32.mrb[0].mxu0
    %v1429 = vadd.f32 %v1285, %v1428
    %v1430 = vpop.f32.mrb[0].mxu0
    %1431 = vdwg.mxu0
    %1432 = vst [vmem:[#allocation2] sm:$0xff] %v1354
    %1433 = vst [vmem:[#allocation2 + $0x8] sm:$0xff] %v1359
    %1434 = vst [vmem:[#allocation2 + $0x10] sm:$0xff] %v1364
    %1435 = vst [vmem:[#allocation2 + $0x18] sm:$0xff] %v1369
    %1436 = vst [vmem:[#allocation2 + $0x20] sm:$0xff] %v1374
    %1437 = vst [vmem:[#allocation2 + $0x28] sm:$0xff] %v1379
    %1438 = vst [vmem:[#allocation2 + $0x30] sm:$0xff] %v1384
    %1439 = vst [vmem:[#allocation2 + $0x38] sm:$0xff] %v1389
    %1440 = vst [vmem:[#allocation2 + $0x40] sm:$0xff] %v1394
    %1441 = vst [vmem:[#allocation2 + $0x48] sm:$0xff] %v1399
    %1442 = vst [vmem:[#allocation2 + $0x50] sm:$0xff] %v1404
    %1443 = vst [vmem:[#allocation2 + $0x58] sm:$0xff] %v1409
    %1444 = vst [vmem:[#allocation2 + $0x60] sm:$0xff] %v1414
    %1445 = vst [vmem:[#allocation2 + $0x68] sm:$0xff] %v1419
    %1446 = vst [vmem:[#allocation2 + $0x70] sm:$0xff] %v1424
    %1447 = vst [vmem:[#allocation2 + $0x78] sm:$0xff] %v1429
    %v1448 = vld [vmem:[#allocation2] sm:$0xff]
    %v1449 = vld [vmem:[%s172] sm:$0xff]
    %1450 = vmatprep.subr.mxu0 0.0
    %1451 = vmatpush1.msra.mxu0 %v1232
    %1452 = vmatprep.subr.mxu0 0.0
    %1453 = vmatpush1.msra.mxu0 %v1233
    %1454 = vmatprep.subr.mxu0 0.0
    %1455 = vmatpush1.msra.mxu0 %v1234
    %1456 = vmatprep.subr.mxu0 0.0
    %1457 = vmatpush1.msra.mxu0 %v1235
    %1458 = vmatprep.subr.mxu0 0.0
    %1459 = vmatpush1.msra.mxu0 %v1236
    %1460 = vmatprep.subr.mxu0 0.0
    %1461 = vmatpush1.msra.mxu0 %v1237
    %1462 = vmatprep.subr.mxu0 0.0
    %1463 = vmatpush1.msra.mxu0 %v1238
    %1464 = vmatprep.subr.mxu0 0.0
    %1465 = vmatpush1.msra.mxu0 %v1239
    %1466 = vmatprep.subr.mxu0 0.0
    %1467 = vmatpush1.msra.mxu0 %v1240
    %1468 = vmatprep.subr.mxu0 0.0
    %1469 = vmatpush1.msra.mxu0 %v1241
    %1470 = vmatprep.subr.mxu0 0.0
    %1471 = vmatpush1.msra.mxu0 %v1242
    %1472 = vmatprep.subr.mxu0 0.0
    %1473 = vmatpush1.msra.mxu0 %v1243
    %1474 = vmatprep.subr.mxu0 0.0
    %1475 = vmatpush1.msra.mxu0 %v1244
    %1476 = vmatprep.subr.mxu0 0.0
    %1477 = vmatpush1.msra.mxu0 %v1245
    %1478 = vmatprep.subr.mxu0 0.0
    %1479 = vmatpush1.msra.mxu0 %v1246
    %1480 = vmatprep.subr.mxu0 0.0
    %1481 = vmatpush1.msra.mxu0 %v1247
    %1482 = vmatprep.subr.mxu0 0.0
    %1483 = vmatpush1.msra.mxu0 0.0
    %1484 = vmatprep.subr.mxu0 0.0
    %1485 = vmatpush1.msra.mxu0 0.0
    %1486 = vmatprep.subr.mxu0 0.0
    %1487 = vmatpush1.msra.mxu0 0.0
    %1488 = vmatprep.subr.mxu0 0.0
    %1489 = vmatpush1.msra.mxu0 0.0
    %1490 = vmatprep.subr.mxu0 0.0
    %1491 = vmatpush1.msra.mxu0 0.0
    %1492 = vmatprep.subr.mxu0 0.0
    %1493 = vmatpush1.msra.mxu0 0.0
    %1494 = vmatprep.subr.mxu0 0.0
    %1495 = vmatpush1.msra.mxu0 0.0
    %1496 = vmatprep.subr.mxu0 0.0
    %1497 = vmatpush1.msra.mxu0 0.0
    %1498 = vmatprep.subr.mxu0 0.0
    %1499 = vmatpush1.msra.mxu0 0.0
    %1500 = vmatprep.subr.mxu0 0.0
    %1501 = vmatpush1.msra.mxu0 0.0
    %1502 = vmatprep.subr.mxu0 0.0
    %1503 = vmatpush1.msra.mxu0 0.0
    %1504 = vmatprep.subr.mxu0 0.0
    %1505 = vmatpush1.msra.mxu0 0.0
    %1506 = vmatprep.subr.mxu0 0.0
    %1507 = vmatpush1.msra.mxu0 0.0
    %1508 = vmatprep.subr.mxu0 0.0
    %1509 = vmatpush1.msra.mxu0 0.0
    %1510 = vmatprep.subr.mxu0 0.0
    %1511 = vmatpush1.msra.mxu0 0.0
    %1512 = vmatprep.subr.mxu0 0.0
    %1513 = vmatpush1.msra.mxu0 0.0
    %1514 = vmatprep.mubr.f32.mxu0 0.0
    %1515 = vmatmul.mubr.f32.gmra.mrb[0].mxu0 0.0
    %v1516 = vpop.f32.mrb[0].mxu0
    %v1517 = vadd.f32 0.0, %v1516
    %v1518 = vpop.f32.mrb[0].mxu0
    %1519 = vdwg.mxu0
    %v1520 = vadd.f32 %v1448, %v1517
    %v1521 = vadd.f32 %v1449, %v1517
    %v1522 = vtanh.pop %v1520
    %v1523 = vtanh.pop %v1521
    %1524 = vst [vmem:[#allocation2] sm:$0xff] %v1522
    %1525 = vst [vmem:[%s172] sm:$0xff] %v1523
    %v1526 = vld [vmem:[%s321] sm:$0xff]
    %v1527 = vld [vmem:[%s323] sm:$0xff]
    %1528 = vmatprep.subr.mxu0 0.0
    %1529 = vmatpush1.msra.mxu0 %v1232
    %1530 = vmatprep.subr.mxu0 0.0
    %1531 = vmatpush1.msra.mxu0 %v1233
    %1532 = vmatprep.subr.mxu0 0.0
    %1533 = vmatpush1.msra.mxu0 %v1234
    %1534 = vmatprep.subr.mxu0 0.0
    %1535 = vmatpush1.msra.mxu0 %v1235
    %1536 = vmatprep.subr.mxu0 0.0
    %1537 = vmatpush1.msra.mxu0 %v1236
    %1538 = vmatprep.subr.mxu0 0.0
    %1539 = vmatpush1.msra.mxu0 %v1237
    %1540 = vmatprep.subr.mxu0 0.0
    %1541 = vmatpush1.msra.mxu0 %v1238
    %1542 = vmatprep.subr.mxu0 0.0
    %1543 = vmatpush1.msra.mxu0 %v1239
    %1544 = vmatprep.subr.mxu0 0.0
    %1545 = vmatpush1.msra.mxu0 %v1240
    %1546 = vmatprep.subr.mxu0 0.0
    %1547 = vmatpush1.msra.mxu0 %v1241
    %1548 = vmatprep.subr.mxu0 0.0
    %1549 = vmatpush1.msra.mxu0 %v1242
    %1550 = vmatprep.subr.mxu0 0.0
    %1551 = vmatpush1.msra.mxu0 %v1243
    %1552 = vmatprep.subr.mxu0 0.0
    %1553 = vmatpush1.msra.mxu0 %v1244
    %1554 = vmatprep.subr.mxu0 0.0
    %1555 = vmatpush1.msra.mxu0 %v1245
    %1556 = vmatprep.subr.mxu0 0.0
    %1557 = vmatpush1.msra.mxu0 %v1246
    %1558 = vmatprep.subr.mxu0 0.0
    %1559 = vmatpush1.msra.mxu0 %v1247
    %1560 = vmatprep.subr.mxu0 0.0
    %1561 = vmatpush1.msra.mxu0 0.0
    %1562 = vmatprep.subr.mxu0 0.0
    %1563 = vmatpush1.msra.mxu0 0.0
    %1564 = vmatprep.subr.mxu0 0.0
    %1565 = vmatpush1.msra.mxu0 0.0
    %1566 = vmatprep.subr.mxu0 0.0
    %1567 = vmatpush1.msra.mxu0 0.0
    %1568 = vmatprep.subr.mxu0 0.0
    %1569 = vmatpush1.msra.mxu0 0.0
    %1570 = vmatprep.subr.mxu0 0.0
    %1571 = vmatpush1.msra.mxu0 0.0
    %1572 = vmatprep.subr.mxu0 0.0
    %1573 = vmatpush1.msra.mxu0 0.0
    %1574 = vmatprep.subr.mxu0 0.0
    %1575 = vmatpush1.msra.mxu0 0.0
    %1576 = vmatprep.subr.mxu0 0.0
    %1577 = vmatpush1.msra.mxu0 0.0
    %1578 = vmatprep.subr.mxu0 0.0
    %1579 = vmatpush1.msra.mxu0 0.0
    %1580 = vmatprep.subr.mxu0 0.0
    %1581 = vmatpush1.msra.mxu0 0.0
    %1582 = vmatprep.subr.mxu0 0.0
    %1583 = vmatpush1.msra.mxu0 0.0
    %1584 = vmatprep.subr.mxu0 0.0
    %1585 = vmatpush1.msra.mxu0 0.0
    %1586 = vmatprep.subr.mxu0 0.0
    %1587 = vmatpush1.msra.mxu0 0.0
    %1588 = vmatprep.subr.mxu0 0.0
    %1589 = vmatpush1.msra.mxu0 0.0
    %1590 = vmatprep.subr.mxu0 0.0
    %1591 = vmatpush1.msra.mxu0 0.0
    %1592 = vmatprep.mubr.f32.mxu0 0.0
    %1593 = vmatmul.mubr.f32.gmra.mrb[0].mxu0 %v1522
    %v1594 = vpop.f32.mrb[0].mxu0
    %v1595 = vadd.f32 0.0, %v1594
    %v1596 = vpop.f32.mrb[0].mxu0
    %1597 = vdwg.mxu0
    %v1598 = vadd.f32 %v1526, %v1595
    %1599 = vmatprep.subr.mxu0 0.0
    %1600 = vmatpush1.msra.mxu0 %v1232
    %1601 = vmatprep.subr.mxu0 0.0
    %1602 = vmatpush1.msra.mxu0 %v1233
    %1603 = vmatprep.subr.mxu0 0.0
    %1604 = vmatpush1.msra.mxu0 %v1234
    %1605 = vmatprep.subr.mxu0 0.0
    %1606 = vmatpush1.msra.mxu0 %v1235
    %1607 = vmatprep.subr.mxu0 0.0
    %1608 = vmatpush1.msra.mxu0 %v1236
    %1609 = vmatprep.subr.mxu0 0.0
    %1610 = vmatpush1.msra.mxu0 %v1237
    %1611 = vmatprep.subr.mxu0 0.0
    %1612 = vmatpush1.msra.mxu0 %v1238
    %1613 = vmatprep.subr.mxu0 0.0
    %1614 = vmatpush1.msra.mxu0 %v1239
    %1615 = vmatprep.subr.mxu0 0.0
    %1616 = vmatpush1.msra.mxu0 %v1240
    %1617 = vmatprep.subr.mxu0 0.0
    %1618 = vmatpush1.msra.mxu0 %v1241
    %1619 = vmatprep.subr.mxu0 0.0
    %1620 = vmatpush1.msra.mxu0 %v1242
    %1621 = vmatprep.subr.mxu0 0.0
    %1622 = vmatpush1.msra.mxu0 %v1243
    %1623 = vmatprep.subr.mxu0 0.0
    %1624 = vmatpush1.msra.mxu0 %v1244
    %1625 = vmatprep.subr.mxu0 0.0
    %1626 = vmatpush1.msra.mxu0 %v1245
    %1627 = vmatprep.subr.mxu0 0.0
    %1628 = vmatpush1.msra.mxu0 %v1246
    %1629 = vmatprep.subr.mxu0 0.0
    %1630 = vmatpush1.msra.mxu0 %v1247
    %1631 = vmatprep.subr.mxu0 0.0
    %1632 = vmatpush1.msra.mxu0 0.0
    %1633 = vmatprep.subr.mxu0 0.0
    %1634 = vmatpush1.msra.mxu0 0.0
    %1635 = vmatprep.subr.mxu0 0.0
    %1636 = vmatpush1.msra.mxu0 0.0
    %1637 = vmatprep.subr.mxu0 0.0
    %1638 = vmatpush1.msra.mxu0 0.0
    %1639 = vmatprep.subr.mxu0 0.0
    %1640 = vmatpush1.msra.mxu0 0.0
    %1641 = vmatprep.subr.mxu0 0.0
    %1642 = vmatpush1.msra.mxu0 0.0
    %1643 = vmatprep.subr.mxu0 0.0
    %1644 = vmatpush1.msra.mxu0 0.0
    %1645 = vmatprep.subr.mxu0 0.0
    %1646 = vmatpush1.msra.mxu0 0.0
    %1647 = vmatprep.subr.mxu0 0.0
    %1648 = vmatpush1.msra.mxu0 0.0
    %1649 = vmatprep.subr.mxu0 0.0
    %1650 = vmatpush1.msra.mxu0 0.0
    %1651 = vmatprep.subr.mxu0 0.0
    %1652 = vmatpush1.msra.mxu0 0.0
    %1653 = vmatprep.subr.mxu0 0.0
    %1654 = vmatpush1.msra.mxu0 0.0
    %1655 = vmatprep.subr.mxu0 0.0
    %1656 = vmatpush1.msra.mxu0 0.0
    %1657 = vmatprep.subr.mxu0 0.0
    %1658 = vmatpush1.msra.mxu0 0.0
    %1659 = vmatprep.subr.mxu0 0.0
    %1660 = vmatpush1.msra.mxu0 0.0
    %1661 = vmatprep.subr.mxu0 0.0
    %1662 = vmatpush1.msra.mxu0 0.0
    %1663 = vmatprep.mubr.f32.mxu0 0.0
    %1664 = vmatmul.mubr.f32.gmra.mrb[0].mxu0 %v1523
    %v1665 = vpop.f32.mrb[0].mxu0
    %v1666 = vadd.f32 0.0, %v1665
    %v1667 = vpop.f32.mrb[0].mxu0
    %1668 = vdwg.mxu0
    %v1669 = vadd.f32 %v1527, %v1666
    %v1670 = vtanh.pop %v1598
    %v1671 = vtanh.pop %v1669
    %1672 = vst [vmem:[%s321] sm:$0xff] %v1670
    %1673 = vst [vmem:[%s323] sm:$0xff] %v1671
    %v1674 = vld [vmem:[%s472] sm:$0xff]
    %v1675 = vld [vmem:[%s474] sm:$0xff]
    %1676 = vmatprep.subr.mxu0 0.0
    %1677 = vmatpush1.msra.mxu0 %v1232
    %1678 = vmatprep.subr.mxu0 0.0
    %1679 = vmatpush1.msra.mxu0 %v1233
    %1680 = vmatprep.subr.mxu0 0.0
    %1681 = vmatpush1.msra.mxu0 %v1234
    %1682 = vmatprep.subr.mxu0 0.0
    %1683 = vmatpush1.msra.mxu0 %v1235
    %1684 = vmatprep.subr.mxu0 0.0
    %1685 = vmatpush1.msra.mxu0 %v1236
    %1686 = vmatprep.subr.mxu0 0.0
    %1687 = vmatpush1.msra.mxu0 %v1237
    %1688 = vmatprep.subr.mxu0 0.0
    %1689 = vmatpush1.msra.mxu0 %v1238
    %1690 = vmatprep.subr.mxu0 0.0
    %1691 = vmatpush1.msra.mxu0 %v1239
    %1692 = vmatprep.subr.mxu0 0.0
    %1693 = vmatpush1.msra.mxu0 %v1240
    %1694 = vmatprep.subr.mxu0 0.0
    %1695 = vmatpush1.msra.mxu0 %v1241
    %1696 = vmatprep.subr.mxu0 0.0
    %1697 = vmatpush1.msra.mxu0 %v1242
    %1698 = vmatprep.subr.mxu0 0.0
    %1699 = vmatpush1.msra.mxu0 %v1243
    %1700 = vmatprep.subr.mxu0 0.0
    %1701 = vmatpush1.msra.mxu0 %v1244
    %1702 = vmatprep.subr.mxu0 0.0
    %1703 = vmatpush1.msra.mxu0 %v1245
    %1704 = vmatprep.subr.mxu0 0.0
    %1705 = vmatpush1.msra.mxu0 %v1246
    %1706 = vmatprep.subr.mxu0 0.0
    %1707 = vmatpush1.msra.mxu0 %v1247
    %1708 = vmatprep.subr.mxu0 0.0
    %1709 = vmatpush1.msra.mxu0 0.0
    %1710 = vmatprep.subr.mxu0 0.0
    %1711 = vmatpush1.msra.mxu0 0.0
    %1712 = vmatprep.subr.mxu0 0.0
    %1713 = vmatpush1.msra.mxu0 0.0
    %1714 = vmatprep.subr.mxu0 0.0
    %1715 = vmatpush1.msra.mxu0 0.0
    %1716 = vmatprep.subr.mxu0 0.0
    %1717 = vmatpush1.msra.mxu0 0.0
    %1718 = vmatprep.subr.mxu0 0.0
    %1719 = vmatpush1.msra.mxu0 0.0
    %1720 = vmatprep.subr.mxu0 0.0
    %1721 = vmatpush1.msra.mxu0 0.0
    %1722 = vmatprep.subr.mxu0 0.0
    %1723 = vmatpush1.msra.mxu0 0.0
    %1724 = vmatprep.subr.mxu0 0.0
    %1725 = vmatpush1.msra.mxu0 0.0
    %1726 = vmatprep.subr.mxu0 0.0
    %1727 = vmatpush1.msra.mxu0 0.0
    %1728 = vmatprep.subr.mxu0 0.0
    %1729 = vmatpush1.msra.mxu0 0.0
    %1730 = vmatprep.subr.mxu0 0.0
    %1731 = vmatpush1.msra.mxu0 0.0
    %1732 = vmatprep.subr.mxu0 0.0
    %1733 = vmatpush1.msra.mxu0 0.0
    %1734 = vmatprep.subr.mxu0 0.0
    %1735 = vmatpush1.msra.mxu0 0.0
    %1736 = vmatprep.subr.mxu0 0.0
    %1737 = vmatpush1.msra.mxu0 0.0
    %1738 = vmatprep.subr.mxu0 0.0
    %1739 = vmatpush1.msra.mxu0 0.0
    %1740 = vmatprep.mubr.f32.mxu0 0.0
    %1741 = vmatmul.mubr.f32.gmra.mrb[0].mxu0 %v1670
    %v1742 = vpop.f32.mrb[0].mxu0
    %v1743 = vadd.f32 0.0, %v1742
    %v1744 = vpop.f32.mrb[0].mxu0
    %1745 = vdwg.mxu0
    %v1746 = vadd.f32 %v1674, %v1743
    %1747 = vmatprep.subr.mxu0 0.0
    %1748 = vmatpush1.msra.mxu0 %v1232
    %1749 = vmatprep.subr.mxu0 0.0
    %1750 = vmatpush1.msra.mxu0 %v1233
    %1751 = vmatprep.subr.mxu0 0.0
    %1752 = vmatpush1.msra.mxu0 %v1234
    %1753 = vmatprep.subr.mxu0 0.0
    %1754 = vmatpush1.msra.mxu0 %v1235
    %1755 = vmatprep.subr.mxu0 0.0
    %1756 = vmatpush1.msra.mxu0 %v1236
    %1757 = vmatprep.subr.mxu0 0.0
    %1758 = vmatpush1.msra.mxu0 %v1237
    %1759 = vmatprep.subr.mxu0 0.0
    %1760 = vmatpush1.msra.mxu0 %v1238
    %1761 = vmatprep.subr.mxu0 0.0
    %1762 = vmatpush1.msra.mxu0 %v1239
    %1763 = vmatprep.subr.mxu0 0.0
    %1764 = vmatpush1.msra.mxu0 %v1240
    %1765 = vmatprep.subr.mxu0 0.0
    %1766 = vmatpush1.msra.mxu0 %v1241
    %1767 = vmatprep.subr.mxu0 0.0
    %1768 = vmatpush1.msra.mxu0 %v1242
    %1769 = vmatprep.subr.mxu0 0.0
    %1770 = vmatpush1.msra.mxu0 %v1243
    %1771 = vmatprep.subr.mxu0 0.0
    %1772 = vmatpush1.msra.mxu0 %v1244
    %1773 = vmatprep.subr.mxu0 0.0
    %1774 = vmatpush1.msra.mxu0 %v1245
    %1775 = vmatprep.subr.mxu0 0.0
    %1776 = vmatpush1.msra.mxu0 %v1246
    %1777 = vmatprep.subr.mxu0 0.0
    %1778 = vmatpush1.msra.mxu0 %v1247
    %1779 = vmatprep.subr.mxu0 0.0
    %1780 = vmatpush1.msra.mxu0 0.0
    %1781 = vmatprep.subr.mxu0 0.0
    %1782 = vmatpush1.msra.mxu0 0.0
    %1783 = vmatprep.subr.mxu0 0.0
    %1784 = vmatpush1.msra.mxu0 0.0
    %1785 = vmatprep.subr.mxu0 0.0
    %1786 = vmatpush1.msra.mxu0 0.0
    %1787 = vmatprep.subr.mxu0 0.0
    %1788 = vmatpush1.msra.mxu0 0.0
    %1789 = vmatprep.subr.mxu0 0.0
    %1790 = vmatpush1.msra.mxu0 0.0
    %1791 = vmatprep.subr.mxu0 0.0
    %1792 = vmatpush1.msra.mxu0 0.0
    %1793 = vmatprep.subr.mxu0 0.0
    %1794 = vmatpush1.msra.mxu0 0.0
    %1795 = vmatprep.subr.mxu0 0.0
    %1796 = vmatpush1.msra.mxu0 0.0
    %1797 = vmatprep.subr.mxu0 0.0
    %1798 = vmatpush1.msra.mxu0 0.0
    %1799 = vmatprep.subr.mxu0 0.0
    %1800 = vmatpush1.msra.mxu0 0.0
    %1801 = vmatprep.subr.mxu0 0.0
    %1802 = vmatpush1.msra.mxu0 0.0
    %1803 = vmatprep.subr.mxu0 0.0
    %1804 = vmatpush1.msra.mxu0 0.0
    %1805 = vmatprep.subr.mxu0 0.0
    %1806 = vmatpush1.msra.mxu0 0.0
    %1807 = vmatprep.subr.mxu0 0.0
    %1808 = vmatpush1.msra.mxu0 0.0
    %1809 = vmatprep.subr.mxu0 0.0
    %1810 = vmatpush1.msra.mxu0 0.0
    %1811 = vmatprep.mubr.f32.mxu0 0.0
    %1812 = vmatmul.mubr.f32.gmra.mrb[0].mxu0 %v1671
    %v1813 = vpop.f32.mrb[0].mxu0
    %v1814 = vadd.f32 0.0, %v1813
    %v1815 = vpop.f32.mrb[0].mxu0
    %1816 = vdwg.mxu0
    %v1817 = vadd.f32 %v1675, %v1814
    %v1818 = vtanh.pop %v1746
    %v1819 = vtanh.pop %v1817
    %1820 = vst [vmem:[%s472] sm:$0xff] %v1818
    %1821 = vst [vmem:[%s474] sm:$0xff] %v1819
    %v1822 = vld [vmem:[%s623] sm:$0xff]
    %v1823 = vld [vmem:[%s625] sm:$0xff]
    %1824 = vmatprep.subr.mxu0 0.0
    %1825 = vmatpush1.msra.mxu0 %v1232
    %1826 = vmatprep.subr.mxu0 0.0
    %1827 = vmatpush1.msra.mxu0 %v1233
    %1828 = vmatprep.subr.mxu0 0.0
    %1829 = vmatpush1.msra.mxu0 %v1234
    %1830 = vmatprep.subr.mxu0 0.0
    %1831 = vmatpush1.msra.mxu0 %v1235
    %1832 = vmatprep.subr.mxu0 0.0
    %1833 = vmatpush1.msra.mxu0 %v1236
    %1834 = vmatprep.subr.mxu0 0.0
    %1835 = vmatpush1.msra.mxu0 %v1237
    %1836 = vmatprep.subr.mxu0 0.0
    %1837 = vmatpush1.msra.mxu0 %v1238
    %1838 = vmatprep.subr.mxu0 0.0
    %1839 = vmatpush1.msra.mxu0 %v1239
    %1840 = vmatprep.subr.mxu0 0.0
    %1841 = vmatpush1.msra.mxu0 %v1240
    %1842 = vmatprep.subr.mxu0 0.0
    %1843 = vmatpush1.msra.mxu0 %v1241
    %1844 = vmatprep.subr.mxu0 0.0
    %1845 = vmatpush1.msra.mxu0 %v1242
    %1846 = vmatprep.subr.mxu0 0.0
    %1847 = vmatpush1.msra.mxu0 %v1243
    %1848 = vmatprep.subr.mxu0 0.0
    %1849 = vmatpush1.msra.mxu0 %v1244
    %1850 = vmatprep.subr.mxu0 0.0
    %1851 = vmatpush1.msra.mxu0 %v1245
    %1852 = vmatprep.subr.mxu0 0.0
    %1853 = vmatpush1.msra.mxu0 %v1246
    %1854 = vmatprep.subr.mxu0 0.0
    %1855 = vmatpush1.msra.mxu0 %v1247
    %1856 = vmatprep.subr.mxu0 0.0
    %1857 = vmatpush1.msra.mxu0 0.0
    %1858 = vmatprep.subr.mxu0 0.0
    %1859 = vmatpush1.msra.mxu0 0.0
    %1860 = vmatprep.subr.mxu0 0.0
    %1861 = vmatpush1.msra.mxu0 0.0
    %1862 = vmatprep.subr.mxu0 0.0
    %1863 = vmatpush1.msra.mxu0 0.0
    %1864 = vmatprep.subr.mxu0 0.0
    %1865 = vmatpush1.msra.mxu0 0.0
    %1866 = vmatprep.subr.mxu0 0.0
    %1867 = vmatpush1.msra.mxu0 0.0
    %1868 = vmatprep.subr.mxu0 0.0
    %1869 = vmatpush1.msra.mxu0 0.0
    %1870 = vmatprep.subr.mxu0 0.0
    %1871 = vmatpush1.msra.mxu0 0.0
    %1872 = vmatprep.subr.mxu0 0.0
    %1873 = vmatpush1.msra.mxu0 0.0
    %1874 = vmatprep.subr.mxu0 0.0
    %1875 = vmatpush1.msra.mxu0 0.0
    %1876 = vmatprep.subr.mxu0 0.0
    %1877 = vmatpush1.msra.mxu0 0.0
    %1878 = vmatprep.subr.mxu0 0.0
    %1879 = vmatpush1.msra.mxu0 0.0
    %1880 = vmatprep.subr.mxu0 0.0
    %1881 = vmatpush1.msra.mxu0 0.0
    %1882 = vmatprep.subr.mxu0 0.0
    %1883 = vmatpush1.msra.mxu0 0.0
    %1884 = vmatprep.subr.mxu0 0.0
    %1885 = vmatpush1.msra.mxu0 0.0
    %1886 = vmatprep.subr.mxu0 0.0
    %1887 = vmatpush1.msra.mxu0 0.0
    %1888 = vmatprep.mubr.f32.mxu0 0.0
    %1889 = vmatmul.mubr.f32.gmra.mrb[0].mxu0 %v1818
    %v1890 = vpop.f32.mrb[0].mxu0
    %v1891 = vadd.f32 0.0, %v1890
    %v1892 = vpop.f32.mrb[0].mxu0
    %1893 = vdwg.mxu0
    %v1894 = vadd.f32 %v1822, %v1891
    %1895 = vmatprep.subr.mxu0 0.0
    %1896 = vmatpush1.msra.mxu0 %v1232
    %1897 = vmatprep.subr.mxu0 0.0
    %1898 = vmatpush1.msra.mxu0 %v1233
    %1899 = vmatprep.subr.mxu0 0.0
    %1900 = vmatpush1.msra.mxu0 %v1234
    %1901 = vmatprep.subr.mxu0 0.0
    %1902 = vmatpush1.msra.mxu0 %v1235
    %1903 = vmatprep.subr.mxu0 0.0
    %1904 = vmatpush1.msra.mxu0 %v1236
    %1905 = vmatprep.subr.mxu0 0.0
    %1906 = vmatpush1.msra.mxu0 %v1237
    %1907 = vmatprep.subr.mxu0 0.0
    %1908 = vmatpush1.msra.mxu0 %v1238
    %1909 = vmatprep.subr.mxu0 0.0
    %1910 = vmatpush1.msra.mxu0 %v1239
    %1911 = vmatprep.subr.mxu0 0.0
    %1912 = vmatpush1.msra.mxu0 %v1240
    %1913 = vmatprep.subr.mxu0 0.0
    %1914 = vmatpush1.msra.mxu0 %v1241
    %1915 = vmatprep.subr.mxu0 0.0
    %1916 = vmatpush1.msra.mxu0 %v1242
    %1917 = vmatprep.subr.mxu0 0.0
    %1918 = vmatpush1.msra.mxu0 %v1243
    %1919 = vmatprep.subr.mxu0 0.0
    %1920 = vmatpush1.msra.mxu0 %v1244
    %1921 = vmatprep.subr.mxu0 0.0
    %1922 = vmatpush1.msra.mxu0 %v1245
    %1923 = vmatprep.subr.mxu0 0.0
    %1924 = vmatpush1.msra.mxu0 %v1246
    %1925 = vmatprep.subr.mxu0 0.0
    %1926 = vmatpush1.msra.mxu0 %v1247
    %1927 = vmatprep.subr.mxu0 0.0
    %1928 = vmatpush1.msra.mxu0 0.0
    %1929 = vmatprep.subr.mxu0 0.0
    %1930 = vmatpush1.msra.mxu0 0.0
    %1931 = vmatprep.subr.mxu0 0.0
    %1932 = vmatpush1.msra.mxu0 0.0
    %1933 = vmatprep.subr.mxu0 0.0
    %1934 = vmatpush1.msra.mxu0 0.0
    %1935 = vmatprep.subr.mxu0 0.0
    %1936 = vmatpush1.msra.mxu0 0.0
    %1937 = vmatprep.subr.mxu0 0.0
    %1938 = vmatpush1.msra.mxu0 0.0
    %1939 = vmatprep.subr.mxu0 0.0
    %1940 = vmatpush1.msra.mxu0 0.0
    %1941 = vmatprep.subr.mxu0 0.0
    %1942 = vmatpush1.msra.mxu0 0.0
    %1943 = vmatprep.subr.mxu0 0.0
    %1944 = vmatpush1.msra.mxu0 0.0
    %1945 = vmatprep.subr.mxu0 0.0
    %1946 = vmatpush1.msra.mxu0 0.0
    %1947 = vmatprep.subr.mxu0 0.0
    %1948 = vmatpush1.msra.mxu0 0.0
    %1949 = vmatprep.subr.mxu0 0.0
    %1950 = vmatpush1.msra.mxu0 0.0
    %1951 = vmatprep.subr.mxu0 0.0
    %1952 = vmatpush1.msra.mxu0 0.0
    %1953 = vmatprep.subr.mxu0 0.0
    %1954 = vmatpush1.msra.mxu0 0.0
    %1955 = vmatprep.subr.mxu0 0.0
    %1956 = vmatpush1.msra.mxu0 0.0
    %1957 = vmatprep.subr.mxu0 0.0
    %1958 = vmatpush1.msra.mxu0 0.0
    %1959 = vmatprep.mubr.f32.mxu0 0.0
    %1960 = vmatmul.mubr.f32.gmra.mrb[0].mxu0 %v1819
    %v1961 = vpop.f32.mrb[0].mxu0
    %v1962 = vadd.f32 0.0, %v1961
    %v1963 = vpop.f32.mrb[0].mxu0
    %1964 = vdwg.mxu0
    %v1965 = vadd.f32 %v1823, %v1962
    %v1966 = vtanh.pop %v1894
    %v1967 = vtanh.pop %v1965
    %1968 = vst [vmem:[%s623] sm:$0xff] %v1966
    %1969 = vst [vmem:[%s625] sm:$0xff] %v1967
    %v1970 = vld [vmem:[%s774] sm:$0xff]
    %v1971 = vld [vmem:[%s776] sm:$0xff]
    %1972 = vmatprep.subr.mxu0 0.0
    %1973 = vmatpush1.msra.mxu0 %v1232
    %1974 = vmatprep.subr.mxu0 0.0
    %1975 = vmatpush1.msra.mxu0 %v1233
    %1976 = vmatprep.subr.mxu0 0.0
    %1977 = vmatpush1.msra.mxu0 %v1234
    %1978 = vmatprep.subr.mxu0 0.0
    %1979 = vmatpush1.msra.mxu0 %v1235
    %1980 = vmatprep.subr.mxu0 0.0
    %1981 = vmatpush1.msra.mxu0 %v1236
    %1982 = vmatprep.subr.mxu0 0.0
    %1983 = vmatpush1.msra.mxu0 %v1237
    %1984 = vmatprep.subr.mxu0 0.0
    %1985 = vmatpush1.msra.mxu0 %v1238
    %1986 = vmatprep.subr.mxu0 0.0
    %1987 = vmatpush1.msra.mxu0 %v1239
    %1988 = vmatprep.subr.mxu0 0.0
    %1989 = vmatpush1.msra.mxu0 %v1240
    %1990 = vmatprep.subr.mxu0 0.0
    %1991 = vmatpush1.msra.mxu0 %v1241
    %1992 = vmatprep.subr.mxu0 0.0
    %1993 = vmatpush1.msra.mxu0 %v1242
    %1994 = vmatprep.subr.mxu0 0.0
    %1995 = vmatpush1.msra.mxu0 %v1243
    %1996 = vmatprep.subr.mxu0 0.0
    %1997 = vmatpush1.msra.mxu0 %v1244
    %1998 = vmatprep.subr.mxu0 0.0
    %1999 = vmatpush1.msra.mxu0 %v1245
    %2000 = vmatprep.subr.mxu0 0.0
    %2001 = vmatpush1.msra.mxu0 %v1246
    %2002 = vmatprep.subr.mxu0 0.0
    %2003 = vmatpush1.msra.mxu0 %v1247
    %2004 = vmatprep.subr.mxu0 0.0
    %2005 = vmatpush1.msra.mxu0 0.0
    %2006 = vmatprep.subr.mxu0 0.0
    %2007 = vmatpush1.msra.mxu0 0.0
    %2008 = vmatprep.subr.mxu0 0.0
    %2009 = vmatpush1.msra.mxu0 0.0
    %2010 = vmatprep.subr.mxu0 0.0
    %2011 = vmatpush1.msra.mxu0 0.0
    %2012 = vmatprep.subr.mxu0 0.0
    %2013 = vmatpush1.msra.mxu0 0.0
    %2014 = vmatprep.subr.mxu0 0.0
    %2015 = vmatpush1.msra.mxu0 0.0
    %2016 = vmatprep.subr.mxu0 0.0
    %2017 = vmatpush1.msra.mxu0 0.0
    %2018 = vmatprep.subr.mxu0 0.0
    %2019 = vmatpush1.msra.mxu0 0.0
    %2020 = vmatprep.subr.mxu0 0.0
    %2021 = vmatpush1.msra.mxu0 0.0
    %2022 = vmatprep.subr.mxu0 0.0
    %2023 = vmatpush1.msra.mxu0 0.0
    %2024 = vmatprep.subr.mxu0 0.0
    %2025 = vmatpush1.msra.mxu0 0.0
    %2026 = vmatprep.subr.mxu0 0.0
    %2027 = vmatpush1.msra.mxu0 0.0
    %2028 = vmatprep.subr.mxu0 0.0
    %2029 = vmatpush1.msra.mxu0 0.0
    %2030 = vmatprep.subr.mxu0 0.0
    %2031 = vmatpush1.msra.mxu0 0.0
    %2032 = vmatprep.subr.mxu0 0.0
    %2033 = vmatpush1.msra.mxu0 0.0
    %2034 = vmatprep.subr.mxu0 0.0
    %2035 = vmatpush1.msra.mxu0 0.0
    %2036 = vmatprep.mubr.f32.mxu0 0.0
    %2037 = vmatmul.mubr.f32.gmra.mrb[0].mxu0 %v1966
    %v2038 = vpop.f32.mrb[0].mxu0
    %v2039 = vadd.f32 0.0, %v2038
    %v2040 = vpop.f32.mrb[0].mxu0
    %2041 = vdwg.mxu0
    %v2042 = vadd.f32 %v1970, %v2039
    %2043 = vmatprep.subr.mxu0 0.0
    %2044 = vmatpush1.msra.mxu0 %v1232
    %2045 = vmatprep.subr.mxu0 0.0
    %2046 = vmatpush1.msra.mxu0 %v1233
    %2047 = vmatprep.subr.mxu0 0.0
    %2048 = vmatpush1.msra.mxu0 %v1234
    %2049 = vmatprep.subr.mxu0 0.0
    %2050 = vmatpush1.msra.mxu0 %v1235
    %2051 = vmatprep.subr.mxu0 0.0
    %2052 = vmatpush1.msra.mxu0 %v1236
    %2053 = vmatprep.subr.mxu0 0.0
    %2054 = vmatpush1.msra.mxu0 %v1237
    %2055 = vmatprep.subr.mxu0 0.0
    %2056 = vmatpush1.msra.mxu0 %v1238
    %2057 = vmatprep.subr.mxu0 0.0
    %2058 = vmatpush1.msra.mxu0 %v1239
    %2059 = vmatprep.subr.mxu0 0.0
    %2060 = vmatpush1.msra.mxu0 %v1240
    %2061 = vmatprep.subr.mxu0 0.0
    %2062 = vmatpush1.msra.mxu0 %v1241
    %2063 = vmatprep.subr.mxu0 0.0
    %2064 = vmatpush1.msra.mxu0 %v1242
    %2065 = vmatprep.subr.mxu0 0.0
    %2066 = vmatpush1.msra.mxu0 %v1243
    %2067 = vmatprep.subr.mxu0 0.0
    %2068 = vmatpush1.msra.mxu0 %v1244
    %2069 = vmatprep.subr.mxu0 0.0
    %2070 = vmatpush1.msra.mxu0 %v1245
    %2071 = vmatprep.subr.mxu0 0.0
    %2072 = vmatpush1.msra.mxu0 %v1246
    %2073 = vmatprep.subr.mxu0 0.0
    %2074 = vmatpush1.msra.mxu0 %v1247
    %2075 = vmatprep.subr.mxu0 0.0
    %2076 = vmatpush1.msra.mxu0 0.0
    %2077 = vmatprep.subr.mxu0 0.0
    %2078 = vmatpush1.msra.mxu0 0.0
    %2079 = vmatprep.subr.mxu0 0.0
    %2080 = vmatpush1.msra.mxu0 0.0
    %2081 = vmatprep.subr.mxu0 0.0
    %2082 = vmatpush1.msra.mxu0 0.0
    %2083 = vmatprep.subr.mxu0 0.0
    %2084 = vmatpush1.msra.mxu0 0.0
    %2085 = vmatprep.subr.mxu0 0.0
    %2086 = vmatpush1.msra.mxu0 0.0
    %2087 = vmatprep.subr.mxu0 0.0
    %2088 = vmatpush1.msra.mxu0 0.0
    %2089 = vmatprep.subr.mxu0 0.0
    %2090 = vmatpush1.msra.mxu0 0.0
    %2091 = vmatprep.subr.mxu0 0.0
    %2092 = vmatpush1.msra.mxu0 0.0
    %2093 = vmatprep.subr.mxu0 0.0
    %2094 = vmatpush1.msra.mxu0 0.0
    %2095 = vmatprep.subr.mxu0 0.0
    %2096 = vmatpush1.msra.mxu0 0.0
    %2097 = vmatprep.subr.mxu0 0.0
    %2098 = vmatpush1.msra.mxu0 0.0
    %2099 = vmatprep.subr.mxu0 0.0
    %2100 = vmatpush1.msra.mxu0 0.0
    %2101 = vmatprep.subr.mxu0 0.0
    %2102 = vmatpush1.msra.mxu0 0.0
    %2103 = vmatprep.subr.mxu0 0.0
    %2104 = vmatpush1.msra.mxu0 0.0
    %2105 = vmatprep.subr.mxu0 0.0
    %2106 = vmatpush1.msra.mxu0 0.0
    %2107 = vmatprep.mubr.f32.mxu0 0.0
    %2108 = vmatmul.mubr.f32.gmra.mrb[0].mxu0 %v1967
    %v2109 = vpop.f32.mrb[0].mxu0
    %v2110 = vadd.f32 0.0, %v2109
    %v2111 = vpop.f32.mrb[0].mxu0
    %2112 = vdwg.mxu0
    %v2113 = vadd.f32 %v1971, %v2110
    %v2114 = vtanh.pop %v2042
    %v2115 = vtanh.pop %v2113
    %2116 = vst [vmem:[%s774] sm:$0xff] %v2114
    %2117 = vst [vmem:[%s776] sm:$0xff] %v2115
    %v2118 = vld [vmem:[%s925] sm:$0xff]
    %v2119 = vld [vmem:[%s927] sm:$0xff]
    %2120 = vmatprep.subr.mxu0 0.0
    %2121 = vmatpush1.msra.mxu0 %v1232
    %2122 = vmatprep.subr.mxu0 0.0
    %2123 = vmatpush1.msra.mxu0 %v1233
    %2124 = vmatprep.subr.mxu0 0.0
    %2125 = vmatpush1.msra.mxu0 %v1234
    %2126 = vmatprep.subr.mxu0 0.0
    %2127 = vmatpush1.msra.mxu0 %v1235
    %2128 = vmatprep.subr.mxu0 0.0
    %2129 = vmatpush1.msra.mxu0 %v1236
    %2130 = vmatprep.subr.mxu0 0.0
    %2131 = vmatpush1.msra.mxu0 %v1237
    %2132 = vmatprep.subr.mxu0 0.0
    %2133 = vmatpush1.msra.mxu0 %v1238
    %2134 = vmatprep.subr.mxu0 0.0
    %2135 = vmatpush1.msra.mxu0 %v1239
    %2136 = vmatprep.subr.mxu0 0.0
    %2137 = vmatpush1.msra.mxu0 %v1240
    %2138 = vmatprep.subr.mxu0 0.0
    %2139 = vmatpush1.msra.mxu0 %v1241
    %2140 = vmatprep.subr.mxu0 0.0
    %2141 = vmatpush1.msra.mxu0 %v1242
    %2142 = vmatprep.subr.mxu0 0.0
    %2143 = vmatpush1.msra.mxu0 %v1243
    %2144 = vmatprep.subr.mxu0 0.0
    %2145 = vmatpush1.msra.mxu0 %v1244
    %2146 = vmatprep.subr.mxu0 0.0
    %2147 = vmatpush1.msra.mxu0 %v1245
    %2148 = vmatprep.subr.mxu0 0.0
    %2149 = vmatpush1.msra.mxu0 %v1246
    %2150 = vmatprep.subr.mxu0 0.0
    %2151 = vmatpush1.msra.mxu0 %v1247
    %2152 = vmatprep.subr.mxu0 0.0
    %2153 = vmatpush1.msra.mxu0 0.0
    %2154 = vmatprep.subr.mxu0 0.0
    %2155 = vmatpush1.msra.mxu0 0.0
    %2156 = vmatprep.subr.mxu0 0.0
    %2157 = vmatpush1.msra.mxu0 0.0
    %2158 = vmatprep.subr.mxu0 0.0
    %2159 = vmatpush1.msra.mxu0 0.0
    %2160 = vmatprep.subr.mxu0 0.0
    %2161 = vmatpush1.msra.mxu0 0.0
    %2162 = vmatprep.subr.mxu0 0.0
    %2163 = vmatpush1.msra.mxu0 0.0
    %2164 = vmatprep.subr.mxu0 0.0
    %2165 = vmatpush1.msra.mxu0 0.0
    %2166 = vmatprep.subr.mxu0 0.0
    %2167 = vmatpush1.msra.mxu0 0.0
    %2168 = vmatprep.subr.mxu0 0.0
    %2169 = vmatpush1.msra.mxu0 0.0
    %2170 = vmatprep.subr.mxu0 0.0
    %2171 = vmatpush1.msra.mxu0 0.0
    %2172 = vmatprep.subr.mxu0 0.0
    %2173 = vmatpush1.msra.mxu0 0.0
    %2174 = vmatprep.subr.mxu0 0.0
    %2175 = vmatpush1.msra.mxu0 0.0
    %2176 = vmatprep.subr.mxu0 0.0
    %2177 = vmatpush1.msra.mxu0 0.0
    %2178 = vmatprep.subr.mxu0 0.0
    %2179 = vmatpush1.msra.mxu0 0.0
    %2180 = vmatprep.subr.mxu0 0.0
    %2181 = vmatpush1.msra.mxu0 0.0
    %2182 = vmatprep.subr.mxu0 0.0
    %2183 = vmatpush1.msra.mxu0 0.0
    %2184 = vmatprep.mubr.f32.mxu0 0.0
    %2185 = vmatmul.mubr.f32.gmra.mrb[0].mxu0 %v2114
    %v2186 = vpop.f32.mrb[0].mxu0
    %v2187 = vadd.f32 0.0, %v2186
    %v2188 = vpop.f32.mrb[0].mxu0
    %2189 = vdwg.mxu0
    %v2190 = vadd.f32 %v2118, %v2187
    %2191 = vmatprep.subr.mxu0 0.0
    %2192 = vmatpush1.msra.mxu0 %v1232
    %2193 = vmatprep.subr.mxu0 0.0
    %2194 = vmatpush1.msra.mxu0 %v1233
    %2195 = vmatprep.subr.mxu0 0.0
    %2196 = vmatpush1.msra.mxu0 %v1234
    %2197 = vmatprep.subr.mxu0 0.0
    %2198 = vmatpush1.msra.mxu0 %v1235
    %2199 = vmatprep.subr.mxu0 0.0
    %2200 = vmatpush1.msra.mxu0 %v1236
    %2201 = vmatprep.subr.mxu0 0.0
    %2202 = vmatpush1.msra.mxu0 %v1237
    %2203 = vmatprep.subr.mxu0 0.0
    %2204 = vmatpush1.msra.mxu0 %v1238
    %2205 = vmatprep.subr.mxu0 0.0
    %2206 = vmatpush1.msra.mxu0 %v1239
    %2207 = vmatprep.subr.mxu0 0.0
    %2208 = vmatpush1.msra.mxu0 %v1240
    %2209 = vmatprep.subr.mxu0 0.0
    %2210 = vmatpush1.msra.mxu0 %v1241
    %2211 = vmatprep.subr.mxu0 0.0
    %2212 = vmatpush1.msra.mxu0 %v1242
    %2213 = vmatprep.subr.mxu0 0.0
    %2214 = vmatpush1.msra.mxu0 %v1243
    %2215 = vmatprep.subr.mxu0 0.0
    %2216 = vmatpush1.msra.mxu0 %v1244
    %2217 = vmatprep.subr.mxu0 0.0
    %2218 = vmatpush1.msra.mxu0 %v1245
    %2219 = vmatprep.subr.mxu0 0.0
    %2220 = vmatpush1.msra.mxu0 %v1246
    %2221 = vmatprep.subr.mxu0 0.0
    %2222 = vmatpush1.msra.mxu0 %v1247
    %2223 = vmatprep.subr.mxu0 0.0
    %2224 = vmatpush1.msra.mxu0 0.0
    %2225 = vmatprep.subr.mxu0 0.0
    %2226 = vmatpush1.msra.mxu0 0.0
    %2227 = vmatprep.subr.mxu0 0.0
    %2228 = vmatpush1.msra.mxu0 0.0
    %2229 = vmatprep.subr.mxu0 0.0
    %2230 = vmatpush1.msra.mxu0 0.0
    %2231 = vmatprep.subr.mxu0 0.0
    %2232 = vmatpush1.msra.mxu0 0.0
    %2233 = vmatprep.subr.mxu0 0.0
    %2234 = vmatpush1.msra.mxu0 0.0
    %2235 = vmatprep.subr.mxu0 0.0
    %2236 = vmatpush1.msra.mxu0 0.0
    %2237 = vmatprep.subr.mxu0 0.0
    %2238 = vmatpush1.msra.mxu0 0.0
    %2239 = vmatprep.subr.mxu0 0.0
    %2240 = vmatpush1.msra.mxu0 0.0
    %2241 = vmatprep.subr.mxu0 0.0
    %2242 = vmatpush1.msra.mxu0 0.0
    %2243 = vmatprep.subr.mxu0 0.0
    %2244 = vmatpush1.msra.mxu0 0.0
    %2245 = vmatprep.subr.mxu0 0.0
    %2246 = vmatpush1.msra.mxu0 0.0
    %2247 = vmatprep.subr.mxu0 0.0
    %2248 = vmatpush1.msra.mxu0 0.0
    %2249 = vmatprep.subr.mxu0 0.0
    %2250 = vmatpush1.msra.mxu0 0.0
    %2251 = vmatprep.subr.mxu0 0.0
    %2252 = vmatpush1.msra.mxu0 0.0
    %2253 = vmatprep.subr.mxu0 0.0
    %2254 = vmatpush1.msra.mxu0 0.0
    %2255 = vmatprep.mubr.f32.mxu0 0.0
    %2256 = vmatmul.mubr.f32.gmra.mrb[0].mxu0 %v2115
    %v2257 = vpop.f32.mrb[0].mxu0
    %v2258 = vadd.f32 0.0, %v2257
    %v2259 = vpop.f32.mrb[0].mxu0
    %2260 = vdwg.mxu0
    %v2261 = vadd.f32 %v2119, %v2258
    %v2262 = vtanh.pop %v2190
    %v2263 = vtanh.pop %v2261
    %2264 = vst [vmem:[%s925] sm:$0xff] %v2262
    %2265 = vst [vmem:[%s927] sm:$0xff] %v2263
    %v2266 = vld [vmem:[%s1076] sm:$0xff]
    %v2267 = vld [vmem:[%s1078] sm:$0xff]
    %2268 = vmatprep.subr.mxu0 0.0
    %2269 = vmatpush1.msra.mxu0 %v1232
    %2270 = vmatprep.subr.mxu0 0.0
    %2271 = vmatpush1.msra.mxu0 %v1233
    %2272 = vmatprep.subr.mxu0 0.0
    %2273 = vmatpush1.msra.mxu0 %v1234
    %2274 = vmatprep.subr.mxu0 0.0
    %2275 = vmatpush1.msra.mxu0 %v1235
    %2276 = vmatprep.subr.mxu0 0.0
    %2277 = vmatpush1.msra.mxu0 %v1236
    %2278 = vmatprep.subr.mxu0 0.0
    %2279 = vmatpush1.msra.mxu0 %v1237
    %2280 = vmatprep.subr.mxu0 0.0
    %2281 = vmatpush1.msra.mxu0 %v1238
    %2282 = vmatprep.subr.mxu0 0.0
    %2283 = vmatpush1.msra.mxu0 %v1239
    %2284 = vmatprep.subr.mxu0 0.0
    %2285 = vmatpush1.msra.mxu0 %v1240
    %2286 = vmatprep.subr.mxu0 0.0
    %2287 = vmatpush1.msra.mxu0 %v1241
    %2288 = vmatprep.subr.mxu0 0.0
    %2289 = vmatpush1.msra.mxu0 %v1242
    %2290 = vmatprep.subr.mxu0 0.0
    %2291 = vmatpush1.msra.mxu0 %v1243
    %2292 = vmatprep.subr.mxu0 0.0
    %2293 = vmatpush1.msra.mxu0 %v1244
    %2294 = vmatprep.subr.mxu0 0.0
    %2295 = vmatpush1.msra.mxu0 %v1245
    %2296 = vmatprep.subr.mxu0 0.0
    %2297 = vmatpush1.msra.mxu0 %v1246
    %2298 = vmatprep.subr.mxu0 0.0
    %2299 = vmatpush1.msra.mxu0 %v1247
    %2300 = vmatprep.subr.mxu0 0.0
    %2301 = vmatpush1.msra.mxu0 0.0
    %2302 = vmatprep.subr.mxu0 0.0
    %2303 = vmatpush1.msra.mxu0 0.0
    %2304 = vmatprep.subr.mxu0 0.0
    %2305 = vmatpush1.msra.mxu0 0.0
    %2306 = vmatprep.subr.mxu0 0.0
    %2307 = vmatpush1.msra.mxu0 0.0
    %2308 = vmatprep.subr.mxu0 0.0
    %2309 = vmatpush1.msra.mxu0 0.0
    %2310 = vmatprep.subr.mxu0 0.0
    %2311 = vmatpush1.msra.mxu0 0.0
    %2312 = vmatprep.subr.mxu0 0.0
    %2313 = vmatpush1.msra.mxu0 0.0
    %2314 = vmatprep.subr.mxu0 0.0
    %2315 = vmatpush1.msra.mxu0 0.0
    %2316 = vmatprep.subr.mxu0 0.0
    %2317 = vmatpush1.msra.mxu0 0.0
    %2318 = vmatprep.subr.mxu0 0.0
    %2319 = vmatpush1.msra.mxu0 0.0
    %2320 = vmatprep.subr.mxu0 0.0
    %2321 = vmatpush1.msra.mxu0 0.0
    %2322 = vmatprep.subr.mxu0 0.0
    %2323 = vmatpush1.msra.mxu0 0.0
    %2324 = vmatprep.subr.mxu0 0.0
    %2325 = vmatpush1.msra.mxu0 0.0
    %2326 = vmatprep.subr.mxu0 0.0
    %2327 = vmatpush1.msra.mxu0 0.0
    %2328 = vmatprep.subr.mxu0 0.0
    %2329 = vmatpush1.msra.mxu0 0.0
    %2330 = vmatprep.subr.mxu0 0.0
    %2331 = vmatpush1.msra.mxu0 0.0
    %2332 = vmatprep.mubr.f32.mxu0 0.0
    %2333 = vmatmul.mubr.f32.gmra.mrb[0].mxu0 %v2262
    %v2334 = vpop.f32.mrb[0].mxu0
    %v2335 = vadd.f32 0.0, %v2334
    %v2336 = vpop.f32.mrb[0].mxu0
    %2337 = vdwg.mxu0
    %v2338 = vadd.f32 %v2266, %v2335
    %2339 = vmatprep.subr.mxu0 0.0
    %2340 = vmatpush1.msra.mxu0 %v1232
    %2341 = vmatprep.subr.mxu0 0.0
    %2342 = vmatpush1.msra.mxu0 %v1233
    %2343 = vmatprep.subr.mxu0 0.0
    %2344 = vmatpush1.msra.mxu0 %v1234
    %2345 = vmatprep.subr.mxu0 0.0
    %2346 = vmatpush1.msra.mxu0 %v1235
    %2347 = vmatprep.subr.mxu0 0.0
    %2348 = vmatpush1.msra.mxu0 %v1236
    %2349 = vmatprep.subr.mxu0 0.0
    %2350 = vmatpush1.msra.mxu0 %v1237
    %2351 = vmatprep.subr.mxu0 0.0
    %2352 = vmatpush1.msra.mxu0 %v1238
    %2353 = vmatprep.subr.mxu0 0.0
    %2354 = vmatpush1.msra.mxu0 %v1239
    %2355 = vmatprep.subr.mxu0 0.0
    %2356 = vmatpush1.msra.mxu0 %v1240
    %2357 = vmatprep.subr.mxu0 0.0
    %2358 = vmatpush1.msra.mxu0 %v1241
    %2359 = vmatprep.subr.mxu0 0.0
    %2360 = vmatpush1.msra.mxu0 %v1242
    %2361 = vmatprep.subr.mxu0 0.0
    %2362 = vmatpush1.msra.mxu0 %v1243
    %2363 = vmatprep.subr.mxu0 0.0
    %2364 = vmatpush1.msra.mxu0 %v1244
    %2365 = vmatprep.subr.mxu0 0.0
    %2366 = vmatpush1.msra.mxu0 %v1245
    %2367 = vmatprep.subr.mxu0 0.0
    %2368 = vmatpush1.msra.mxu0 %v1246
    %2369 = vmatprep.subr.mxu0 0.0
    %2370 = vmatpush1.msra.mxu0 %v1247
    %2371 = vmatprep.subr.mxu0 0.0
    %2372 = vmatpush1.msra.mxu0 0.0
    %2373 = vmatprep.subr.mxu0 0.0
    %2374 = vmatpush1.msra.mxu0 0.0
    %2375 = vmatprep.subr.mxu0 0.0
    %2376 = vmatpush1.msra.mxu0 0.0
    %2377 = vmatprep.subr.mxu0 0.0
    %2378 = vmatpush1.msra.mxu0 0.0
    %2379 = vmatprep.subr.mxu0 0.0
    %2380 = vmatpush1.msra.mxu0 0.0
    %2381 = vmatprep.subr.mxu0 0.0
    %2382 = vmatpush1.msra.mxu0 0.0
    %2383 = vmatprep.subr.mxu0 0.0
    %2384 = vmatpush1.msra.mxu0 0.0
    %2385 = vmatprep.subr.mxu0 0.0
    %2386 = vmatpush1.msra.mxu0 0.0
    %2387 = vmatprep.subr.mxu0 0.0
    %2388 = vmatpush1.msra.mxu0 0.0
    %2389 = vmatprep.subr.mxu0 0.0
    %2390 = vmatpush1.msra.mxu0 0.0
    %2391 = vmatprep.subr.mxu0 0.0
    %2392 = vmatpush1.msra.mxu0 0.0
    %2393 = vmatprep.subr.mxu0 0.0
    %2394 = vmatpush1.msra.mxu0 0.0
    %2395 = vmatprep.subr.mxu0 0.0
    %2396 = vmatpush1.msra.mxu0 0.0
    %2397 = vmatprep.subr.mxu0 0.0
    %2398 = vmatpush1.msra.mxu0 0.0
    %2399 = vmatprep.subr.mxu0 0.0
    %2400 = vmatpush1.msra.mxu0 0.0
    %2401 = vmatprep.subr.mxu0 0.0
    %2402 = vmatpush1.msra.mxu0 0.0
    %2403 = vmatprep.mubr.f32.mxu0 0.0
    %2404 = vmatmul.mubr.f32.gmra.mrb[0].mxu0 %v2263
    %v2405 = vpop.f32.mrb[0].mxu0
    %v2406 = vadd.f32 0.0, %v2405
    %v2407 = vpop.f32.mrb[0].mxu0
    %2408 = vdwg.mxu0
    %v2409 = vadd.f32 %v2267, %v2406
    %v2410 = vtanh.pop %v2338
    %v2411 = vtanh.pop %v2409
    %2412 = vst [vmem:[%s1076] sm:$0xff] %v2410
    %2413 = vst [vmem:[%s1078] sm:$0xff] %v2411
    %v2414 = vld [vmem:[%s1227] sm:$0xff]
    %v2415 = vld [vmem:[%s1229] sm:$0xff]
    %2416 = vmatprep.subr.mxu0 0.0
    %2417 = vmatpush1.msra.mxu0 %v1232
    %2418 = vmatprep.subr.mxu0 0.0
    %2419 = vmatpush1.msra.mxu0 %v1233
    %2420 = vmatprep.subr.mxu0 0.0
    %2421 = vmatpush1.msra.mxu0 %v1234
    %2422 = vmatprep.subr.mxu0 0.0
    %2423 = vmatpush1.msra.mxu0 %v1235
    %2424 = vmatprep.subr.mxu0 0.0
    %2425 = vmatpush1.msra.mxu0 %v1236
    %2426 = vmatprep.subr.mxu0 0.0
    %2427 = vmatpush1.msra.mxu0 %v1237
    %2428 = vmatprep.subr.mxu0 0.0
    %2429 = vmatpush1.msra.mxu0 %v1238
    %2430 = vmatprep.subr.mxu0 0.0
    %2431 = vmatpush1.msra.mxu0 %v1239
    %2432 = vmatprep.subr.mxu0 0.0
    %2433 = vmatpush1.msra.mxu0 %v1240
    %2434 = vmatprep.subr.mxu0 0.0
    %2435 = vmatpush1.msra.mxu0 %v1241
    %2436 = vmatprep.subr.mxu0 0.0
    %2437 = vmatpush1.msra.mxu0 %v1242
    %2438 = vmatprep.subr.mxu0 0.0
    %2439 = vmatpush1.msra.mxu0 %v1243
    %2440 = vmatprep.subr.mxu0 0.0
    %2441 = vmatpush1.msra.mxu0 %v1244
    %2442 = vmatprep.subr.mxu0 0.0
    %2443 = vmatpush1.msra.mxu0 %v1245
    %2444 = vmatprep.subr.mxu0 0.0
    %2445 = vmatpush1.msra.mxu0 %v1246
    %2446 = vmatprep.subr.mxu0 0.0
    %2447 = vmatpush1.msra.mxu0 %v1247
    %2448 = vmatprep.subr.mxu0 0.0
    %2449 = vmatpush1.msra.mxu0 0.0
    %2450 = vmatprep.subr.mxu0 0.0
    %2451 = vmatpush1.msra.mxu0 0.0
    %2452 = vmatprep.subr.mxu0 0.0
    %2453 = vmatpush1.msra.mxu0 0.0
    %2454 = vmatprep.subr.mxu0 0.0
    %2455 = vmatpush1.msra.mxu0 0.0
    %2456 = vmatprep.subr.mxu0 0.0
    %2457 = vmatpush1.msra.mxu0 0.0
    %2458 = vmatprep.subr.mxu0 0.0
    %2459 = vmatpush1.msra.mxu0 0.0
    %2460 = vmatprep.subr.mxu0 0.0
    %2461 = vmatpush1.msra.mxu0 0.0
    %2462 = vmatprep.subr.mxu0 0.0
    %2463 = vmatpush1.msra.mxu0 0.0
    %2464 = vmatprep.subr.mxu0 0.0
    %2465 = vmatpush1.msra.mxu0 0.0
    %2466 = vmatprep.subr.mxu0 0.0
    %2467 = vmatpush1.msra.mxu0 0.0
    %2468 = vmatprep.subr.mxu0 0.0
    %2469 = vmatpush1.msra.mxu0 0.0
    %2470 = vmatprep.subr.mxu0 0.0
    %2471 = vmatpush1.msra.mxu0 0.0
    %2472 = vmatprep.subr.mxu0 0.0
    %2473 = vmatpush1.msra.mxu0 0.0
    %2474 = vmatprep.subr.mxu0 0.0
    %2475 = vmatpush1.msra.mxu0 0.0
    %2476 = vmatprep.subr.mxu0 0.0
    %2477 = vmatpush1.msra.mxu0 0.0
    %2478 = vmatprep.subr.mxu0 0.0
    %2479 = vmatpush1.msra.mxu0 0.0
    %2480 = vmatprep.mubr.f32.mxu0 0.0
    %2481 = vmatmul.mubr.f32.gmra.mrb[0].mxu0 %v2410
    %v2482 = vpop.f32.mrb[0].mxu0
    %v2483 = vadd.f32 0.0, %v2482
    %v2484 = vpop.f32.mrb[0].mxu0
    %2485 = vdwg.mxu0
    %v2486 = vadd.f32 %v2414, %v2483
    %2487 = vmatprep.subr.mxu0 0.0
    %2488 = vmatpush1.msra.mxu0 %v1232
    %2489 = vmatprep.subr.mxu0 0.0
    %2490 = vmatpush1.msra.mxu0 %v1233
    %2491 = vmatprep.subr.mxu0 0.0
    %2492 = vmatpush1.msra.mxu0 %v1234
    %2493 = vmatprep.subr.mxu0 0.0
    %2494 = vmatpush1.msra.mxu0 %v1235
    %2495 = vmatprep.subr.mxu0 0.0
    %2496 = vmatpush1.msra.mxu0 %v1236
    %2497 = vmatprep.subr.mxu0 0.0
    %2498 = vmatpush1.msra.mxu0 %v1237
    %2499 = vmatprep.subr.mxu0 0.0
    %2500 = vmatpush1.msra.mxu0 %v1238
    %2501 = vmatprep.subr.mxu0 0.0
    %2502 = vmatpush1.msra.mxu0 %v1239
    %2503 = vmatprep.subr.mxu0 0.0
    %2504 = vmatpush1.msra.mxu0 %v1240
    %2505 = vmatprep.subr.mxu0 0.0
    %2506 = vmatpush1.msra.mxu0 %v1241
    %2507 = vmatprep.subr.mxu0 0.0
    %2508 = vmatpush1.msra.mxu0 %v1242
    %2509 = vmatprep.subr.mxu0 0.0
    %2510 = vmatpush1.msra.mxu0 %v1243
    %2511 = vmatprep.subr.mxu0 0.0
    %2512 = vmatpush1.msra.mxu0 %v1244
    %2513 = vmatprep.subr.mxu0 0.0
    %2514 = vmatpush1.msra.mxu0 %v1245
    %2515 = vmatprep.subr.mxu0 0.0
    %2516 = vmatpush1.msra.mxu0 %v1246
    %2517 = vmatprep.subr.mxu0 0.0
    %2518 = vmatpush1.msra.mxu0 %v1247
    %2519 = vmatprep.subr.mxu0 0.0
    %2520 = vmatpush1.msra.mxu0 0.0
    %2521 = vmatprep.subr.mxu0 0.0
    %2522 = vmatpush1.msra.mxu0 0.0
    %2523 = vmatprep.subr.mxu0 0.0
    %2524 = vmatpush1.msra.mxu0 0.0
    %2525 = vmatprep.subr.mxu0 0.0
    %2526 = vmatpush1.msra.mxu0 0.0
    %2527 = vmatprep.subr.mxu0 0.0
    %2528 = vmatpush1.msra.mxu0 0.0
    %2529 = vmatprep.subr.mxu0 0.0
    %2530 = vmatpush1.msra.mxu0 0.0
    %2531 = vmatprep.subr.mxu0 0.0
    %2532 = vmatpush1.msra.mxu0 0.0
    %2533 = vmatprep.subr.mxu0 0.0
    %2534 = vmatpush1.msra.mxu0 0.0
    %2535 = vmatprep.subr.mxu0 0.0
    %2536 = vmatpush1.msra.mxu0 0.0
    %2537 = vmatprep.subr.mxu0 0.0
    %2538 = vmatpush1.msra.mxu0 0.0
    %2539 = vmatprep.subr.mxu0 0.0
    %2540 = vmatpush1.msra.mxu0 0.0
    %2541 = vmatprep.subr.mxu0 0.0
    %2542 = vmatpush1.msra.mxu0 0.0
    %2543 = vmatprep.subr.mxu0 0.0
    %2544 = vmatpush1.msra.mxu0 0.0
    %2545 = vmatprep.subr.mxu0 0.0
    %2546 = vmatpush1.msra.mxu0 0.0
    %2547 = vmatprep.subr.mxu0 0.0
    %2548 = vmatpush1.msra.mxu0 0.0
    %2549 = vmatprep.subr.mxu0 0.0
    %2550 = vmatpush1.msra.mxu0 0.0
    %2551 = vmatprep.mubr.f32.mxu0 0.0
    %2552 = vmatmul.mubr.f32.gmra.mrb[0].mxu0 %v2411
    %v2553 = vpop.f32.mrb[0].mxu0
    %v2554 = vadd.f32 0.0, %v2553
    %v2555 = vpop.f32.mrb[0].mxu0
    %2556 = vdwg.mxu0
    %v2557 = vadd.f32 %v2415, %v2554
    %v2558 = vtanh.pop %v2486
    %v2559 = vtanh.pop %v2557
    %2560 = vst [vmem:[%s1227] sm:$0xff] %v2558
    %2561 = vst [vmem:[%s1229] sm:$0xff] %v2559
    %v2562 = vld [vmem:[#allocation2] sm:$0xff]
    %v2563 = vld [vmem:[#allocation2 + $0x8] sm:$0xff]
    %v2564 = vld [vmem:[#allocation2 + $0x10] sm:$0xff]
    %v2565 = vld [vmem:[#allocation2 + $0x18] sm:$0xff]
    %v2566 = vld [vmem:[#allocation2 + $0x20] sm:$0xff]
    %v2567 = vld [vmem:[#allocation2 + $0x28] sm:$0xff]
    %v2568 = vld [vmem:[#allocation2 + $0x30] sm:$0xff]
    %v2569 = vld [vmem:[#allocation2 + $0x38] sm:$0xff]
    %v2570 = vld [vmem:[#allocation2 + $0x40] sm:$0xff]
    %v2571 = vld [vmem:[#allocation2 + $0x48] sm:$0xff]
    %v2572 = vld [vmem:[#allocation2 + $0x50] sm:$0xff]
    %v2573 = vld [vmem:[#allocation2 + $0x58] sm:$0xff]
    %v2574 = vld [vmem:[#allocation2 + $0x60] sm:$0xff]
    %v2575 = vld [vmem:[#allocation2 + $0x68] sm:$0xff]
    %v2576 = vld [vmem:[#allocation2 + $0x70] sm:$0xff]
    %v2577 = vld [vmem:[#allocation2 + $0x78] sm:$0xff]
    %v2578 = vld [vmem:[#allocation9] sm:$0xff]
    %v2579 = vld [vmem:[#allocation9 + $0x8] sm:$0xff]
    %v2580 = vld [vmem:[#allocation9 + $0x10] sm:$0xff]
    %v2581 = vld [vmem:[#allocation9 + $0x18] sm:$0xff]
    %v2582 = vld [vmem:[#allocation9 + $0x20] sm:$0xff]
    %v2583 = vld [vmem:[#allocation9 + $0x28] sm:$0xff]
    %v2584 = vld [vmem:[#allocation9 + $0x30] sm:$0xff]
    %v2585 = vld [vmem:[#allocation9 + $0x38] sm:$0xff]
    %v2586 = vld [vmem:[#allocation9 + $0x40] sm:$0xff]
    %v2587 = vld [vmem:[#allocation9 + $0x48] sm:$0xff]
    %v2588 = vld [vmem:[#allocation9 + $0x50] sm:$0xff]
    %v2589 = vld [vmem:[#allocation9 + $0x58] sm:$0xff]
    %v2590 = vld [vmem:[#allocation9 + $0x60] sm:$0xff]
    %v2591 = vld [vmem:[#allocation9 + $0x68] sm:$0xff]
    %v2592 = vld [vmem:[#allocation9 + $0x70] sm:$0xff]
    %v2593 = vld [vmem:[#allocation9 + $0x78] sm:$0xff]
    %v2594 = vld [vmem:[%s5] sm:$0x1]
    %v2596 = vlaneseq
    %v2597 = vshrl.u32 %v2596, 7
    %v2598 = vsub.s32 0, %v2597
    %v2599 = vrot.slane %v2594, %v2598
    %2601 = vmatprep.subr.mxu0 0.0
    %2602 = vmatpush1.msra.mxu0 %v2578
    %2603 = vmatprep.subr.mxu0 0.0
    %2604 = vmatpush1.msra.mxu0 %v2579
    %2605 = vmatprep.subr.mxu0 0.0
    %2606 = vmatpush1.msra.mxu0 %v2580
    %2607 = vmatprep.subr.mxu0 0.0
    %2608 = vmatpush1.msra.mxu0 %v2581
    %2609 = vmatprep.subr.mxu0 0.0
    %2610 = vmatpush1.msra.mxu0 %v2582
    %2611 = vmatprep.subr.mxu0 0.0
    %2612 = vmatpush1.msra.mxu0 %v2583
    %2613 = vmatprep.subr.mxu0 0.0
    %2614 = vmatpush1.msra.mxu0 %v2584
    %2615 = vmatprep.subr.mxu0 0.0
    %2616 = vmatpush1.msra.mxu0 %v2585
    %2617 = vmatprep.subr.mxu0 0.0
    %2618 = vmatpush1.msra.mxu0 %v2586
    %2619 = vmatprep.subr.mxu0 0.0
    %2620 = vmatpush1.msra.mxu0 %v2587
    %2621 = vmatprep.subr.mxu0 0.0
    %2622 = vmatpush1.msra.mxu0 %v2588
    %2623 = vmatprep.subr.mxu0 0.0
    %2624 = vmatpush1.msra.mxu0 %v2589
    %2625 = vmatprep.subr.mxu0 0.0
    %2626 = vmatpush1.msra.mxu0 %v2590
    %2627 = vmatprep.subr.mxu0 0.0
    %2628 = vmatpush1.msra.mxu0 %v2591
    %2629 = vmatprep.subr.mxu0 0.0
    %2630 = vmatpush1.msra.mxu0 %v2592
    %2631 = vmatprep.subr.mxu0 0.0
    %2632 = vmatpush1.msra.mxu0 %v2593
    %2633 = vmatprep.subr.mxu0 0.0
    %2634 = vmatpush1.msra.mxu0 0.0
    %2635 = vmatprep.subr.mxu0 0.0
    %2636 = vmatpush1.msra.mxu0 0.0
    %2637 = vmatprep.subr.mxu0 0.0
    %2638 = vmatpush1.msra.mxu0 0.0
    %2639 = vmatprep.subr.mxu0 0.0
    %2640 = vmatpush1.msra.mxu0 0.0
    %2641 = vmatprep.subr.mxu0 0.0
    %2642 = vmatpush1.msra.mxu0 0.0
    %2643 = vmatprep.subr.mxu0 0.0
    %2644 = vmatpush1.msra.mxu0 0.0
    %2645 = vmatprep.subr.mxu0 0.0
    %2646 = vmatpush1.msra.mxu0 0.0
    %2647 = vmatprep.subr.mxu0 0.0
    %2648 = vmatpush1.msra.mxu0 0.0
    %2649 = vmatprep.subr.mxu0 0.0
    %2650 = vmatpush1.msra.mxu0 0.0
    %2651 = vmatprep.subr.mxu0 0.0
    %2652 = vmatpush1.msra.mxu0 0.0
    %2653 = vmatprep.subr.mxu0 0.0
    %2654 = vmatpush1.msra.mxu0 0.0
    %2655 = vmatprep.subr.mxu0 0.0
    %2656 = vmatpush1.msra.mxu0 0.0
    %2657 = vmatprep.subr.mxu0 0.0
    %2658 = vmatpush1.msra.mxu0 0.0
    %2659 = vmatprep.subr.mxu0 0.0
    %2660 = vmatpush1.msra.mxu0 0.0
    %2661 = vmatprep.subr.mxu0 0.0
    %2662 = vmatpush1.msra.mxu0 0.0
    %2663 = vmatprep.subr.mxu0 0.0
    %2664 = vmatpush1.msra.mxu0 0.0
    %2665 = vmatprep.mubr.f32.mxu0 0.0
    %2666 = vmatmul.mubr.f32.gmra.mrb[0].mxu0 %v2562
    %v2667 = vpop.f32.mrb[0].mxu0
    %v2668 = vadd.f32 %v2599, %v2667
    %v2669 = vpop.f32.mrb[0].mxu0
    %2670 = vmatprep.mubr.f32.mxu0 0.0
    %2671 = vmatmul.mubr.f32.gmra.mrb[0].mxu0 %v2563
    %v2672 = vpop.f32.mrb[0].mxu0
    %v2673 = vadd.f32 %v2599, %v2672
    %v2674 = vpop.f32.mrb[0].mxu0
    %2675 = vmatprep.mubr.f32.mxu0 0.0
    %2676 = vmatmul.mubr.f32.gmra.mrb[0].mxu0 %v2564
    %v2677 = vpop.f32.mrb[0].mxu0
    %v2678 = vadd.f32 %v2599, %v2677
    %v2679 = vpop.f32.mrb[0].mxu0
    %2680 = vmatprep.mubr.f32.mxu0 0.0
    %2681 = vmatmul.mubr.f32.gmra.mrb[0].mxu0 %v2565
    %v2682 = vpop.f32.mrb[0].mxu0
    %v2683 = vadd.f32 %v2599, %v2682
    %v2684 = vpop.f32.mrb[0].mxu0
    %2685 = vmatprep.mubr.f32.mxu0 0.0
    %2686 = vmatmul.mubr.f32.gmra.mrb[0].mxu0 %v2566
    %v2687 = vpop.f32.mrb[0].mxu0
    %v2688 = vadd.f32 %v2599, %v2687
    %v2689 = vpop.f32.mrb[0].mxu0
    %2690 = vmatprep.mubr.f32.mxu0 0.0
    %2691 = vmatmul.mubr.f32.gmra.mrb[0].mxu0 %v2567
    %v2692 = vpop.f32.mrb[0].mxu0
    %v2693 = vadd.f32 %v2599, %v2692
    %v2694 = vpop.f32.mrb[0].mxu0
    %2695 = vmatprep.mubr.f32.mxu0 0.0
    %2696 = vmatmul.mubr.f32.gmra.mrb[0].mxu0 %v2568
    %v2697 = vpop.f32.mrb[0].mxu0
    %v2698 = vadd.f32 %v2599, %v2697
    %v2699 = vpop.f32.mrb[0].mxu0
    %2700 = vmatprep.mubr.f32.mxu0 0.0
    %2701 = vmatmul.mubr.f32.gmra.mrb[0].mxu0 %v2569
    %v2702 = vpop.f32.mrb[0].mxu0
    %v2703 = vadd.f32 %v2599, %v2702
    %v2704 = vpop.f32.mrb[0].mxu0
    %2705 = vmatprep.mubr.f32.mxu0 0.0
    %2706 = vmatmul.mubr.f32.gmra.mrb[0].mxu0 %v2570
    %v2707 = vpop.f32.mrb[0].mxu0
    %v2708 = vadd.f32 %v2599, %v2707
    %v2709 = vpop.f32.mrb[0].mxu0
    %2710 = vmatprep.mubr.f32.mxu0 0.0
    %2711 = vmatmul.mubr.f32.gmra.mrb[0].mxu0 %v2571
    %v2712 = vpop.f32.mrb[0].mxu0
    %v2713 = vadd.f32 %v2599, %v2712
    %v2714 = vpop.f32.mrb[0].mxu0
    %2715 = vmatprep.mubr.f32.mxu0 0.0
    %2716 = vmatmul.mubr.f32.gmra.mrb[0].mxu0 %v2572
    %v2717 = vpop.f32.mrb[0].mxu0
    %v2718 = vadd.f32 %v2599, %v2717
    %v2719 = vpop.f32.mrb[0].mxu0
    %2720 = vmatprep.mubr.f32.mxu0 0.0
    %2721 = vmatmul.mubr.f32.gmra.mrb[0].mxu0 %v2573
    %v2722 = vpop.f32.mrb[0].mxu0
    %v2723 = vadd.f32 %v2599, %v2722
    %v2724 = vpop.f32.mrb[0].mxu0
    %2725 = vmatprep.mubr.f32.mxu0 0.0
    %2726 = vmatmul.mubr.f32.gmra.mrb[0].mxu0 %v2574
    %v2727 = vpop.f32.mrb[0].mxu0
    %v2728 = vadd.f32 %v2599, %v2727
    %v2729 = vpop.f32.mrb[0].mxu0
    %2730 = vmatprep.mubr.f32.mxu0 0.0
    %2731 = vmatmul.mubr.f32.gmra.mrb[0].mxu0 %v2575
    %v2732 = vpop.f32.mrb[0].mxu0
    %v2733 = vadd.f32 %v2599, %v2732
    %v2734 = vpop.f32.mrb[0].mxu0
    %2735 = vmatprep.mubr.f32.mxu0 0.0
    %2736 = vmatmul.mubr.f32.gmra.mrb[0].mxu0 %v2576
    %v2737 = vpop.f32.mrb[0].mxu0
    %v2738 = vadd.f32 %v2599, %v2737
    %v2739 = vpop.f32.mrb[0].mxu0
    %2740 = vmatprep.mubr.f32.mxu0 0.0
    %2741 = vmatmul.mubr.f32.gmra.mrb[0].mxu0 %v2577
    %v2742 = vpop.f32.mrb[0].mxu0
    %v2743 = vadd.f32 %v2599, %v2742
    %v2744 = vpop.f32.mrb[0].mxu0
    %2745 = vdwg.mxu0
    %2746 = vst [vmem:[#allocation11] sm:$0xff] %v2668
    %2747 = vst [vmem:[#allocation11 + $0x8] sm:$0xff] %v2673
    %2748 = vst [vmem:[#allocation11 + $0x10] sm:$0xff] %v2678
    %2749 = vst [vmem:[#allocation11 + $0x18] sm:$0xff] %v2683
    %2750 = vst [vmem:[#allocation11 + $0x20] sm:$0xff] %v2688
    %2751 = vst [vmem:[#allocation11 + $0x28] sm:$0xff] %v2693
    %2752 = vst [vmem:[#allocation11 + $0x30] sm:$0xff] %v2698
    %2753 = vst [vmem:[#allocation11 + $0x38] sm:$0xff] %v2703
    %2754 = vst [vmem:[#allocation11 + $0x40] sm:$0xff] %v2708
    %2755 = vst [vmem:[#allocation11 + $0x48] sm:$0xff] %v2713
    %2756 = vst [vmem:[#allocation11 + $0x50] sm:$0xff] %v2718
    %2757 = vst [vmem:[#allocation11 + $0x58] sm:$0xff] %v2723
    %2758 = vst [vmem:[#allocation11 + $0x60] sm:$0xff] %v2728
    %2759 = vst [vmem:[#allocation11 + $0x68] sm:$0xff] %v2733
    %2760 = vst [vmem:[#allocation11 + $0x70] sm:$0xff] %v2738
    %2761 = vst [vmem:[#allocation11 + $0x78] sm:$0xff] %v2743
    // Predicated region
    $region42: #{tpu_custom_call.1} parent=1 // pred_check
      _
    $region43: #{tpu_custom_call.1} parent=1 // pred_check_branch
      %2763 = sbr.rel (0) target = $region45
    $region44: #{tpu_custom_call.1} parent=1 // pred_region
      %s2765 = ssub.s32 2048, 2048
      %2766 = vsyncadd [#allocation5], %s2765
      %s2767 = sshll.u32 [#allocation11], 4
      %s2768 = int_to_ptr.vmem [resolvable:$true] %s2767
      %2773 = dma.vmem_to_hbm [thread:$0]  %s2768, 2048, %s6, [#allocation5], 128, 128, 8
    $region45: #{tpu_custom_call.1} parent=1 // pred_fallthru
      _
    // Predicated region
    $region46: #{tpu_custom_call.1} parent=1 // pred_check
      _
    $region47: #{tpu_custom_call.1} parent=1 // pred_check_branch
      %2775 = sbr.rel (0) target = $region49
    $region48: #{tpu_custom_call.1} parent=1 // pred_region
      %2776 = dma.done [#allocation5], 2048
    $region49: #{tpu_custom_call.1} parent=1 // pred_fallthru
      _
    %2777 = vsyncpa [#allocation4], 1
    %2778 = vsyncpa [#allocation7], 1
    %2779 = vsyncpa [#allocation10], 1
    %2780 = vsyncpa [#allocation5], 1

</llo_original>
